<compile_context>
chip_gen: v6e
topology: v6e:2x2x1
jax: 0.10.0
libtpu: 0.0.40
codegen_flags: <defaults>
</compile_context>

<pallas_src>
import functools
import numpy as np
import jax
import jax.numpy as jnp
from jax.experimental import pallas as pl
from jax.experimental.pallas import tpu as pltpu

# ---- model dims (small, structurally consistent with MMModelLSTM defaults) ----
IN_SIZE = 32
OUT_CHANNELS = 16        # only used by the raw params / unfused reference
KERNEL_SIZE = 5          # odd, padding='same'
LSTM_HIDDEN = 32         # 4*H = 128 -> gate block is exactly one lane tile
HIDDEN_DIM = 16
OUT_SIZE = 8
OUT_PAD = 128            # lane-dense logits slab width; wrapper slices back to OUT_SIZE
BN_EPS = 1e-5
NEG_INF = -1e30


# ----------------------------- fused forward kernel -----------------------------
def _fused_kernel(len_ref,                       # (BB, 1) int32 lengths for this chunk
                  x_ref,                         # (1, L*BB, Cin) time-major rows (t, b)
                  wck_ref,                       # (K, Cin, 4H)   conv ⊛ W_ih folded taps
                  bih_ref,                       # (1, 4H)        folded bias
                  whh_ref,                       # (H, 4H)
                  w1_ref, b1_ref,                # (H, HIDDEN_DIM), (1, HIDDEN_DIM)
                  w2_ref, b2_ref,                # (HIDDEN_DIM, OUT_PAD), (1, OUT_PAD)
                  o_ref,                         # (1, L*BB, OUT_PAD)
                  precomp_ref,                   # VMEM scratch (L*BB, 4H)
                  lstm_ref,                      # VMEM scratch (L*BB, H)
                  *, L, BB):
    Cin = x_ref.shape[2]
    K = wck_ref.shape[0]
    H = LSTM_HIDDEN
    G = 4 * H
    R = L * BB
    pad_l = (K - 1) // 2
    pad_r = K - 1 - pad_l

    # ---- Conv1d('same') folded into the LSTM input projection ----
    # rows are time-major (t, b): a shift of d timesteps == a shift of d*BB rows,
    # so zero-padding + static slices stay sublane-tile aligned when BB == 8.
    x2 = x_ref[0]                                              # (R, Cin)
    xp = jnp.concatenate(
        [jnp.zeros((pad_l * BB, Cin), jnp.float32), x2,
         jnp.zeros((pad_r * BB, Cin), jnp.float32)], axis=0)   # (R + (K-1)*BB, Cin)
    acc = jnp.zeros((R, G), jnp.float32)
    for k in range(K):                                         # static tap loop
        acc = acc + jnp.dot(xp[k * BB:k * BB + R, :], wck_ref[k],
                            preferred_element_type=jnp.float32)
    precomp_ref[...] = acc + bih_ref[...]                      # (R, 4H), time-major
    # Dropout after the CNN block: identity (eval mode)

    # ---- LSTM recurrence (statically unrolled, batched over BB, length-masked) ----
    lens = len_ref[...]                                        # (BB, 1) int32
    whh = whh_ref[...]                                         # (H, 4H)
    h = jnp.zeros((BB, H), jnp.float32)
    c = jnp.zeros((BB, H), jnp.float32)
    for t in range(L):
        pc = precomp_ref[t * BB:(t + 1) * BB, :]               # aligned (BB, 4H) vld
        gates = pc + jnp.dot(h, whh, preferred_element_type=jnp.float32)
        sg = jax.nn.sigmoid(gates)                             # one EUP pass, full vreg
        th = jnp.tanh(gates)                                   # one EUP pass, full vreg
        i_g = sg[:, 0:H]                                       # PyTorch gate order i,f,g,o
        f_g = sg[:, H:2 * H]
        o_g = sg[:, 3 * H:4 * H]
        g_g = th[:, 2 * H:3 * H]
        c_new = f_g * c + i_g * g_g
        h_new = o_g * jnp.tanh(c_new)
        valid = t < lens                                       # (BB, 1) bool
        h = jnp.where(valid, h_new, h)                         # packed: state frozen past len
        c = jnp.where(valid, c_new, c)
        lstm_ref[t * BB:(t + 1) * BB, :] = jnp.where(valid, h_new, 0.0)  # pad_packed zeros

    # ---- head: Linear -> (Dropout=id) -> ReLU -> (BN folded) -> Linear -> Softmax ----
    hs = lstm_ref[...]                                         # (R, H)
    h1 = jnp.dot(hs, w1_ref[...], preferred_element_type=jnp.float32) + b1_ref[...]
    h1 = jnp.maximum(h1, 0.0)
    logits = jnp.dot(h1, w2_ref[...], preferred_element_type=jnp.float32) + b2_ref[...]
    # padded lanes carry bias -1e30 -> exp underflows to exactly 0
    m = jnp.max(logits, axis=-1, keepdims=True)
    e = jnp.exp(logits - m)
    s = jnp.sum(e, axis=-1, keepdims=True)
    o_ref[0] = e / s                                           # exact divide, lane-dense store


# --------------------------------- prep / wrapper ---------------------------------
def prepare_params(p):
    """One-time weight preprocessing (keeps the per-call wrapper / kernel minimal):
    fold Conv1d into W_ih, fold eval BatchNorm into the final Linear, pad logits to 128."""
    bn_scale = p["bn_gamma"] * jax.lax.rsqrt(p["bn_var"] + BN_EPS)     # (1, HIDDEN_DIM)
    bn_shift = p["bn_beta"] - p["bn_mean"] * bn_scale
    # conv -> W_ih fold
    wck = jnp.einsum("kco,oh->kch", p["conv_w"], p["w_ih"]).astype(jnp.float32)  # (K,Cin,4H)
    bih = (p["conv_b"] @ p["w_ih"] + p["lstm_b"]).astype(jnp.float32)            # (1,4H)
    # BN -> W2 fold (valid because ReLU precedes the BN)
    w2f = p["w2"] * bn_scale.reshape(-1, 1)                                      # (HID, OUT)
    b2f = p["b2"] + bn_shift @ p["w2"]                                           # (1, OUT)
    w2p = jnp.zeros((HIDDEN_DIM, OUT_PAD), jnp.float32).at[:, :OUT_SIZE].set(w2f)
    b2p = jnp.full((1, OUT_PAD), NEG_INF, jnp.float32).at[:, :OUT_SIZE].set(b2f)
    return {"wck": wck, "bih": bih, "whh": p["w_hh"],
            "w1": p["w1"], "b1": p["b1"], "w2p": w2p, "b2p": b2p}


def mm_model_lstm_forward(x, lengths, prep, *, block_b=8):
    """x: (B, L, IN_SIZE) f32, lengths: host ints (B,). Returns (B, max(lengths), OUT_SIZE)."""
    B, L, Cin = x.shape
    lengths_np = np.asarray(lengths).astype(np.int32).reshape(B)
    # BB=8 fills f32 sublanes (v5e/v6e); on v7x prefer min(8, ceil(B/2)) so grid >= 2 programs.
    BB = int(min(block_b, B))
    nb = int(pl.cdiv(B, BB))
    B_pad = nb * BB
    G = 4 * LSTM_HIDDEN

    # ---- layout plumbing (tiny XLA ops): batch-chunked, time-major, row-flattened ----
    if B_pad != B:
        x = jnp.concatenate([x, jnp.zeros((B_pad - B, L, Cin), x.dtype)], axis=0)
    xr = jnp.transpose(x.reshape(nb, BB, L, Cin), (0, 2, 1, 3)).reshape(nb, L * BB, Cin)
    lens_np = np.zeros((B_pad, 1), np.int32)
    lens_np[:B, 0] = lengths_np
    lens = jnp.asarray(lens_np)

    def wspec(shape):
        return pl.BlockSpec(shape, lambda i: (0,) * len(shape))

    grid_spec = pltpu.PrefetchScalarGridSpec(
        num_scalar_prefetch=0,
        grid=(nb,),
        in_specs=[
            pl.BlockSpec((BB, 1), lambda i: (i, 0)),               # lengths
            pl.BlockSpec((1, L * BB, Cin), lambda i: (i, 0, 0)),   # x, time-major rows
            wspec((KERNEL_SIZE, IN_SIZE, G)),                      # folded conv taps
            wspec((1, G)),                                         # folded bias
            wspec((LSTM_HIDDEN, G)),                               # W_hh
            wspec((LSTM_HIDDEN, HIDDEN_DIM)),                      # W1
            wspec((1, HIDDEN_DIM)),                                # b1
            wspec((HIDDEN_DIM, OUT_PAD)),                          # W2 (BN folded, padded)
            wspec((1, OUT_PAD)),                                   # b2 (BN folded, pads=-1e30)
        ],
        out_specs=pl.BlockSpec((1, L * BB, OUT_PAD), lambda i: (i, 0, 0)),
        scratch_shapes=[
            pltpu.VMEM((L * BB, G), jnp.float32),                  # precomp, time-major
            pltpu.VMEM((L * BB, LSTM_HIDDEN), jnp.float32),        # LSTM output sequence
        ],
    )

    out = pl.pallas_call(
        functools.partial(_fused_kernel, L=L, BB=BB),
        out_shape=jax.ShapeDtypeStruct((nb, L * BB, OUT_PAD), jnp.float32),
        grid_spec=grid_spec,
        compiler_params=pltpu.CompilerParams(dimension_semantics=("parallel",)),
    )(lens, xr,
      prep["wck"], prep["bih"], prep["whh"],
      prep["w1"], prep["b1"], prep["w2p"], prep["b2p"])

    # pad_packed_sequence semantics: output time dim = max(lengths); slice padded lanes off.
    t_max = int(lengths_np.max())
    out = jnp.transpose(out.reshape(nb, L, BB, OUT_PAD), (0, 2, 1, 3)).reshape(B_pad, L, OUT_PAD)
    return out[:B, :t_max, :OUT_SIZE]


# ------------------------------ raw params / reference ------------------------------
def init_params(key):
    ks = jax.random.split(key, 13)

    def rnd(k, shape, scale=0.1):
        return (scale * jax.random.normal(k, shape)).astype(jnp.float32)

    return {
        # Conv1d(IN_SIZE, OUT_CHANNELS, K): stored as (K, Cin, Cout) for channels-last matmul
        "conv_w": rnd(ks[0], (KERNEL_SIZE, IN_SIZE, OUT_CHANNELS)),
        "conv_b": rnd(ks[1], (1, OUT_CHANNELS)),
        # LSTM(OUT_CHANNELS, LSTM_HIDDEN): weights stored as (in, 4H); bias = b_ih + b_hh
        "w_ih": rnd(ks[2], (OUT_CHANNELS, 4 * LSTM_HIDDEN)),
        "w_hh": rnd(ks[3], (LSTM_HIDDEN, 4 * LSTM_HIDDEN)),
        "lstm_b": rnd(ks[4], (1, 4 * LSTM_HIDDEN)),
        # Linear(LSTM_HIDDEN, HIDDEN_DIM)
        "w1": rnd(ks[5], (LSTM_HIDDEN, HIDDEN_DIM)),
        "b1": rnd(ks[6], (1, HIDDEN_DIM)),
        # BatchNorm1d(HIDDEN_DIM) eval-mode stats/affine
        "bn_gamma": (1.0 + 0.1 * jax.random.normal(ks[7], (1, HIDDEN_DIM))).astype(jnp.float32),
        "bn_beta": rnd(ks[8], (1, HIDDEN_DIM)),
        "bn_mean": rnd(ks[9], (1, HIDDEN_DIM)),
        "bn_var": (0.5 + jax.nn.sigmoid(jax.random.normal(ks[10], (1, HIDDEN_DIM)))).astype(jnp.float32),
        # Linear(HIDDEN_DIM, OUT_SIZE)
        "w2": rnd(ks[11], (HIDDEN_DIM, OUT_SIZE)),
        "b2": rnd(ks[12], (1, OUT_SIZE)),
    }


def reference_forward(x, lengths, p):
    """Pure-JAX unfused reference with the raw (unfolded) parameters."""
    B, L, _ = x.shape
    H = LSTM_HIDDEN
    pad_l = (KERNEL_SIZE - 1) // 2
    pad_r = KERNEL_SIZE - 1 - pad_l
    xp = jnp.pad(x, ((0, 0), (pad_l, pad_r), (0, 0)))
    conv = jnp.zeros((B, L, OUT_CHANNELS), jnp.float32)
    for k in range(KERNEL_SIZE):
        conv = conv + jnp.einsum("blc,co->blo", xp[:, k:k + L, :], p["conv_w"][k])
    conv = conv + p["conv_b"]
    precomp = jnp.einsum("blc,ch->blh", conv, p["w_ih"]) + p["lstm_b"]
    lens = jnp.asarray(np.asarray(lengths), jnp.int32).reshape(B, 1)
    h = jnp.zeros((B, H), jnp.float32)
    c = jnp.zeros((B, H), jnp.float32)
    outs = []
    for t in range(L):
        gates = precomp[:, t, :] + h @ p["w_hh"]
        i_g = jax.nn.sigmoid(gates[:, 0:H])
        f_g = jax.nn.sigmoid(gates[:, H:2 * H])
        g_g = jnp.tanh(gates[:, 2 * H:3 * H])
        o_g = jax.nn.sigmoid(gates[:, 3 * H:4 * H])
        c_new = f_g * c + i_g * g_g
        h_new = o_g * jnp.tanh(c_new)
        valid = t < lens
        h = jnp.where(valid, h_new, h)
        c = jnp.where(valid, c_new, c)
        outs.append(jnp.where(valid, h_new, 0.0))
    hs = jnp.stack(outs, axis=1)                                   # (B, L, H)
    h1 = jnp.maximum(jnp.einsum("blh,hd->bld", hs, p["w1"]) + p["b1"], 0.0)
    bn_scale = p["bn_gamma"] * jax.lax.rsqrt(p["bn_var"] + BN_EPS)
    bn_shift = p["bn_beta"] - p["bn_mean"] * bn_scale
    h1 = h1 * bn_scale + bn_shift
    logits = jnp.einsum("bld,do->blo", h1, p["w2"]) + p["b2"]
    probs = jax.nn.softmax(logits, axis=-1)
    t_max = int(np.max(np.asarray(lengths)))
    return probs[:, :t_max, :]


if __name__ == "__main__":
    B, L = 16, 16
    key = jax.random.PRNGKey(0)
    kx, kp = jax.random.split(key)
    x = jax.random.normal(kx, (B, L, IN_SIZE), dtype=jnp.float32)
    lengths = np.array([16, 11, 16, 7, 13, 16, 5, 16, 9, 16, 12, 3, 16, 14, 16, 8],
                       dtype=np.int32)
    params = init_params(kp)
    prep = prepare_params(params)

    out = mm_model_lstm_forward(x, lengths, prep)
    out = jax.block_until_ready(out)

    assert out.shape == (B, int(lengths.max()), OUT_SIZE), out.shape
    o = np.asarray(out)
    assert np.all(np.isfinite(o))
    # softmax rows must sum to 1 (exact divide in the kernel)
    assert np.allclose(o.sum(-1), 1.0, atol=1e-4), o.sum(-1)
    # compare against the unfused pure-JAX reference (conv/BN folds are exact reorderings)
    ref = np.asarray(reference_forward(x, lengths, params))
    assert np.allclose(o, ref, atol=1e-3, rtol=1e-3), float(np.abs(o - ref).max())
    print("KERNEL_OK")
</pallas_src>

<mosaic_0001>
module attributes {stable_mosaic.version = 11 : i64} {
  func.func @_fused_kernel(%arg0: i32, %arg1: memref<8x1xi32, #tpu.memory_space<vmem>>, %arg2: memref<1x128x32xf32, #tpu.memory_space<vmem>>, %arg3: memref<5x32x128xf32, #tpu.memory_space<vmem>>, %arg4: memref<1x128xf32, #tpu.memory_space<vmem>>, %arg5: memref<32x128xf32, #tpu.memory_space<vmem>>, %arg6: memref<32x16xf32, #tpu.memory_space<vmem>>, %arg7: memref<1x16xf32, #tpu.memory_space<vmem>>, %arg8: memref<16x128xf32, #tpu.memory_space<vmem>>, %arg9: memref<1x128xf32, #tpu.memory_space<vmem>>, %arg10: memref<1x128x128xf32, #tpu.memory_space<vmem>>, %arg11: memref<128x128xf32, #tpu.memory_space<vmem>>, %arg12: memref<128x32xf32, #tpu.memory_space<vmem>>) attributes {dimension_semantics = [#tpu.dimension_semantics<parallel>], iteration_bounds = array<i64: 2>, scalar_prefetch = 0 : i64, scratch_operands = 2 : i64, tpu.core_type = #tpu.core_type<tc>, window_params = [{transform_indices = @transform_0, window_bounds = array<i64: 8, 1>}, {transform_indices = @transform_1, window_bounds = array<i64: 1, 128, 32>}, {pipeline_mode = #tpu.pipeline_mode<synchronous>, transform_indices = @transform_2, window_bounds = array<i64: 5, 32, 128>}, {pipeline_mode = #tpu.pipeline_mode<synchronous>, transform_indices = @transform_3, window_bounds = array<i64: 1, 128>}, {pipeline_mode = #tpu.pipeline_mode<synchronous>, transform_indices = @transform_4, window_bounds = array<i64: 32, 128>}, {pipeline_mode = #tpu.pipeline_mode<synchronous>, transform_indices = @transform_5, window_bounds = array<i64: 32, 16>}, {pipeline_mode = #tpu.pipeline_mode<synchronous>, transform_indices = @transform_6, window_bounds = array<i64: 1, 16>}, {pipeline_mode = #tpu.pipeline_mode<synchronous>, transform_indices = @transform_7, window_bounds = array<i64: 16, 128>}, {pipeline_mode = #tpu.pipeline_mode<synchronous>, transform_indices = @transform_8, window_bounds = array<i64: 1, 128>}, {transform_indices = @transform_9, window_bounds = array<i64: 1, 128, 128>}]} {
    %c0 = arith.constant 0 : index
    %c0_0 = arith.constant 0 : index
    %c0_1 = arith.constant 0 : index
    %0 = vector.load %arg2[%c0, %c0_0, %c0_1] : memref<1x128x32xf32, #tpu.memory_space<vmem>>, vector<1x128x32xf32>
    %1 = vector.shape_cast %0 : vector<1x128x32xf32> to vector<128x32xf32>
    %cst = arith.constant 0.000000e+00 : f32
    %2 = vector.broadcast %cst : f32 to vector<16x32xf32>
    %cst_2 = arith.constant 0.000000e+00 : f32
    %3 = vector.broadcast %cst_2 : f32 to vector<16x32xf32>
    %4 = tpu.concatenate %2, %1, %3 in 0 : vector<16x32xf32>, vector<128x32xf32>, vector<16x32xf32> -> vector<160x32xf32>
    %cst_3 = arith.constant 0.000000e+00 : f32
    %5 = vector.broadcast %cst_3 : f32 to vector<128x128xf32>
    %6 = vector.extract_strided_slice %4 {offsets = [0, 0], sizes = [128, 32], strides = [1, 1]} : vector<160x32xf32> to vector<128x32xf32>
    %c0_4 = arith.constant 0 : index
    %c0_5 = arith.constant 0 : index
    %c0_6 = arith.constant 0 : index
    %7 = vector.load %arg3[%c0_4, %c0_5, %c0_6] : memref<5x32x128xf32, #tpu.memory_space<vmem>>, vector<1x32x128xf32>
    %8 = vector.shape_cast %7 : vector<1x32x128xf32> to vector<32x128xf32>
    %cst_7 = arith.constant dense<0.000000e+00> : vector<128x128xf32>
    %9 = tpu.matmul %6, %8, %cst_7 {dimension_numbers = #tpu.dot_dimension_numbers<[1], [0], [0], [1], [0, 0, 1, 1], [], []>} : vector<128x32xf32>, vector<32x128xf32>, vector<128x128xf32> -> vector<128x128xf32>
    %10 = arith.addf %5, %9 : vector<128x128xf32>
    %11 = vector.extract_strided_slice %4 {offsets = [8, 0], sizes = [128, 32], strides = [1, 1]} : vector<160x32xf32> to vector<128x32xf32>
    %c1 = arith.constant 1 : index
    %c0_8 = arith.constant 0 : index
    %c0_9 = arith.constant 0 : index
    %12 = vector.load %arg3[%c1, %c0_8, %c0_9] : memref<5x32x128xf32, #tpu.memory_space<vmem>>, vector<1x32x128xf32>
    %13 = vector.shape_cast %12 : vector<1x32x128xf32> to vector<32x128xf32>
    %cst_10 = arith.constant dense<0.000000e+00> : vector<128x128xf32>
    %14 = tpu.matmul %11, %13, %cst_10 {dimension_numbers = #tpu.dot_dimension_numbers<[1], [0], [0], [1], [0, 0, 1, 1], [], []>} : vector<128x32xf32>, vector<32x128xf32>, vector<128x128xf32> -> vector<128x128xf32>
    %15 = arith.addf %10, %14 : vector<128x128xf32>
    %16 = vector.extract_strided_slice %4 {offsets = [16, 0], sizes = [128, 32], strides = [1, 1]} : vector<160x32xf32> to vector<128x32xf32>
    %c2 = arith.constant 2 : index
    %c0_11 = arith.constant 0 : index
    %c0_12 = arith.constant 0 : index
    %17 = vector.load %arg3[%c2, %c0_11, %c0_12] : memref<5x32x128xf32, #tpu.memory_space<vmem>>, vector<1x32x128xf32>
    %18 = vector.shape_cast %17 : vector<1x32x128xf32> to vector<32x128xf32>
    %cst_13 = arith.constant dense<0.000000e+00> : vector<128x128xf32>
    %19 = tpu.matmul %16, %18, %cst_13 {dimension_numbers = #tpu.dot_dimension_numbers<[1], [0], [0], [1], [0, 0, 1, 1], [], []>} : vector<128x32xf32>, vector<32x128xf32>, vector<128x128xf32> -> vector<128x128xf32>
    %20 = arith.addf %15, %19 : vector<128x128xf32>
    %21 = vector.extract_strided_slice %4 {offsets = [24, 0], sizes = [128, 32], strides = [1, 1]} : vector<160x32xf32> to vector<128x32xf32>
    %c3 = arith.constant 3 : index
    %c0_14 = arith.constant 0 : index
    %c0_15 = arith.constant 0 : index
    %22 = vector.load %arg3[%c3, %c0_14, %c0_15] : memref<5x32x128xf32, #tpu.memory_space<vmem>>, vector<1x32x128xf32>
    %23 = vector.shape_cast %22 : vector<1x32x128xf32> to vector<32x128xf32>
    %cst_16 = arith.constant dense<0.000000e+00> : vector<128x128xf32>
    %24 = tpu.matmul %21, %23, %cst_16 {dimension_numbers = #tpu.dot_dimension_numbers<[1], [0], [0], [1], [0, 0, 1, 1], [], []>} : vector<128x32xf32>, vector<32x128xf32>, vector<128x128xf32> -> vector<128x128xf32>
    %25 = arith.addf %20, %24 : vector<128x128xf32>
    %26 = vector.extract_strided_slice %4 {offsets = [32, 0], sizes = [128, 32], strides = [1, 1]} : vector<160x32xf32> to vector<128x32xf32>
    %c4 = arith.constant 4 : index
    %c0_17 = arith.constant 0 : index
    %c0_18 = arith.constant 0 : index
    %27 = vector.load %arg3[%c4, %c0_17, %c0_18] : memref<5x32x128xf32, #tpu.memory_space<vmem>>, vector<1x32x128xf32>
    %28 = vector.shape_cast %27 : vector<1x32x128xf32> to vector<32x128xf32>
    %cst_19 = arith.constant dense<0.000000e+00> : vector<128x128xf32>
    %29 = tpu.matmul %26, %28, %cst_19 {dimension_numbers = #tpu.dot_dimension_numbers<[1], [0], [0], [1], [0, 0, 1, 1], [], []>} : vector<128x32xf32>, vector<32x128xf32>, vector<128x128xf32> -> vector<128x128xf32>
    %30 = arith.addf %25, %29 : vector<128x128xf32>
    %c0_20 = arith.constant 0 : index
    %c0_21 = arith.constant 0 : index
    %31 = vector.load %arg4[%c0_20, %c0_21] : memref<1x128xf32, #tpu.memory_space<vmem>>, vector<1x128xf32>
    %32 = vector.broadcast %31 : vector<1x128xf32> to vector<128x128xf32>
    %33 = arith.addf %30, %32 : vector<128x128xf32>
    %c0_22 = arith.constant 0 : index
    %c0_23 = arith.constant 0 : index
    %34 = vector.load %arg11[%c0_22, %c0_23] : memref<128x128xf32, #tpu.memory_space<vmem>>, vector<128x128xf32>
    tpu.vector_store %arg11[%c0_22, %c0_23], %33 {strides = array<i32>} : memref<128x128xf32, #tpu.memory_space<vmem>>, vector<128x128xf32>,
    %c0_24 = arith.constant 0 : index
    %c0_25 = arith.constant 0 : index
    %35 = vector.load %arg1[%c0_24, %c0_25] : memref<8x1xi32, #tpu.memory_space<vmem>>, vector<8x1xi32>
    %c0_26 = arith.constant 0 : index
    %c0_27 = arith.constant 0 : index
    %36 = vector.load %arg5[%c0_26, %c0_27] : memref<32x128xf32, #tpu.memory_space<vmem>>, vector<32x128xf32>
    %cst_28 = arith.constant 0.000000e+00 : f32
    %37 = vector.broadcast %cst_28 : f32 to vector<8x32xf32>
    %cst_29 = arith.constant 0.000000e+00 : f32
    %38 = vector.broadcast %cst_29 : f32 to vector<8x32xf32>
    %c0_30 = arith.constant 0 : index
    %c0_31 = arith.constant 0 : index
    %39 = vector.load %arg11[%c0_30, %c0_31] : memref<128x128xf32, #tpu.memory_space<vmem>>, vector<8x128xf32>
    %cst_32 = arith.constant dense<0.000000e+00> : vector<8x128xf32>
    %40 = tpu.matmul %37, %36, %cst_32 {dimension_numbers = #tpu.dot_dimension_numbers<[1], [0], [0], [1], [0, 0, 1, 1], [], []>} : vector<8x32xf32>, vector<32x128xf32>, vector<8x128xf32> -> vector<8x128xf32>
    %41 = arith.addf %39, %40 : vector<8x128xf32>
    %42 = arith.negf %41 : vector<8x128xf32>
    %43 = math.exp %42 : vector<8x128xf32>
    %cst_33 = arith.constant 1.000000e+00 : f32
    %44 = vector.broadcast %cst_33 : f32 to vector<8x128xf32>
    %45 = arith.addf %44, %43 : vector<8x128xf32>
    %46 = arith.divf %44, %45 : vector<8x128xf32>
    %47 = math.tanh %41 : vector<8x128xf32>
    %48 = vector.extract_strided_slice %46 {offsets = [0, 0], sizes = [8, 32], strides = [1, 1]} : vector<8x128xf32> to vector<8x32xf32>
    %49 = vector.extract_strided_slice %46 {offsets = [0, 32], sizes = [8, 32], strides = [1, 1]} : vector<8x128xf32> to vector<8x32xf32>
    %50 = vector.extract_strided_slice %46 {offsets = [0, 96], sizes = [8, 32], strides = [1, 1]} : vector<8x128xf32> to vector<8x32xf32>
    %51 = vector.extract_strided_slice %47 {offsets = [0, 64], sizes = [8, 32], strides = [1, 1]} : vector<8x128xf32> to vector<8x32xf32>
    %52 = arith.mulf %49, %38 : vector<8x32xf32>
    %53 = arith.mulf %48, %51 : vector<8x32xf32>
    %54 = arith.addf %52, %53 : vector<8x32xf32>
    %55 = math.tanh %54 : vector<8x32xf32>
    %56 = arith.mulf %50, %55 : vector<8x32xf32>
    %c0_i32 = arith.constant 0 : i32
    %57 = vector.broadcast %c0_i32 : i32 to vector<8x1xi32>
    %58 = arith.cmpi sgt, %35, %57 : vector<8x1xi32>
    %59 = vector.shape_cast %58 : vector<8x1xi1> to vector<8x1xi1>
    %60 = vector.broadcast %59 : vector<8x1xi1> to vector<8x32xi1>
    %61 = arith.select %60, %56, %37 : vector<8x32xi1>, vector<8x32xf32>
    %62 = vector.shape_cast %58 : vector<8x1xi1> to vector<8x1xi1>
    %63 = vector.broadcast %62 : vector<8x1xi1> to vector<8x32xi1>
    %64 = arith.select %63, %54, %38 : vector<8x32xi1>, vector<8x32xf32>
    %cst_34 = arith.constant 0.000000e+00 : f32
    %65 = vector.shape_cast %58 : vector<8x1xi1> to vector<8x1xi1>
    %66 = vector.broadcast %65 : vector<8x1xi1> to vector<8x32xi1>
    %67 = vector.broadcast %cst_34 : f32 to vector<8x32xf32>
    %68 = arith.select %66, %56, %67 : vector<8x32xi1>, vector<8x32xf32>
    %c0_35 = arith.constant 0 : index
    %c0_36 = arith.constant 0 : index
    %69 = vector.load %arg12[%c0_35, %c0_36] : memref<128x32xf32, #tpu.memory_space<vmem>>, vector<8x32xf32>
    tpu.vector_store %arg12[%c0_35, %c0_36], %68 {strides = array<i32>} : memref<128x32xf32, #tpu.memory_space<vmem>>, vector<8x32xf32>,
    %c8 = arith.constant 8 : index
    %c0_37 = arith.constant 0 : index
    %70 = vector.load %arg11[%c8, %c0_37] : memref<128x128xf32, #tpu.memory_space<vmem>>, vector<8x128xf32>
    %cst_38 = arith.constant dense<0.000000e+00> : vector<8x128xf32>
    %71 = tpu.matmul %61, %36, %cst_38 {dimension_numbers = #tpu.dot_dimension_numbers<[1], [0], [0], [1], [0, 0, 1, 1], [], []>} : vector<8x32xf32>, vector<32x128xf32>, vector<8x128xf32> -> vector<8x128xf32>
    %72 = arith.addf %70, %71 : vector<8x128xf32>
    %73 = arith.negf %72 : vector<8x128xf32>
    %74 = math.exp %73 : vector<8x128xf32>
    %cst_39 = arith.constant 1.000000e+00 : f32
    %75 = vector.broadcast %cst_39 : f32 to vector<8x128xf32>
    %76 = arith.addf %75, %74 : vector<8x128xf32>
    %77 = arith.divf %75, %76 : vector<8x128xf32>
    %78 = math.tanh %72 : vector<8x128xf32>
    %79 = vector.extract_strided_slice %77 {offsets = [0, 0], sizes = [8, 32], strides = [1, 1]} : vector<8x128xf32> to vector<8x32xf32>
    %80 = vector.extract_strided_slice %77 {offsets = [0, 32], sizes = [8, 32], strides = [1, 1]} : vector<8x128xf32> to vector<8x32xf32>
    %81 = vector.extract_strided_slice %77 {offsets = [0, 96], sizes = [8, 32], strides = [1, 1]} : vector<8x128xf32> to vector<8x32xf32>
    %82 = vector.extract_strided_slice %78 {offsets = [0, 64], sizes = [8, 32], strides = [1, 1]} : vector<8x128xf32> to vector<8x32xf32>
    %83 = arith.mulf %80, %64 : vector<8x32xf32>
    %84 = arith.mulf %79, %82 : vector<8x32xf32>
    %85 = arith.addf %83, %84 : vector<8x32xf32>
    %86 = math.tanh %85 : vector<8x32xf32>
    %87 = arith.mulf %81, %86 : vector<8x32xf32>
    %c1_i32 = arith.constant 1 : i32
    %88 = vector.broadcast %c1_i32 : i32 to vector<8x1xi32>
    %89 = arith.cmpi sgt, %35, %88 : vector<8x1xi32>
    %90 = vector.shape_cast %89 : vector<8x1xi1> to vector<8x1xi1>
    %91 = vector.broadcast %90 : vector<8x1xi1> to vector<8x32xi1>
    %92 = arith.select %91, %87, %61 : vector<8x32xi1>, vector<8x32xf32>
    %93 = vector.shape_cast %89 : vector<8x1xi1> to vector<8x1xi1>
    %94 = vector.broadcast %93 : vector<8x1xi1> to vector<8x32xi1>
    %95 = arith.select %94, %85, %64 : vector<8x32xi1>, vector<8x32xf32>
    %cst_40 = arith.constant 0.000000e+00 : f32
    %96 = vector.shape_cast %89 : vector<8x1xi1> to vector<8x1xi1>
    %97 = vector.broadcast %96 : vector<8x1xi1> to vector<8x32xi1>
    %98 = vector.broadcast %cst_40 : f32 to vector<8x32xf32>
    %99 = arith.select %97, %87, %98 : vector<8x32xi1>, vector<8x32xf32>
    %c8_41 = arith.constant 8 : index
    %c0_42 = arith.constant 0 : index
    %100 = vector.load %arg12[%c8_41, %c0_42] : memref<128x32xf32, #tpu.memory_space<vmem>>, vector<8x32xf32>
    tpu.vector_store %arg12[%c8_41, %c0_42], %99 {strides = array<i32>} : memref<128x32xf32, #tpu.memory_space<vmem>>, vector<8x32xf32>,
    %c16 = arith.constant 16 : index
    %c0_43 = arith.constant 0 : index
    %101 = vector.load %arg11[%c16, %c0_43] : memref<128x128xf32, #tpu.memory_space<vmem>>, vector<8x128xf32>
    %cst_44 = arith.constant dense<0.000000e+00> : vector<8x128xf32>
    %102 = tpu.matmul %92, %36, %cst_44 {dimension_numbers = #tpu.dot_dimension_numbers<[1], [0], [0], [1], [0, 0, 1, 1], [], []>} : vector<8x32xf32>, vector<32x128xf32>, vector<8x128xf32> -> vector<8x128xf32>
    %103 = arith.addf %101, %102 : vector<8x128xf32>
    %104 = arith.negf %103 : vector<8x128xf32>
    %105 = math.exp %104 : vector<8x128xf32>
    %cst_45 = arith.constant 1.000000e+00 : f32
    %106 = vector.broadcast %cst_45 : f32 to vector<8x128xf32>
    %107 = arith.addf %106, %105 : vector<8x128xf32>
    %108 = arith.divf %106, %107 : vector<8x128xf32>
    %109 = math.tanh %103 : vector<8x128xf32>
    %110 = vector.extract_strided_slice %108 {offsets = [0, 0], sizes = [8, 32], strides = [1, 1]} : vector<8x128xf32> to vector<8x32xf32>
    %111 = vector.extract_strided_slice %108 {offsets = [0, 32], sizes = [8, 32], strides = [1, 1]} : vector<8x128xf32> to vector<8x32xf32>
    %112 = vector.extract_strided_slice %108 {offsets = [0, 96], sizes = [8, 32], strides = [1, 1]} : vector<8x128xf32> to vector<8x32xf32>
    %113 = vector.extract_strided_slice %109 {offsets = [0, 64], sizes = [8, 32], strides = [1, 1]} : vector<8x128xf32> to vector<8x32xf32>
    %114 = arith.mulf %111, %95 : vector<8x32xf32>
    %115 = arith.mulf %110, %113 : vector<8x32xf32>
    %116 = arith.addf %114, %115 : vector<8x32xf32>
    %117 = math.tanh %116 : vector<8x32xf32>
    %118 = arith.mulf %112, %117 : vector<8x32xf32>
    %c2_i32 = arith.constant 2 : i32
    %119 = vector.broadcast %c2_i32 : i32 to vector<8x1xi32>
    %120 = arith.cmpi sgt, %35, %119 : vector<8x1xi32>
    %121 = vector.shape_cast %120 : vector<8x1xi1> to vector<8x1xi1>
    %122 = vector.broadcast %121 : vector<8x1xi1> to vector<8x32xi1>
    %123 = arith.select %122, %118, %92 : vector<8x32xi1>, vector<8x32xf32>
    %124 = vector.shape_cast %120 : vector<8x1xi1> to vector<8x1xi1>
    %125 = vector.broadcast %124 : vector<8x1xi1> to vector<8x32xi1>
    %126 = arith.select %125, %116, %95 : vector<8x32xi1>, vector<8x32xf32>
    %cst_46 = arith.constant 0.000000e+00 : f32
    %127 = vector.shape_cast %120 : vector<8x1xi1> to vector<8x1xi1>
    %128 = vector.broadcast %127 : vector<8x1xi1> to vector<8x32xi1>
    %129 = vector.broadcast %cst_46 : f32 to vector<8x32xf32>
    %130 = arith.select %128, %118, %129 : vector<8x32xi1>, vector<8x32xf32>
    %c16_47 = arith.constant 16 : index
    %c0_48 = arith.constant 0 : index
    %131 = vector.load %arg12[%c16_47, %c0_48] : memref<128x32xf32, #tpu.memory_space<vmem>>, vector<8x32xf32>
    tpu.vector_store %arg12[%c16_47, %c0_48], %130 {strides = array<i32>} : memref<128x32xf32, #tpu.memory_space<vmem>>, vector<8x32xf32>,
    %c24 = arith.constant 24 : index
    %c0_49 = arith.constant 0 : index
    %132 = vector.load %arg11[%c24, %c0_49] : memref<128x128xf32, #tpu.memory_space<vmem>>, vector<8x128xf32>
    %cst_50 = arith.constant dense<0.000000e+00> : vector<8x128xf32>
    %133 = tpu.matmul %123, %36, %cst_50 {dimension_numbers = #tpu.dot_dimension_numbers<[1], [0], [0], [1], [0, 0, 1, 1], [], []>} : vector<8x32xf32>, vector<32x128xf32>, vector<8x128xf32> -> vector<8x128xf32>
    %134 = arith.addf %132, %133 : vector<8x128xf32>
    %135 = arith.negf %134 : vector<8x128xf32>
    %136 = math.exp %135 : vector<8x128xf32>
    %cst_51 = arith.constant 1.000000e+00 : f32
    %137 = vector.broadcast %cst_51 : f32 to vector<8x128xf32>
    %138 = arith.addf %137, %136 : vector<8x128xf32>
    %139 = arith.divf %137, %138 : vector<8x128xf32>
    %140 = math.tanh %134 : vector<8x128xf32>
    %141 = vector.extract_strided_slice %139 {offsets = [0, 0], sizes = [8, 32], strides = [1, 1]} : vector<8x128xf32> to vector<8x32xf32>
    %142 = vector.extract_strided_slice %139 {offsets = [0, 32], sizes = [8, 32], strides = [1, 1]} : vector<8x128xf32> to vector<8x32xf32>
    %143 = vector.extract_strided_slice %139 {offsets = [0, 96], sizes = [8, 32], strides = [1, 1]} : vector<8x128xf32> to vector<8x32xf32>
    %144 = vector.extract_strided_slice %140 {offsets = [0, 64], sizes = [8, 32], strides = [1, 1]} : vector<8x128xf32> to vector<8x32xf32>
    %145 = arith.mulf %142, %126 : vector<8x32xf32>
    %146 = arith.mulf %141, %144 : vector<8x32xf32>
    %147 = arith.addf %145, %146 : vector<8x32xf32>
    %148 = math.tanh %147 : vector<8x32xf32>
    %149 = arith.mulf %143, %148 : vector<8x32xf32>
    %c3_i32 = arith.constant 3 : i32
    %150 = vector.broadcast %c3_i32 : i32 to vector<8x1xi32>
    %151 = arith.cmpi sgt, %35, %150 : vector<8x1xi32>
    %152 = vector.shape_cast %151 : vector<8x1xi1> to vector<8x1xi1>
    %153 = vector.broadcast %152 : vector<8x1xi1> to vector<8x32xi1>
    %154 = arith.select %153, %149, %123 : vector<8x32xi1>, vector<8x32xf32>
    %155 = vector.shape_cast %151 : vector<8x1xi1> to vector<8x1xi1>
    %156 = vector.broadcast %155 : vector<8x1xi1> to vector<8x32xi1>
    %157 = arith.select %156, %147, %126 : vector<8x32xi1>, vector<8x32xf32>
    %cst_52 = arith.constant 0.000000e+00 : f32
    %158 = vector.shape_cast %151 : vector<8x1xi1> to vector<8x1xi1>
    %159 = vector.broadcast %158 : vector<8x1xi1> to vector<8x32xi1>
    %160 = vector.broadcast %cst_52 : f32 to vector<8x32xf32>
    %161 = arith.select %159, %149, %160 : vector<8x32xi1>, vector<8x32xf32>
    %c24_53 = arith.constant 24 : index
    %c0_54 = arith.constant 0 : index
    %162 = vector.load %arg12[%c24_53, %c0_54] : memref<128x32xf32, #tpu.memory_space<vmem>>, vector<8x32xf32>
    tpu.vector_store %arg12[%c24_53, %c0_54], %161 {strides = array<i32>} : memref<128x32xf32, #tpu.memory_space<vmem>>, vector<8x32xf32>,
    %c32 = arith.constant 32 : index
    %c0_55 = arith.constant 0 : index
    %163 = vector.load %arg11[%c32, %c0_55] : memref<128x128xf32, #tpu.memory_space<vmem>>, vector<8x128xf32>
    %cst_56 = arith.constant dense<0.000000e+00> : vector<8x128xf32>
    %164 = tpu.matmul %154, %36, %cst_56 {dimension_numbers = #tpu.dot_dimension_numbers<[1], [0], [0], [1], [0, 0, 1, 1], [], []>} : vector<8x32xf32>, vector<32x128xf32>, vector<8x128xf32> -> vector<8x128xf32>
    %165 = arith.addf %163, %164 : vector<8x128xf32>
    %166 = arith.negf %165 : vector<8x128xf32>
    %167 = math.exp %166 : vector<8x128xf32>
    %cst_57 = arith.constant 1.000000e+00 : f32
    %168 = vector.broadcast %cst_57 : f32 to vector<8x128xf32>
    %169 = arith.addf %168, %167 : vector<8x128xf32>
    %170 = arith.divf %168, %169 : vector<8x128xf32>
    %171 = math.tanh %165 : vector<8x128xf32>
    %172 = vector.extract_strided_slice %170 {offsets = [0, 0], sizes = [8, 32], strides = [1, 1]} : vector<8x128xf32> to vector<8x32xf32>
    %173 = vector.extract_strided_slice %170 {offsets = [0, 32], sizes = [8, 32], strides = [1, 1]} : vector<8x128xf32> to vector<8x32xf32>
    %174 = vector.extract_strided_slice %170 {offsets = [0, 96], sizes = [8, 32], strides = [1, 1]} : vector<8x128xf32> to vector<8x32xf32>
    %175 = vector.extract_strided_slice %171 {offsets = [0, 64], sizes = [8, 32], strides = [1, 1]} : vector<8x128xf32> to vector<8x32xf32>
    %176 = arith.mulf %173, %157 : vector<8x32xf32>
    %177 = arith.mulf %172, %175 : vector<8x32xf32>
    %178 = arith.addf %176, %177 : vector<8x32xf32>
    %179 = math.tanh %178 : vector<8x32xf32>
    %180 = arith.mulf %174, %179 : vector<8x32xf32>
    %c4_i32 = arith.constant 4 : i32
    %181 = vector.broadcast %c4_i32 : i32 to vector<8x1xi32>
    %182 = arith.cmpi sgt, %35, %181 : vector<8x1xi32>
    %183 = vector.shape_cast %182 : vector<8x1xi1> to vector<8x1xi1>
    %184 = vector.broadcast %183 : vector<8x1xi1> to vector<8x32xi1>
    %185 = arith.select %184, %180, %154 : vector<8x32xi1>, vector<8x32xf32>
    %186 = vector.shape_cast %182 : vector<8x1xi1> to vector<8x1xi1>
    %187 = vector.broadcast %186 : vector<8x1xi1> to vector<8x32xi1>
    %188 = arith.select %187, %178, %157 : vector<8x32xi1>, vector<8x32xf32>
    %cst_58 = arith.constant 0.000000e+00 : f32
    %189 = vector.shape_cast %182 : vector<8x1xi1> to vector<8x1xi1>
    %190 = vector.broadcast %189 : vector<8x1xi1> to vector<8x32xi1>
    %191 = vector.broadcast %cst_58 : f32 to vector<8x32xf32>
    %192 = arith.select %190, %180, %191 : vector<8x32xi1>, vector<8x32xf32>
    %c32_59 = arith.constant 32 : index
    %c0_60 = arith.constant 0 : index
    %193 = vector.load %arg12[%c32_59, %c0_60] : memref<128x32xf32, #tpu.memory_space<vmem>>, vector<8x32xf32>
    tpu.vector_store %arg12[%c32_59, %c0_60], %192 {strides = array<i32>} : memref<128x32xf32, #tpu.memory_space<vmem>>, vector<8x32xf32>,
    %c40 = arith.constant 40 : index
    %c0_61 = arith.constant 0 : index
    %194 = vector.load %arg11[%c40, %c0_61] : memref<128x128xf32, #tpu.memory_space<vmem>>, vector<8x128xf32>
    %cst_62 = arith.constant dense<0.000000e+00> : vector<8x128xf32>
    %195 = tpu.matmul %185, %36, %cst_62 {dimension_numbers = #tpu.dot_dimension_numbers<[1], [0], [0], [1], [0, 0, 1, 1], [], []>} : vector<8x32xf32>, vector<32x128xf32>, vector<8x128xf32> -> vector<8x128xf32>
    %196 = arith.addf %194, %195 : vector<8x128xf32>
    %197 = arith.negf %196 : vector<8x128xf32>
    %198 = math.exp %197 : vector<8x128xf32>
    %cst_63 = arith.constant 1.000000e+00 : f32
    %199 = vector.broadcast %cst_63 : f32 to vector<8x128xf32>
    %200 = arith.addf %199, %198 : vector<8x128xf32>
    %201 = arith.divf %199, %200 : vector<8x128xf32>
    %202 = math.tanh %196 : vector<8x128xf32>
    %203 = vector.extract_strided_slice %201 {offsets = [0, 0], sizes = [8, 32], strides = [1, 1]} : vector<8x128xf32> to vector<8x32xf32>
    %204 = vector.extract_strided_slice %201 {offsets = [0, 32], sizes = [8, 32], strides = [1, 1]} : vector<8x128xf32> to vector<8x32xf32>
    %205 = vector.extract_strided_slice %201 {offsets = [0, 96], sizes = [8, 32], strides = [1, 1]} : vector<8x128xf32> to vector<8x32xf32>
    %206 = vector.extract_strided_slice %202 {offsets = [0, 64], sizes = [8, 32], strides = [1, 1]} : vector<8x128xf32> to vector<8x32xf32>
    %207 = arith.mulf %204, %188 : vector<8x32xf32>
    %208 = arith.mulf %203, %206 : vector<8x32xf32>
    %209 = arith.addf %207, %208 : vector<8x32xf32>
    %210 = math.tanh %209 : vector<8x32xf32>
    %211 = arith.mulf %205, %210 : vector<8x32xf32>
    %c5_i32 = arith.constant 5 : i32
    %212 = vector.broadcast %c5_i32 : i32 to vector<8x1xi32>
    %213 = arith.cmpi sgt, %35, %212 : vector<8x1xi32>
    %214 = vector.shape_cast %213 : vector<8x1xi1> to vector<8x1xi1>
    %215 = vector.broadcast %214 : vector<8x1xi1> to vector<8x32xi1>
    %216 = arith.select %215, %211, %185 : vector<8x32xi1>, vector<8x32xf32>
    %217 = vector.shape_cast %213 : vector<8x1xi1> to vector<8x1xi1>
    %218 = vector.broadcast %217 : vector<8x1xi1> to vector<8x32xi1>
    %219 = arith.select %218, %209, %188 : vector<8x32xi1>, vector<8x32xf32>
    %cst_64 = arith.constant 0.000000e+00 : f32
    %220 = vector.shape_cast %213 : vector<8x1xi1> to vector<8x1xi1>
    %221 = vector.broadcast %220 : vector<8x1xi1> to vector<8x32xi1>
    %222 = vector.broadcast %cst_64 : f32 to vector<8x32xf32>
    %223 = arith.select %221, %211, %222 : vector<8x32xi1>, vector<8x32xf32>
    %c40_65 = arith.constant 40 : index
    %c0_66 = arith.constant 0 : index
    %224 = vector.load %arg12[%c40_65, %c0_66] : memref<128x32xf32, #tpu.memory_space<vmem>>, vector<8x32xf32>
    tpu.vector_store %arg12[%c40_65, %c0_66], %223 {strides = array<i32>} : memref<128x32xf32, #tpu.memory_space<vmem>>, vector<8x32xf32>,
    %c48 = arith.constant 48 : index
    %c0_67 = arith.constant 0 : index
    %225 = vector.load %arg11[%c48, %c0_67] : memref<128x128xf32, #tpu.memory_space<vmem>>, vector<8x128xf32>
    %cst_68 = arith.constant dense<0.000000e+00> : vector<8x128xf32>
    %226 = tpu.matmul %216, %36, %cst_68 {dimension_numbers = #tpu.dot_dimension_numbers<[1], [0], [0], [1], [0, 0, 1, 1], [], []>} : vector<8x32xf32>, vector<32x128xf32>, vector<8x128xf32> -> vector<8x128xf32>
    %227 = arith.addf %225, %226 : vector<8x128xf32>
    %228 = arith.negf %227 : vector<8x128xf32>
    %229 = math.exp %228 : vector<8x128xf32>
    %cst_69 = arith.constant 1.000000e+00 : f32
    %230 = vector.broadcast %cst_69 : f32 to vector<8x128xf32>
    %231 = arith.addf %230, %229 : vector<8x128xf32>
    %232 = arith.divf %230, %231 : vector<8x128xf32>
    %233 = math.tanh %227 : vector<8x128xf32>
    %234 = vector.extract_strided_slice %232 {offsets = [0, 0], sizes = [8, 32], strides = [1, 1]} : vector<8x128xf32> to vector<8x32xf32>
    %235 = vector.extract_strided_slice %232 {offsets = [0, 32], sizes = [8, 32], strides = [1, 1]} : vector<8x128xf32> to vector<8x32xf32>
    %236 = vector.extract_strided_slice %232 {offsets = [0, 96], sizes = [8, 32], strides = [1, 1]} : vector<8x128xf32> to vector<8x32xf32>
    %237 = vector.extract_strided_slice %233 {offsets = [0, 64], sizes = [8, 32], strides = [1, 1]} : vector<8x128xf32> to vector<8x32xf32>
    %238 = arith.mulf %235, %219 : vector<8x32xf32>
    %239 = arith.mulf %234, %237 : vector<8x32xf32>
    %240 = arith.addf %238, %239 : vector<8x32xf32>
    %241 = math.tanh %240 : vector<8x32xf32>
    %242 = arith.mulf %236, %241 : vector<8x32xf32>
    %c6_i32 = arith.constant 6 : i32
    %243 = vector.broadcast %c6_i32 : i32 to vector<8x1xi32>
    %244 = arith.cmpi sgt, %35, %243 : vector<8x1xi32>
    %245 = vector.shape_cast %244 : vector<8x1xi1> to vector<8x1xi1>
    %246 = vector.broadcast %245 : vector<8x1xi1> to vector<8x32xi1>
    %247 = arith.select %246, %242, %216 : vector<8x32xi1>, vector<8x32xf32>
    %248 = vector.shape_cast %244 : vector<8x1xi1> to vector<8x1xi1>
    %249 = vector.broadcast %248 : vector<8x1xi1> to vector<8x32xi1>
    %250 = arith.select %249, %240, %219 : vector<8x32xi1>, vector<8x32xf32>
    %cst_70 = arith.constant 0.000000e+00 : f32
    %251 = vector.shape_cast %244 : vector<8x1xi1> to vector<8x1xi1>
    %252 = vector.broadcast %251 : vector<8x1xi1> to vector<8x32xi1>
    %253 = vector.broadcast %cst_70 : f32 to vector<8x32xf32>
    %254 = arith.select %252, %242, %253 : vector<8x32xi1>, vector<8x32xf32>
    %c48_71 = arith.constant 48 : index
    %c0_72 = arith.constant 0 : index
    %255 = vector.load %arg12[%c48_71, %c0_72] : memref<128x32xf32, #tpu.memory_space<vmem>>, vector<8x32xf32>
    tpu.vector_store %arg12[%c48_71, %c0_72], %254 {strides = array<i32>} : memref<128x32xf32, #tpu.memory_space<vmem>>, vector<8x32xf32>,
    %c56 = arith.constant 56 : index
    %c0_73 = arith.constant 0 : index
    %256 = vector.load %arg11[%c56, %c0_73] : memref<128x128xf32, #tpu.memory_space<vmem>>, vector<8x128xf32>
    %cst_74 = arith.constant dense<0.000000e+00> : vector<8x128xf32>
    %257 = tpu.matmul %247, %36, %cst_74 {dimension_numbers = #tpu.dot_dimension_numbers<[1], [0], [0], [1], [0, 0, 1, 1], [], []>} : vector<8x32xf32>, vector<32x128xf32>, vector<8x128xf32> -> vector<8x128xf32>
    %258 = arith.addf %256, %257 : vector<8x128xf32>
    %259 = arith.negf %258 : vector<8x128xf32>
    %260 = math.exp %259 : vector<8x128xf32>
    %cst_75 = arith.constant 1.000000e+00 : f32
    %261 = vector.broadcast %cst_75 : f32 to vector<8x128xf32>
    %262 = arith.addf %261, %260 : vector<8x128xf32>
    %263 = arith.divf %261, %262 : vector<8x128xf32>
    %264 = math.tanh %258 : vector<8x128xf32>
    %265 = vector.extract_strided_slice %263 {offsets = [0, 0], sizes = [8, 32], strides = [1, 1]} : vector<8x128xf32> to vector<8x32xf32>
    %266 = vector.extract_strided_slice %263 {offsets = [0, 32], sizes = [8, 32], strides = [1, 1]} : vector<8x128xf32> to vector<8x32xf32>
    %267 = vector.extract_strided_slice %263 {offsets = [0, 96], sizes = [8, 32], strides = [1, 1]} : vector<8x128xf32> to vector<8x32xf32>
    %268 = vector.extract_strided_slice %264 {offsets = [0, 64], sizes = [8, 32], strides = [1, 1]} : vector<8x128xf32> to vector<8x32xf32>
    %269 = arith.mulf %266, %250 : vector<8x32xf32>
    %270 = arith.mulf %265, %268 : vector<8x32xf32>
    %271 = arith.addf %269, %270 : vector<8x32xf32>
    %272 = math.tanh %271 : vector<8x32xf32>
    %273 = arith.mulf %267, %272 : vector<8x32xf32>
    %c7_i32 = arith.constant 7 : i32
    %274 = vector.broadcast %c7_i32 : i32 to vector<8x1xi32>
    %275 = arith.cmpi sgt, %35, %274 : vector<8x1xi32>
    %276 = vector.shape_cast %275 : vector<8x1xi1> to vector<8x1xi1>
    %277 = vector.broadcast %276 : vector<8x1xi1> to vector<8x32xi1>
    %278 = arith.select %277, %273, %247 : vector<8x32xi1>, vector<8x32xf32>
    %279 = vector.shape_cast %275 : vector<8x1xi1> to vector<8x1xi1>
    %280 = vector.broadcast %279 : vector<8x1xi1> to vector<8x32xi1>
    %281 = arith.select %280, %271, %250 : vector<8x32xi1>, vector<8x32xf32>
    %cst_76 = arith.constant 0.000000e+00 : f32
    %282 = vector.shape_cast %275 : vector<8x1xi1> to vector<8x1xi1>
    %283 = vector.broadcast %282 : vector<8x1xi1> to vector<8x32xi1>
    %284 = vector.broadcast %cst_76 : f32 to vector<8x32xf32>
    %285 = arith.select %283, %273, %284 : vector<8x32xi1>, vector<8x32xf32>
    %c56_77 = arith.constant 56 : index
    %c0_78 = arith.constant 0 : index
    %286 = vector.load %arg12[%c56_77, %c0_78] : memref<128x32xf32, #tpu.memory_space<vmem>>, vector<8x32xf32>
    tpu.vector_store %arg12[%c56_77, %c0_78], %285 {strides = array<i32>} : memref<128x32xf32, #tpu.memory_space<vmem>>, vector<8x32xf32>,
    %c64 = arith.constant 64 : index
    %c0_79 = arith.constant 0 : index
    %287 = vector.load %arg11[%c64, %c0_79] : memref<128x128xf32, #tpu.memory_space<vmem>>, vector<8x128xf32>
    %cst_80 = arith.constant dense<0.000000e+00> : vector<8x128xf32>
    %288 = tpu.matmul %278, %36, %cst_80 {dimension_numbers = #tpu.dot_dimension_numbers<[1], [0], [0], [1], [0, 0, 1, 1], [], []>} : vector<8x32xf32>, vector<32x128xf32>, vector<8x128xf32> -> vector<8x128xf32>
    %289 = arith.addf %287, %288 : vector<8x128xf32>
    %290 = arith.negf %289 : vector<8x128xf32>
    %291 = math.exp %290 : vector<8x128xf32>
    %cst_81 = arith.constant 1.000000e+00 : f32
    %292 = vector.broadcast %cst_81 : f32 to vector<8x128xf32>
    %293 = arith.addf %292, %291 : vector<8x128xf32>
    %294 = arith.divf %292, %293 : vector<8x128xf32>
    %295 = math.tanh %289 : vector<8x128xf32>
    %296 = vector.extract_strided_slice %294 {offsets = [0, 0], sizes = [8, 32], strides = [1, 1]} : vector<8x128xf32> to vector<8x32xf32>
    %297 = vector.extract_strided_slice %294 {offsets = [0, 32], sizes = [8, 32], strides = [1, 1]} : vector<8x128xf32> to vector<8x32xf32>
    %298 = vector.extract_strided_slice %294 {offsets = [0, 96], sizes = [8, 32], strides = [1, 1]} : vector<8x128xf32> to vector<8x32xf32>
    %299 = vector.extract_strided_slice %295 {offsets = [0, 64], sizes = [8, 32], strides = [1, 1]} : vector<8x128xf32> to vector<8x32xf32>
    %300 = arith.mulf %297, %281 : vector<8x32xf32>
    %301 = arith.mulf %296, %299 : vector<8x32xf32>
    %302 = arith.addf %300, %301 : vector<8x32xf32>
    %303 = math.tanh %302 : vector<8x32xf32>
    %304 = arith.mulf %298, %303 : vector<8x32xf32>
    %c8_i32 = arith.constant 8 : i32
    %305 = vector.broadcast %c8_i32 : i32 to vector<8x1xi32>
    %306 = arith.cmpi sgt, %35, %305 : vector<8x1xi32>
    %307 = vector.shape_cast %306 : vector<8x1xi1> to vector<8x1xi1>
    %308 = vector.broadcast %307 : vector<8x1xi1> to vector<8x32xi1>
    %309 = arith.select %308, %304, %278 : vector<8x32xi1>, vector<8x32xf32>
    %310 = vector.shape_cast %306 : vector<8x1xi1> to vector<8x1xi1>
    %311 = vector.broadcast %310 : vector<8x1xi1> to vector<8x32xi1>
    %312 = arith.select %311, %302, %281 : vector<8x32xi1>, vector<8x32xf32>
    %cst_82 = arith.constant 0.000000e+00 : f32
    %313 = vector.shape_cast %306 : vector<8x1xi1> to vector<8x1xi1>
    %314 = vector.broadcast %313 : vector<8x1xi1> to vector<8x32xi1>
    %315 = vector.broadcast %cst_82 : f32 to vector<8x32xf32>
    %316 = arith.select %314, %304, %315 : vector<8x32xi1>, vector<8x32xf32>
    %c64_83 = arith.constant 64 : index
    %c0_84 = arith.constant 0 : index
    %317 = vector.load %arg12[%c64_83, %c0_84] : memref<128x32xf32, #tpu.memory_space<vmem>>, vector<8x32xf32>
    tpu.vector_store %arg12[%c64_83, %c0_84], %316 {strides = array<i32>} : memref<128x32xf32, #tpu.memory_space<vmem>>, vector<8x32xf32>,
    %c72 = arith.constant 72 : index
    %c0_85 = arith.constant 0 : index
    %318 = vector.load %arg11[%c72, %c0_85] : memref<128x128xf32, #tpu.memory_space<vmem>>, vector<8x128xf32>
    %cst_86 = arith.constant dense<0.000000e+00> : vector<8x128xf32>
    %319 = tpu.matmul %309, %36, %cst_86 {dimension_numbers = #tpu.dot_dimension_numbers<[1], [0], [0], [1], [0, 0, 1, 1], [], []>} : vector<8x32xf32>, vector<32x128xf32>, vector<8x128xf32> -> vector<8x128xf32>
    %320 = arith.addf %318, %319 : vector<8x128xf32>
    %321 = arith.negf %320 : vector<8x128xf32>
    %322 = math.exp %321 : vector<8x128xf32>
    %cst_87 = arith.constant 1.000000e+00 : f32
    %323 = vector.broadcast %cst_87 : f32 to vector<8x128xf32>
    %324 = arith.addf %323, %322 : vector<8x128xf32>
    %325 = arith.divf %323, %324 : vector<8x128xf32>
    %326 = math.tanh %320 : vector<8x128xf32>
    %327 = vector.extract_strided_slice %325 {offsets = [0, 0], sizes = [8, 32], strides = [1, 1]} : vector<8x128xf32> to vector<8x32xf32>
    %328 = vector.extract_strided_slice %325 {offsets = [0, 32], sizes = [8, 32], strides = [1, 1]} : vector<8x128xf32> to vector<8x32xf32>
    %329 = vector.extract_strided_slice %325 {offsets = [0, 96], sizes = [8, 32], strides = [1, 1]} : vector<8x128xf32> to vector<8x32xf32>
    %330 = vector.extract_strided_slice %326 {offsets = [0, 64], sizes = [8, 32], strides = [1, 1]} : vector<8x128xf32> to vector<8x32xf32>
    %331 = arith.mulf %328, %312 : vector<8x32xf32>
    %332 = arith.mulf %327, %330 : vector<8x32xf32>
    %333 = arith.addf %331, %332 : vector<8x32xf32>
    %334 = math.tanh %333 : vector<8x32xf32>
    %335 = arith.mulf %329, %334 : vector<8x32xf32>
    %c9_i32 = arith.constant 9 : i32
    %336 = vector.broadcast %c9_i32 : i32 to vector<8x1xi32>
    %337 = arith.cmpi sgt, %35, %336 : vector<8x1xi32>
    %338 = vector.shape_cast %337 : vector<8x1xi1> to vector<8x1xi1>
    %339 = vector.broadcast %338 : vector<8x1xi1> to vector<8x32xi1>
    %340 = arith.select %339, %335, %309 : vector<8x32xi1>, vector<8x32xf32>
    %341 = vector.shape_cast %337 : vector<8x1xi1> to vector<8x1xi1>
    %342 = vector.broadcast %341 : vector<8x1xi1> to vector<8x32xi1>
    %343 = arith.select %342, %333, %312 : vector<8x32xi1>, vector<8x32xf32>
    %cst_88 = arith.constant 0.000000e+00 : f32
    %344 = vector.shape_cast %337 : vector<8x1xi1> to vector<8x1xi1>
    %345 = vector.broadcast %344 : vector<8x1xi1> to vector<8x32xi1>
    %346 = vector.broadcast %cst_88 : f32 to vector<8x32xf32>
    %347 = arith.select %345, %335, %346 : vector<8x32xi1>, vector<8x32xf32>
    %c72_89 = arith.constant 72 : index
    %c0_90 = arith.constant 0 : index
    %348 = vector.load %arg12[%c72_89, %c0_90] : memref<128x32xf32, #tpu.memory_space<vmem>>, vector<8x32xf32>
    tpu.vector_store %arg12[%c72_89, %c0_90], %347 {strides = array<i32>} : memref<128x32xf32, #tpu.memory_space<vmem>>, vector<8x32xf32>,
    %c80 = arith.constant 80 : index
    %c0_91 = arith.constant 0 : index
    %349 = vector.load %arg11[%c80, %c0_91] : memref<128x128xf32, #tpu.memory_space<vmem>>, vector<8x128xf32>
    %cst_92 = arith.constant dense<0.000000e+00> : vector<8x128xf32>
    %350 = tpu.matmul %340, %36, %cst_92 {dimension_numbers = #tpu.dot_dimension_numbers<[1], [0], [0], [1], [0, 0, 1, 1], [], []>} : vector<8x32xf32>, vector<32x128xf32>, vector<8x128xf32> -> vector<8x128xf32>
    %351 = arith.addf %349, %350 : vector<8x128xf32>
    %352 = arith.negf %351 : vector<8x128xf32>
    %353 = math.exp %352 : vector<8x128xf32>
    %cst_93 = arith.constant 1.000000e+00 : f32
    %354 = vector.broadcast %cst_93 : f32 to vector<8x128xf32>
    %355 = arith.addf %354, %353 : vector<8x128xf32>
    %356 = arith.divf %354, %355 : vector<8x128xf32>
    %357 = math.tanh %351 : vector<8x128xf32>
    %358 = vector.extract_strided_slice %356 {offsets = [0, 0], sizes = [8, 32], strides = [1, 1]} : vector<8x128xf32> to vector<8x32xf32>
    %359 = vector.extract_strided_slice %356 {offsets = [0, 32], sizes = [8, 32], strides = [1, 1]} : vector<8x128xf32> to vector<8x32xf32>
    %360 = vector.extract_strided_slice %356 {offsets = [0, 96], sizes = [8, 32], strides = [1, 1]} : vector<8x128xf32> to vector<8x32xf32>
    %361 = vector.extract_strided_slice %357 {offsets = [0, 64], sizes = [8, 32], strides = [1, 1]} : vector<8x128xf32> to vector<8x32xf32>
    %362 = arith.mulf %359, %343 : vector<8x32xf32>
    %363 = arith.mulf %358, %361 : vector<8x32xf32>
    %364 = arith.addf %362, %363 : vector<8x32xf32>
    %365 = math.tanh %364 : vector<8x32xf32>
    %366 = arith.mulf %360, %365 : vector<8x32xf32>
    %c10_i32 = arith.constant 10 : i32
    %367 = vector.broadcast %c10_i32 : i32 to vector<8x1xi32>
    %368 = arith.cmpi sgt, %35, %367 : vector<8x1xi32>
    %369 = vector.shape_cast %368 : vector<8x1xi1> to vector<8x1xi1>
    %370 = vector.broadcast %369 : vector<8x1xi1> to vector<8x32xi1>
    %371 = arith.select %370, %366, %340 : vector<8x32xi1>, vector<8x32xf32>
    %372 = vector.shape_cast %368 : vector<8x1xi1> to vector<8x1xi1>
    %373 = vector.broadcast %372 : vector<8x1xi1> to vector<8x32xi1>
    %374 = arith.select %373, %364, %343 : vector<8x32xi1>, vector<8x32xf32>
    %cst_94 = arith.constant 0.000000e+00 : f32
    %375 = vector.shape_cast %368 : vector<8x1xi1> to vector<8x1xi1>
    %376 = vector.broadcast %375 : vector<8x1xi1> to vector<8x32xi1>
    %377 = vector.broadcast %cst_94 : f32 to vector<8x32xf32>
    %378 = arith.select %376, %366, %377 : vector<8x32xi1>, vector<8x32xf32>
    %c80_95 = arith.constant 80 : index
    %c0_96 = arith.constant 0 : index
    %379 = vector.load %arg12[%c80_95, %c0_96] : memref<128x32xf32, #tpu.memory_space<vmem>>, vector<8x32xf32>
    tpu.vector_store %arg12[%c80_95, %c0_96], %378 {strides = array<i32>} : memref<128x32xf32, #tpu.memory_space<vmem>>, vector<8x32xf32>,
    %c88 = arith.constant 88 : index
    %c0_97 = arith.constant 0 : index
    %380 = vector.load %arg11[%c88, %c0_97] : memref<128x128xf32, #tpu.memory_space<vmem>>, vector<8x128xf32>
    %cst_98 = arith.constant dense<0.000000e+00> : vector<8x128xf32>
    %381 = tpu.matmul %371, %36, %cst_98 {dimension_numbers = #tpu.dot_dimension_numbers<[1], [0], [0], [1], [0, 0, 1, 1], [], []>} : vector<8x32xf32>, vector<32x128xf32>, vector<8x128xf32> -> vector<8x128xf32>
    %382 = arith.addf %380, %381 : vector<8x128xf32>
    %383 = arith.negf %382 : vector<8x128xf32>
    %384 = math.exp %383 : vector<8x128xf32>
    %cst_99 = arith.constant 1.000000e+00 : f32
    %385 = vector.broadcast %cst_99 : f32 to vector<8x128xf32>
    %386 = arith.addf %385, %384 : vector<8x128xf32>
    %387 = arith.divf %385, %386 : vector<8x128xf32>
    %388 = math.tanh %382 : vector<8x128xf32>
    %389 = vector.extract_strided_slice %387 {offsets = [0, 0], sizes = [8, 32], strides = [1, 1]} : vector<8x128xf32> to vector<8x32xf32>
    %390 = vector.extract_strided_slice %387 {offsets = [0, 32], sizes = [8, 32], strides = [1, 1]} : vector<8x128xf32> to vector<8x32xf32>
    %391 = vector.extract_strided_slice %387 {offsets = [0, 96], sizes = [8, 32], strides = [1, 1]} : vector<8x128xf32> to vector<8x32xf32>
    %392 = vector.extract_strided_slice %388 {offsets = [0, 64], sizes = [8, 32], strides = [1, 1]} : vector<8x128xf32> to vector<8x32xf32>
    %393 = arith.mulf %390, %374 : vector<8x32xf32>
    %394 = arith.mulf %389, %392 : vector<8x32xf32>
    %395 = arith.addf %393, %394 : vector<8x32xf32>
    %396 = math.tanh %395 : vector<8x32xf32>
    %397 = arith.mulf %391, %396 : vector<8x32xf32>
    %c11_i32 = arith.constant 11 : i32
    %398 = vector.broadcast %c11_i32 : i32 to vector<8x1xi32>
    %399 = arith.cmpi sgt, %35, %398 : vector<8x1xi32>
    %400 = vector.shape_cast %399 : vector<8x1xi1> to vector<8x1xi1>
    %401 = vector.broadcast %400 : vector<8x1xi1> to vector<8x32xi1>
    %402 = arith.select %401, %397, %371 : vector<8x32xi1>, vector<8x32xf32>
    %403 = vector.shape_cast %399 : vector<8x1xi1> to vector<8x1xi1>
    %404 = vector.broadcast %403 : vector<8x1xi1> to vector<8x32xi1>
    %405 = arith.select %404, %395, %374 : vector<8x32xi1>, vector<8x32xf32>
    %cst_100 = arith.constant 0.000000e+00 : f32
    %406 = vector.shape_cast %399 : vector<8x1xi1> to vector<8x1xi1>
    %407 = vector.broadcast %406 : vector<8x1xi1> to vector<8x32xi1>
    %408 = vector.broadcast %cst_100 : f32 to vector<8x32xf32>
    %409 = arith.select %407, %397, %408 : vector<8x32xi1>, vector<8x32xf32>
    %c88_101 = arith.constant 88 : index
    %c0_102 = arith.constant 0 : index
    %410 = vector.load %arg12[%c88_101, %c0_102] : memref<128x32xf32, #tpu.memory_space<vmem>>, vector<8x32xf32>
    tpu.vector_store %arg12[%c88_101, %c0_102], %409 {strides = array<i32>} : memref<128x32xf32, #tpu.memory_space<vmem>>, vector<8x32xf32>,
    %c96 = arith.constant 96 : index
    %c0_103 = arith.constant 0 : index
    %411 = vector.load %arg11[%c96, %c0_103] : memref<128x128xf32, #tpu.memory_space<vmem>>, vector<8x128xf32>
    %cst_104 = arith.constant dense<0.000000e+00> : vector<8x128xf32>
    %412 = tpu.matmul %402, %36, %cst_104 {dimension_numbers = #tpu.dot_dimension_numbers<[1], [0], [0], [1], [0, 0, 1, 1], [], []>} : vector<8x32xf32>, vector<32x128xf32>, vector<8x128xf32> -> vector<8x128xf32>
    %413 = arith.addf %411, %412 : vector<8x128xf32>
    %414 = arith.negf %413 : vector<8x128xf32>
    %415 = math.exp %414 : vector<8x128xf32>
    %cst_105 = arith.constant 1.000000e+00 : f32
    %416 = vector.broadcast %cst_105 : f32 to vector<8x128xf32>
    %417 = arith.addf %416, %415 : vector<8x128xf32>
    %418 = arith.divf %416, %417 : vector<8x128xf32>
    %419 = math.tanh %413 : vector<8x128xf32>
    %420 = vector.extract_strided_slice %418 {offsets = [0, 0], sizes = [8, 32], strides = [1, 1]} : vector<8x128xf32> to vector<8x32xf32>
    %421 = vector.extract_strided_slice %418 {offsets = [0, 32], sizes = [8, 32], strides = [1, 1]} : vector<8x128xf32> to vector<8x32xf32>
    %422 = vector.extract_strided_slice %418 {offsets = [0, 96], sizes = [8, 32], strides = [1, 1]} : vector<8x128xf32> to vector<8x32xf32>
    %423 = vector.extract_strided_slice %419 {offsets = [0, 64], sizes = [8, 32], strides = [1, 1]} : vector<8x128xf32> to vector<8x32xf32>
    %424 = arith.mulf %421, %405 : vector<8x32xf32>
    %425 = arith.mulf %420, %423 : vector<8x32xf32>
    %426 = arith.addf %424, %425 : vector<8x32xf32>
    %427 = math.tanh %426 : vector<8x32xf32>
    %428 = arith.mulf %422, %427 : vector<8x32xf32>
    %c12_i32 = arith.constant 12 : i32
    %429 = vector.broadcast %c12_i32 : i32 to vector<8x1xi32>
    %430 = arith.cmpi sgt, %35, %429 : vector<8x1xi32>
    %431 = vector.shape_cast %430 : vector<8x1xi1> to vector<8x1xi1>
    %432 = vector.broadcast %431 : vector<8x1xi1> to vector<8x32xi1>
    %433 = arith.select %432, %428, %402 : vector<8x32xi1>, vector<8x32xf32>
    %434 = vector.shape_cast %430 : vector<8x1xi1> to vector<8x1xi1>
    %435 = vector.broadcast %434 : vector<8x1xi1> to vector<8x32xi1>
    %436 = arith.select %435, %426, %405 : vector<8x32xi1>, vector<8x32xf32>
    %cst_106 = arith.constant 0.000000e+00 : f32
    %437 = vector.shape_cast %430 : vector<8x1xi1> to vector<8x1xi1>
    %438 = vector.broadcast %437 : vector<8x1xi1> to vector<8x32xi1>
    %439 = vector.broadcast %cst_106 : f32 to vector<8x32xf32>
    %440 = arith.select %438, %428, %439 : vector<8x32xi1>, vector<8x32xf32>
    %c96_107 = arith.constant 96 : index
    %c0_108 = arith.constant 0 : index
    %441 = vector.load %arg12[%c96_107, %c0_108] : memref<128x32xf32, #tpu.memory_space<vmem>>, vector<8x32xf32>
    tpu.vector_store %arg12[%c96_107, %c0_108], %440 {strides = array<i32>} : memref<128x32xf32, #tpu.memory_space<vmem>>, vector<8x32xf32>,
    %c104 = arith.constant 104 : index
    %c0_109 = arith.constant 0 : index
    %442 = vector.load %arg11[%c104, %c0_109] : memref<128x128xf32, #tpu.memory_space<vmem>>, vector<8x128xf32>
    %cst_110 = arith.constant dense<0.000000e+00> : vector<8x128xf32>
    %443 = tpu.matmul %433, %36, %cst_110 {dimension_numbers = #tpu.dot_dimension_numbers<[1], [0], [0], [1], [0, 0, 1, 1], [], []>} : vector<8x32xf32>, vector<32x128xf32>, vector<8x128xf32> -> vector<8x128xf32>
    %444 = arith.addf %442, %443 : vector<8x128xf32>
    %445 = arith.negf %444 : vector<8x128xf32>
    %446 = math.exp %445 : vector<8x128xf32>
    %cst_111 = arith.constant 1.000000e+00 : f32
    %447 = vector.broadcast %cst_111 : f32 to vector<8x128xf32>
    %448 = arith.addf %447, %446 : vector<8x128xf32>
    %449 = arith.divf %447, %448 : vector<8x128xf32>
    %450 = math.tanh %444 : vector<8x128xf32>
    %451 = vector.extract_strided_slice %449 {offsets = [0, 0], sizes = [8, 32], strides = [1, 1]} : vector<8x128xf32> to vector<8x32xf32>
    %452 = vector.extract_strided_slice %449 {offsets = [0, 32], sizes = [8, 32], strides = [1, 1]} : vector<8x128xf32> to vector<8x32xf32>
    %453 = vector.extract_strided_slice %449 {offsets = [0, 96], sizes = [8, 32], strides = [1, 1]} : vector<8x128xf32> to vector<8x32xf32>
    %454 = vector.extract_strided_slice %450 {offsets = [0, 64], sizes = [8, 32], strides = [1, 1]} : vector<8x128xf32> to vector<8x32xf32>
    %455 = arith.mulf %452, %436 : vector<8x32xf32>
    %456 = arith.mulf %451, %454 : vector<8x32xf32>
    %457 = arith.addf %455, %456 : vector<8x32xf32>
    %458 = math.tanh %457 : vector<8x32xf32>
    %459 = arith.mulf %453, %458 : vector<8x32xf32>
    %c13_i32 = arith.constant 13 : i32
    %460 = vector.broadcast %c13_i32 : i32 to vector<8x1xi32>
    %461 = arith.cmpi sgt, %35, %460 : vector<8x1xi32>
    %462 = vector.shape_cast %461 : vector<8x1xi1> to vector<8x1xi1>
    %463 = vector.broadcast %462 : vector<8x1xi1> to vector<8x32xi1>
    %464 = arith.select %463, %459, %433 : vector<8x32xi1>, vector<8x32xf32>
    %465 = vector.shape_cast %461 : vector<8x1xi1> to vector<8x1xi1>
    %466 = vector.broadcast %465 : vector<8x1xi1> to vector<8x32xi1>
    %467 = arith.select %466, %457, %436 : vector<8x32xi1>, vector<8x32xf32>
    %cst_112 = arith.constant 0.000000e+00 : f32
    %468 = vector.shape_cast %461 : vector<8x1xi1> to vector<8x1xi1>
    %469 = vector.broadcast %468 : vector<8x1xi1> to vector<8x32xi1>
    %470 = vector.broadcast %cst_112 : f32 to vector<8x32xf32>
    %471 = arith.select %469, %459, %470 : vector<8x32xi1>, vector<8x32xf32>
    %c104_113 = arith.constant 104 : index
    %c0_114 = arith.constant 0 : index
    %472 = vector.load %arg12[%c104_113, %c0_114] : memref<128x32xf32, #tpu.memory_space<vmem>>, vector<8x32xf32>
    tpu.vector_store %arg12[%c104_113, %c0_114], %471 {strides = array<i32>} : memref<128x32xf32, #tpu.memory_space<vmem>>, vector<8x32xf32>,
    %c112 = arith.constant 112 : index
    %c0_115 = arith.constant 0 : index
    %473 = vector.load %arg11[%c112, %c0_115] : memref<128x128xf32, #tpu.memory_space<vmem>>, vector<8x128xf32>
    %cst_116 = arith.constant dense<0.000000e+00> : vector<8x128xf32>
    %474 = tpu.matmul %464, %36, %cst_116 {dimension_numbers = #tpu.dot_dimension_numbers<[1], [0], [0], [1], [0, 0, 1, 1], [], []>} : vector<8x32xf32>, vector<32x128xf32>, vector<8x128xf32> -> vector<8x128xf32>
    %475 = arith.addf %473, %474 : vector<8x128xf32>
    %476 = arith.negf %475 : vector<8x128xf32>
    %477 = math.exp %476 : vector<8x128xf32>
    %cst_117 = arith.constant 1.000000e+00 : f32
    %478 = vector.broadcast %cst_117 : f32 to vector<8x128xf32>
    %479 = arith.addf %478, %477 : vector<8x128xf32>
    %480 = arith.divf %478, %479 : vector<8x128xf32>
    %481 = math.tanh %475 : vector<8x128xf32>
    %482 = vector.extract_strided_slice %480 {offsets = [0, 0], sizes = [8, 32], strides = [1, 1]} : vector<8x128xf32> to vector<8x32xf32>
    %483 = vector.extract_strided_slice %480 {offsets = [0, 32], sizes = [8, 32], strides = [1, 1]} : vector<8x128xf32> to vector<8x32xf32>
    %484 = vector.extract_strided_slice %480 {offsets = [0, 96], sizes = [8, 32], strides = [1, 1]} : vector<8x128xf32> to vector<8x32xf32>
    %485 = vector.extract_strided_slice %481 {offsets = [0, 64], sizes = [8, 32], strides = [1, 1]} : vector<8x128xf32> to vector<8x32xf32>
    %486 = arith.mulf %483, %467 : vector<8x32xf32>
    %487 = arith.mulf %482, %485 : vector<8x32xf32>
    %488 = arith.addf %486, %487 : vector<8x32xf32>
    %489 = math.tanh %488 : vector<8x32xf32>
    %490 = arith.mulf %484, %489 : vector<8x32xf32>
    %c14_i32 = arith.constant 14 : i32
    %491 = vector.broadcast %c14_i32 : i32 to vector<8x1xi32>
    %492 = arith.cmpi sgt, %35, %491 : vector<8x1xi32>
    %493 = vector.shape_cast %492 : vector<8x1xi1> to vector<8x1xi1>
    %494 = vector.broadcast %493 : vector<8x1xi1> to vector<8x32xi1>
    %495 = arith.select %494, %490, %464 : vector<8x32xi1>, vector<8x32xf32>
    %496 = vector.shape_cast %492 : vector<8x1xi1> to vector<8x1xi1>
    %497 = vector.broadcast %496 : vector<8x1xi1> to vector<8x32xi1>
    %498 = arith.select %497, %488, %467 : vector<8x32xi1>, vector<8x32xf32>
    %cst_118 = arith.constant 0.000000e+00 : f32
    %499 = vector.shape_cast %492 : vector<8x1xi1> to vector<8x1xi1>
    %500 = vector.broadcast %499 : vector<8x1xi1> to vector<8x32xi1>
    %501 = vector.broadcast %cst_118 : f32 to vector<8x32xf32>
    %502 = arith.select %500, %490, %501 : vector<8x32xi1>, vector<8x32xf32>
    %c112_119 = arith.constant 112 : index
    %c0_120 = arith.constant 0 : index
    %503 = vector.load %arg12[%c112_119, %c0_120] : memref<128x32xf32, #tpu.memory_space<vmem>>, vector<8x32xf32>
    tpu.vector_store %arg12[%c112_119, %c0_120], %502 {strides = array<i32>} : memref<128x32xf32, #tpu.memory_space<vmem>>, vector<8x32xf32>,
    %c120 = arith.constant 120 : index
    %c0_121 = arith.constant 0 : index
    %504 = vector.load %arg11[%c120, %c0_121] : memref<128x128xf32, #tpu.memory_space<vmem>>, vector<8x128xf32>
    %cst_122 = arith.constant dense<0.000000e+00> : vector<8x128xf32>
    %505 = tpu.matmul %495, %36, %cst_122 {dimension_numbers = #tpu.dot_dimension_numbers<[1], [0], [0], [1], [0, 0, 1, 1], [], []>} : vector<8x32xf32>, vector<32x128xf32>, vector<8x128xf32> -> vector<8x128xf32>
    %506 = arith.addf %504, %505 : vector<8x128xf32>
    %507 = arith.negf %506 : vector<8x128xf32>
    %508 = math.exp %507 : vector<8x128xf32>
    %cst_123 = arith.constant 1.000000e+00 : f32
    %509 = vector.broadcast %cst_123 : f32 to vector<8x128xf32>
    %510 = arith.addf %509, %508 : vector<8x128xf32>
    %511 = arith.divf %509, %510 : vector<8x128xf32>
    %512 = math.tanh %506 : vector<8x128xf32>
    %513 = vector.extract_strided_slice %511 {offsets = [0, 0], sizes = [8, 32], strides = [1, 1]} : vector<8x128xf32> to vector<8x32xf32>
    %514 = vector.extract_strided_slice %511 {offsets = [0, 32], sizes = [8, 32], strides = [1, 1]} : vector<8x128xf32> to vector<8x32xf32>
    %515 = vector.extract_strided_slice %511 {offsets = [0, 96], sizes = [8, 32], strides = [1, 1]} : vector<8x128xf32> to vector<8x32xf32>
    %516 = vector.extract_strided_slice %512 {offsets = [0, 64], sizes = [8, 32], strides = [1, 1]} : vector<8x128xf32> to vector<8x32xf32>
    %517 = arith.mulf %514, %498 : vector<8x32xf32>
    %518 = arith.mulf %513, %516 : vector<8x32xf32>
    %519 = arith.addf %517, %518 : vector<8x32xf32>
    %520 = math.tanh %519 : vector<8x32xf32>
    %521 = arith.mulf %515, %520 : vector<8x32xf32>
    %c15_i32 = arith.constant 15 : i32
    %522 = vector.broadcast %c15_i32 : i32 to vector<8x1xi32>
    %523 = arith.cmpi sgt, %35, %522 : vector<8x1xi32>
    %cst_124 = arith.constant 0.000000e+00 : f32
    %524 = vector.shape_cast %523 : vector<8x1xi1> to vector<8x1xi1>
    %525 = vector.broadcast %524 : vector<8x1xi1> to vector<8x32xi1>
    %526 = vector.broadcast %cst_124 : f32 to vector<8x32xf32>
    %527 = arith.select %525, %521, %526 : vector<8x32xi1>, vector<8x32xf32>
    %c120_125 = arith.constant 120 : index
    %c0_126 = arith.constant 0 : index
    %528 = vector.load %arg12[%c120_125, %c0_126] : memref<128x32xf32, #tpu.memory_space<vmem>>, vector<8x32xf32>
    tpu.vector_store %arg12[%c120_125, %c0_126], %527 {strides = array<i32>} : memref<128x32xf32, #tpu.memory_space<vmem>>, vector<8x32xf32>,
    %c0_127 = arith.constant 0 : index
    %c0_128 = arith.constant 0 : index
    %529 = vector.load %arg12[%c0_127, %c0_128] : memref<128x32xf32, #tpu.memory_space<vmem>>, vector<128x32xf32>
    %c0_129 = arith.constant 0 : index
    %c0_130 = arith.constant 0 : index
    %530 = vector.load %arg6[%c0_129, %c0_130] : memref<32x16xf32, #tpu.memory_space<vmem>>, vector<32x16xf32>
    %cst_131 = arith.constant dense<0.000000e+00> : vector<128x16xf32>
    %531 = tpu.matmul %529, %530, %cst_131 {dimension_numbers = #tpu.dot_dimension_numbers<[1], [0], [0], [1], [0, 0, 1, 1], [], []>} : vector<128x32xf32>, vector<32x16xf32>, vector<128x16xf32> -> vector<128x16xf32>
    %c0_132 = arith.constant 0 : index
    %c0_133 = arith.constant 0 : index
    %532 = vector.load %arg7[%c0_132, %c0_133] : memref<1x16xf32, #tpu.memory_space<vmem>>, vector<1x16xf32>
    %533 = vector.broadcast %532 : vector<1x16xf32> to vector<128x16xf32>
    %534 = arith.addf %531, %533 : vector<128x16xf32>
    %cst_134 = arith.constant 0.000000e+00 : f32
    %535 = vector.broadcast %cst_134 : f32 to vector<128x16xf32>
    %536 = arith.maximumf %534, %535 : vector<128x16xf32>
    %c0_135 = arith.constant 0 : index
    %c0_136 = arith.constant 0 : index
    %537 = vector.load %arg8[%c0_135, %c0_136] : memref<16x128xf32, #tpu.memory_space<vmem>>, vector<16x128xf32>
    %cst_137 = arith.constant dense<0.000000e+00> : vector<128x128xf32>
    %538 = tpu.matmul %536, %537, %cst_137 {dimension_numbers = #tpu.dot_dimension_numbers<[1], [0], [0], [1], [0, 0, 1, 1], [], []>} : vector<128x16xf32>, vector<16x128xf32>, vector<128x128xf32> -> vector<128x128xf32>
    %c0_138 = arith.constant 0 : index
    %c0_139 = arith.constant 0 : index
    %539 = vector.load %arg9[%c0_138, %c0_139] : memref<1x128xf32, #tpu.memory_space<vmem>>, vector<1x128xf32>
    %540 = vector.broadcast %539 : vector<1x128xf32> to vector<128x128xf32>
    %541 = arith.addf %538, %540 : vector<128x128xf32>
    %cst_140 = arith.constant dense<0xFF800000> : vector<128xf32>
    %542 = vector.multi_reduction <maximumf>, %541, %cst_140 [1] : vector<128x128xf32> to vector<128xf32>
    %543 = vector.shape_cast %542 : vector<128xf32> to vector<128x1xf32>
    %544 = vector.broadcast %543 : vector<128x1xf32> to vector<128x128xf32>
    %545 = arith.subf %541, %544 : vector<128x128xf32>
    %546 = math.exp %545 : vector<128x128xf32>
    %cst_141 = arith.constant dense<0.000000e+00> : vector<128xf32>
    %547 = vector.multi_reduction <add>, %546, %cst_141 [1] : vector<128x128xf32> to vector<128xf32>
    %548 = vector.shape_cast %547 : vector<128xf32> to vector<128x1xf32>
    %549 = vector.broadcast %548 : vector<128x1xf32> to vector<128x128xf32>
    %550 = arith.divf %546, %549 : vector<128x128xf32>
    %c0_142 = arith.constant 0 : index
    %c0_143 = arith.constant 0 : index
    %c0_144 = arith.constant 0 : index
    %551 = vector.load %arg10[%c0_142, %c0_143, %c0_144] : memref<1x128x128xf32, #tpu.memory_space<vmem>>, vector<1x128x128xf32>
    %552 = vector.shape_cast %551 : vector<1x128x128xf32> to vector<128x128xf32>
    %553 = vector.shape_cast %550 : vector<128x128xf32> to vector<1x128x128xf32>
    tpu.vector_store %arg10[%c0_142, %c0_143, %c0_144], %553 {strides = array<i32>} : memref<1x128x128xf32, #tpu.memory_space<vmem>>, vector<1x128x128xf32>,
    return
  }
  func.func @transform_0(%arg0: i32) -> (i32, i32) {
    %c0_i32 = arith.constant 0 : i32
    %c0_i32_0 = arith.constant 0 : i32
    return %arg0, %c0_i32 : i32, i32
  }
  func.func @transform_1(%arg0: i32) -> (i32, i32, i32) {
    %c0_i32 = arith.constant 0 : i32
    %c0_i32_0 = arith.constant 0 : i32
    %c0_i32_1 = arith.constant 0 : i32
    return %arg0, %c0_i32, %c0_i32_0 : i32, i32, i32
  }
  func.func @transform_2(%arg0: i32) -> (i32, i32, i32) {
    %c0_i32 = arith.constant 0 : i32
    %c0_i32_0 = arith.constant 0 : i32
    %c0_i32_1 = arith.constant 0 : i32
    %c0_i32_2 = arith.constant 0 : i32
    return %c0_i32, %c0_i32_0, %c0_i32_1 : i32, i32, i32
  }
  func.func @transform_3(%arg0: i32) -> (i32, i32) {
    %c0_i32 = arith.constant 0 : i32
    %c0_i32_0 = arith.constant 0 : i32
    %c0_i32_1 = arith.constant 0 : i32
    return %c0_i32, %c0_i32_0 : i32, i32
  }
  func.func @transform_4(%arg0: i32) -> (i32, i32) {
    %c0_i32 = arith.constant 0 : i32
    %c0_i32_0 = arith.constant 0 : i32
    %c0_i32_1 = arith.constant 0 : i32
    return %c0_i32, %c0_i32_0 : i32, i32
  }
  func.func @transform_5(%arg0: i32) -> (i32, i32) {
    %c0_i32 = arith.constant 0 : i32
    %c0_i32_0 = arith.constant 0 : i32
    %c0_i32_1 = arith.constant 0 : i32
    return %c0_i32, %c0_i32_0 : i32, i32
  }
  func.func @transform_6(%arg0: i32) -> (i32, i32) {
    %c0_i32 = arith.constant 0 : i32
    %c0_i32_0 = arith.constant 0 : i32
    %c0_i32_1 = arith.constant 0 : i32
    return %c0_i32, %c0_i32_0 : i32, i32
  }
  func.func @transform_7(%arg0: i32) -> (i32, i32) {
    %c0_i32 = arith.constant 0 : i32
    %c0_i32_0 = arith.constant 0 : i32
    %c0_i32_1 = arith.constant 0 : i32
    return %c0_i32, %c0_i32_0 : i32, i32
  }
  func.func @transform_8(%arg0: i32) -> (i32, i32) {
    %c0_i32 = arith.constant 0 : i32
    %c0_i32_0 = arith.constant 0 : i32
    %c0_i32_1 = arith.constant 0 : i32
    return %c0_i32, %c0_i32_0 : i32, i32
  }
  func.func @transform_9(%arg0: i32) -> (i32, i32, i32) {
    %c0_i32 = arith.constant 0 : i32
    %c0_i32_0 = arith.constant 0 : i32
    %c0_i32_1 = arith.constant 0 : i32
    return %arg0, %c0_i32, %c0_i32_0 : i32, i32, i32
  }
}

</mosaic_0001>

<llo_original>
// kernel: tpu_custom_call.1
$region0: #{tpu_custom_call.1}
  #allocation0 [shape = 'u32[]', space=smem, size = 0x4, offset = 0x4, fixed_abs, tag = 'smem constant byte address 0x4 - core index']
  #allocation1 [shape = 'u32[144,128]{1,0:T(1,128)}', space=vmem, size = 0x12000, scoped, tag = 'internal scratch']
  #allocation2 [shape = 'f32[128,128]{1,0:T(8,128)}', space=vmem, size = 0x10000, scoped, tag = 'scratch operand']
  #allocation3 [shape = 'f32[128,32]{1,0:T(8,128)}', space=vmem, size = 0x10000, scoped, tag = 'scratch operand']
  %s0 = inlined_call_operand.vmem [shape: s32[16,1], index: 0, kind: input, shape index: {}]
  %s1 = inlined_call_operand.vmem [shape: f32[2,128,32], index: 1, kind: input, shape index: {}]
  %s2 = inlined_call_operand.vmem [shape: f32[5,32,128], index: 2, kind: input, shape index: {}]
  %s3 = inlined_call_operand.vmem [shape: f32[1,128], index: 3, kind: input, shape index: {}]
  %s4 = inlined_call_operand.vmem [shape: f32[32,128], index: 4, kind: input, shape index: {}]
  %s5 = inlined_call_operand.vmem [shape: f32[32,16], index: 5, kind: input, shape index: {}]
  %s6 = inlined_call_operand.vmem [shape: f32[1,16], index: 6, kind: input, shape index: {}]
  %s7 = inlined_call_operand.vmem [shape: f32[16,128], index: 7, kind: input, shape index: {}]
  %s8 = inlined_call_operand.vmem [shape: f32[1,128], index: 8, kind: input, shape index: {}]
  %s9 = inlined_call_operand.hbm [shape: f32[2,128,128], index: 9, kind: output, shape index: {}]
  %s10 = sld [smem:[#allocation0]]
  $region69: #{tpu_custom_call.1} parent=0
    _
  %s12 = ssub.s32 1, %s10
  %s13 = scalar_select 0, %s12, %s10
  $region1: #{tpu_custom_call.1} parent=0
    #allocation4 [shape = 'u8[131072]{0}', space=vmem, size = 0x20000, scoped, tag = 'output window, operand 0']
    #allocation5 [shape = 's32[2]{0}', space=sflag, size = 0x8, scoped, tag = 'scoped memory for tpu_custom_call.1']
    %14 = vsyncpa [#allocation5], 0
    %s15 = scalar_lea.sflag [#allocation5], 1
    %16 = vsyncpa %s15, 0
    loop: start=0, step=1, limit=4
    $region2: #{tpu_custom_call.1} parent=1 // loop_pre_header
      _
    $region3: #{tpu_custom_call.1} parent=1 // loop_header
      %s18 = sphi 0, %s22
      %p19 = scmp.ge.s32.totalorder %s18, 4
      %s28 = sphi 0, %s30
      %s31 = sphi 0, %s28
      %s32 = sphi 0, %s31
      %s48 = sphi 0, %s32
      %s54 = sphi 0, %s56
      %s57 = sphi 0, %s54
      %s58 = sphi 0, %s57
      %s74 = sphi 0, %s58
      %s78 = sphi 0, %s78
      %s80 = sphi 0, %s78
      %s81 = sphi 0, %s80
      %s95 = sphi 0, %s81
      %s99 = sphi 0, %s99
      %s101 = sphi 0, %s99
      %s102 = sphi 0, %s101
      %s116 = sphi 0, %s102
      %s120 = sphi 0, %s120
      %s122 = sphi 0, %s120
      %s123 = sphi 0, %s122
      %s137 = sphi 0, %s123
      %s141 = sphi 0, %s141
      %s143 = sphi 0, %s141
      %s144 = sphi 0, %s143
      %s158 = sphi 0, %s144
      %s162 = sphi 0, %s162
      %s164 = sphi 0, %s162
      %s165 = sphi 0, %s164
      %s179 = sphi 0, %s165
      %s183 = sphi 0, %s183
      %s185 = sphi 0, %s183
      %s186 = sphi 0, %s185
      %s200 = sphi 0, %s186
      %s204 = sphi 0, %s204
      %s206 = sphi 0, %s204
      %s207 = sphi 0, %s206
      %s221 = sphi 0, %s207
      %s227 = sphi 0, %s229
      %s230 = sphi 0, %s227
      %s231 = sphi 0, %s230
      %s247 = sphi 0, %s231
    $region4: #{tpu_custom_call.1} parent=1 // loop_header_branch
      %21 = sbr.rel (%p19) target = $region8
    $region5: #{tpu_custom_call.1} parent=1 // loop_body
      %s23 = ssub.s32 %s18, 1
      %s24 = ssub.s32 %s18, 2
      %s25 = sadd.s32 %s18, 1
      %s26 = ssub.s32 %s18, %s25
      %p27 = scmp.eq.s32.totalorder %s26, 0
      %s29 = sadd.s32 %s28, 1
      %s30 = scalar_select %p27, %s28, %s29
      %p33 = pneg %p27
      %p34 = scmp.eq.s32.totalorder %s18, 1
      %p35 = por %p33, %p34
      %p36 = scmp.ne.s32.totalorder %s28, %s31
      %p37 = scmp.eq.s32.totalorder %s18, 0
      %p38 = por %p36, %p37
      %p39 = scmp.ne.s32.totalorder %s28, %s31
      %p40 = scmp.eq.s32.totalorder %s23, 1
      %p41 = por %p39, %p40
      %p42 = scmp.ne.s32.totalorder %s31, %s32
      %p43 = scmp.eq.s32.totalorder %s23, 0
      %p44 = por %p42, %p43
      %p45 = scmp.ne.s32.totalorder %s31, %s32
      %p46 = scmp.eq.s32.totalorder %s24, 1
      %p47 = por %p45, %p46
      %p49 = scmp.ne.s32.totalorder %s32, %s48
      %p50 = scmp.eq.s32.totalorder %s24, 0
      %p51 = por %p49, %p50
      %s52 = ssub.s32 %s18, %s25
      %p53 = scmp.eq.s32.totalorder %s52, 0
      %s55 = sadd.s32 %s54, 1
      %s56 = scalar_select %p53, %s54, %s55
      %p59 = pneg %p53
      %p60 = scmp.eq.s32.totalorder %s18, 1
      %p61 = por %p59, %p60
      %p62 = scmp.ne.s32.totalorder %s54, %s57
      %p63 = scmp.eq.s32.totalorder %s18, 0
      %p64 = por %p62, %p63
      %p65 = scmp.ne.s32.totalorder %s54, %s57
      %p66 = scmp.eq.s32.totalorder %s23, 1
      %p67 = por %p65, %p66
      %p68 = scmp.ne.s32.totalorder %s57, %s58
      %p69 = scmp.eq.s32.totalorder %s23, 0
      %p70 = por %p68, %p69
      %p71 = scmp.ne.s32.totalorder %s57, %s58
      %p72 = scmp.eq.s32.totalorder %s24, 1
      %p73 = por %p71, %p72
      %p75 = scmp.ne.s32.totalorder %s58, %s74
      %p76 = scmp.eq.s32.totalorder %s24, 0
      %p77 = por %p75, %p76
      %s79 = sadd.s32 %s78, 1
      %p82 = scmp.eq.s32.totalorder %s18, 1
      %p83 = scmp.ne.s32.totalorder %s78, %s80
      %p84 = scmp.eq.s32.totalorder %s18, 0
      %p85 = por %p83, %p84
      %p86 = scmp.ne.s32.totalorder %s78, %s80
      %p87 = scmp.eq.s32.totalorder %s23, 1
      %p88 = por %p86, %p87
      %p89 = scmp.ne.s32.totalorder %s80, %s81
      %p90 = scmp.eq.s32.totalorder %s23, 0
      %p91 = por %p89, %p90
      %p92 = scmp.ne.s32.totalorder %s80, %s81
      %p93 = scmp.eq.s32.totalorder %s24, 1
      %p94 = por %p92, %p93
      %p96 = scmp.ne.s32.totalorder %s81, %s95
      %p97 = scmp.eq.s32.totalorder %s24, 0
      %p98 = por %p96, %p97
      %s100 = sadd.s32 %s99, 1
      %p103 = scmp.eq.s32.totalorder %s18, 1
      %p104 = scmp.ne.s32.totalorder %s99, %s101
      %p105 = scmp.eq.s32.totalorder %s18, 0
      %p106 = por %p104, %p105
      %p107 = scmp.ne.s32.totalorder %s99, %s101
      %p108 = scmp.eq.s32.totalorder %s23, 1
      %p109 = por %p107, %p108
      %p110 = scmp.ne.s32.totalorder %s101, %s102
      %p111 = scmp.eq.s32.totalorder %s23, 0
      %p112 = por %p110, %p111
      %p113 = scmp.ne.s32.totalorder %s101, %s102
      %p114 = scmp.eq.s32.totalorder %s24, 1
      %p115 = por %p113, %p114
      %p117 = scmp.ne.s32.totalorder %s102, %s116
      %p118 = scmp.eq.s32.totalorder %s24, 0
      %p119 = por %p117, %p118
      %s121 = sadd.s32 %s120, 1
      %p124 = scmp.eq.s32.totalorder %s18, 1
      %p125 = scmp.ne.s32.totalorder %s120, %s122
      %p126 = scmp.eq.s32.totalorder %s18, 0
      %p127 = por %p125, %p126
      %p128 = scmp.ne.s32.totalorder %s120, %s122
      %p129 = scmp.eq.s32.totalorder %s23, 1
      %p130 = por %p128, %p129
      %p131 = scmp.ne.s32.totalorder %s122, %s123
      %p132 = scmp.eq.s32.totalorder %s23, 0
      %p133 = por %p131, %p132
      %p134 = scmp.ne.s32.totalorder %s122, %s123
      %p135 = scmp.eq.s32.totalorder %s24, 1
      %p136 = por %p134, %p135
      %p138 = scmp.ne.s32.totalorder %s123, %s137
      %p139 = scmp.eq.s32.totalorder %s24, 0
      %p140 = por %p138, %p139
      %s142 = sadd.s32 %s141, 1
      %p145 = scmp.eq.s32.totalorder %s18, 1
      %p146 = scmp.ne.s32.totalorder %s141, %s143
      %p147 = scmp.eq.s32.totalorder %s18, 0
      %p148 = por %p146, %p147
      %p149 = scmp.ne.s32.totalorder %s141, %s143
      %p150 = scmp.eq.s32.totalorder %s23, 1
      %p151 = por %p149, %p150
      %p152 = scmp.ne.s32.totalorder %s143, %s144
      %p153 = scmp.eq.s32.totalorder %s23, 0
      %p154 = por %p152, %p153
      %p155 = scmp.ne.s32.totalorder %s143, %s144
      %p156 = scmp.eq.s32.totalorder %s24, 1
      %p157 = por %p155, %p156
      %p159 = scmp.ne.s32.totalorder %s144, %s158
      %p160 = scmp.eq.s32.totalorder %s24, 0
      %p161 = por %p159, %p160
      %s163 = sadd.s32 %s162, 1
      %p166 = scmp.eq.s32.totalorder %s18, 1
      %p167 = scmp.ne.s32.totalorder %s162, %s164
      %p168 = scmp.eq.s32.totalorder %s18, 0
      %p169 = por %p167, %p168
      %p170 = scmp.ne.s32.totalorder %s162, %s164
      %p171 = scmp.eq.s32.totalorder %s23, 1
      %p172 = por %p170, %p171
      %p173 = scmp.ne.s32.totalorder %s164, %s165
      %p174 = scmp.eq.s32.totalorder %s23, 0
      %p175 = por %p173, %p174
      %p176 = scmp.ne.s32.totalorder %s164, %s165
      %p177 = scmp.eq.s32.totalorder %s24, 1
      %p178 = por %p176, %p177
      %p180 = scmp.ne.s32.totalorder %s165, %s179
      %p181 = scmp.eq.s32.totalorder %s24, 0
      %p182 = por %p180, %p181
      %s184 = sadd.s32 %s183, 1
      %p187 = scmp.eq.s32.totalorder %s18, 1
      %p188 = scmp.ne.s32.totalorder %s183, %s185
      %p189 = scmp.eq.s32.totalorder %s18, 0
      %p190 = por %p188, %p189
      %p191 = scmp.ne.s32.totalorder %s183, %s185
      %p192 = scmp.eq.s32.totalorder %s23, 1
      %p193 = por %p191, %p192
      %p194 = scmp.ne.s32.totalorder %s185, %s186
      %p195 = scmp.eq.s32.totalorder %s23, 0
      %p196 = por %p194, %p195
      %p197 = scmp.ne.s32.totalorder %s185, %s186
      %p198 = scmp.eq.s32.totalorder %s24, 1
      %p199 = por %p197, %p198
      %p201 = scmp.ne.s32.totalorder %s186, %s200
      %p202 = scmp.eq.s32.totalorder %s24, 0
      %p203 = por %p201, %p202
      %s205 = sadd.s32 %s204, 1
      %p208 = scmp.eq.s32.totalorder %s18, 1
      %p209 = scmp.ne.s32.totalorder %s204, %s206
      %p210 = scmp.eq.s32.totalorder %s18, 0
      %p211 = por %p209, %p210
      %p212 = scmp.ne.s32.totalorder %s204, %s206
      %p213 = scmp.eq.s32.totalorder %s23, 1
      %p214 = por %p212, %p213
      %p215 = scmp.ne.s32.totalorder %s206, %s207
      %p216 = scmp.eq.s32.totalorder %s23, 0
      %p217 = por %p215, %p216
      %p218 = scmp.ne.s32.totalorder %s206, %s207
      %p219 = scmp.eq.s32.totalorder %s24, 1
      %p220 = por %p218, %p219
      %p222 = scmp.ne.s32.totalorder %s207, %s221
      %p223 = scmp.eq.s32.totalorder %s24, 0
      %p224 = por %p222, %p223
      %s225 = ssub.s32 %s18, %s25
      %p226 = scmp.eq.s32.totalorder %s225, 0
      %s228 = sadd.s32 %s227, 1
      %s229 = scalar_select %p226, %s227, %s228
      %p232 = pneg %p226
      %p233 = scmp.eq.s32.totalorder %s18, 1
      %p234 = por %p232, %p233
      %p235 = scmp.ne.s32.totalorder %s227, %s230
      %p236 = scmp.eq.s32.totalorder %s18, 0
      %p237 = por %p235, %p236
      %p238 = scmp.ne.s32.totalorder %s227, %s230
      %p239 = scmp.eq.s32.totalorder %s23, 1
      %p240 = por %p238, %p239
      %p241 = scmp.ne.s32.totalorder %s230, %s231
      %p242 = scmp.eq.s32.totalorder %s23, 0
      %p243 = por %p241, %p242
      %p244 = scmp.ne.s32.totalorder %s230, %s231
      %p245 = scmp.eq.s32.totalorder %s24, 1
      %p246 = por %p244, %p245
      %p248 = scmp.ne.s32.totalorder %s231, %s247
      %p249 = scmp.eq.s32.totalorder %s24, 0
      %p250 = por %p248, %p249
      %p251 = scmp.le.s32.totalorder 1, %s18
      %p252 = scmp.lt.s32.totalorder %s18, 3
      %p253 = pnand %p251, %p252
      %p254 = pneg %p253
      // Predicated region
      $region9: #{tpu_custom_call.1} parent=5 // pred_check
        _
      $region10: #{tpu_custom_call.1} parent=5 // pred_check_branch
        %256 = sbr.rel (%p253) target = $region12
      $region11: #{tpu_custom_call.1} parent=5 // pred_region
        %s257 = ssub.s32 %s18, 1
        // Predicated region
        $region13: #{tpu_custom_call.1} parent=11 // pred_check
          %p258 = pneg %p91
        $region14: #{tpu_custom_call.1} parent=11 // pred_check_branch
          %260 = sbr.rel (%p258) target = $region16
        $region15: #{tpu_custom_call.1} parent=11 // pred_region
          _
        $region16: #{tpu_custom_call.1} parent=11 // pred_fallthru
          _
        // Predicated region
        $region17: #{tpu_custom_call.1} parent=11 // pred_check
          %p261 = pneg %p112
        $region18: #{tpu_custom_call.1} parent=11 // pred_check_branch
          %263 = sbr.rel (%p261) target = $region20
        $region19: #{tpu_custom_call.1} parent=11 // pred_region
          _
        $region20: #{tpu_custom_call.1} parent=11 // pred_fallthru
          _
        // Predicated region
        $region21: #{tpu_custom_call.1} parent=11 // pred_check
          %p264 = pneg %p133
        $region22: #{tpu_custom_call.1} parent=11 // pred_check_branch
          %266 = sbr.rel (%p264) target = $region24
        $region23: #{tpu_custom_call.1} parent=11 // pred_region
          _
        $region24: #{tpu_custom_call.1} parent=11 // pred_fallthru
          _
        // Predicated region
        $region25: #{tpu_custom_call.1} parent=11 // pred_check
          %p267 = pneg %p154
        $region26: #{tpu_custom_call.1} parent=11 // pred_check_branch
          %269 = sbr.rel (%p267) target = $region28
        $region27: #{tpu_custom_call.1} parent=11 // pred_region
          _
        $region28: #{tpu_custom_call.1} parent=11 // pred_fallthru
          _
        // Predicated region
        $region29: #{tpu_custom_call.1} parent=11 // pred_check
          %p270 = pneg %p175
        $region30: #{tpu_custom_call.1} parent=11 // pred_check_branch
          %272 = sbr.rel (%p270) target = $region32
        $region31: #{tpu_custom_call.1} parent=11 // pred_region
          _
        $region32: #{tpu_custom_call.1} parent=11 // pred_fallthru
          _
        // Predicated region
        $region33: #{tpu_custom_call.1} parent=11 // pred_check
          %p273 = pneg %p196
        $region34: #{tpu_custom_call.1} parent=11 // pred_check_branch
          %275 = sbr.rel (%p273) target = $region36
        $region35: #{tpu_custom_call.1} parent=11 // pred_region
          _
        $region36: #{tpu_custom_call.1} parent=11 // pred_fallthru
          _
        // Predicated region
        $region37: #{tpu_custom_call.1} parent=11 // pred_check
          %p276 = pneg %p217
        $region38: #{tpu_custom_call.1} parent=11 // pred_check_branch
          %278 = sbr.rel (%p276) target = $region40
        $region39: #{tpu_custom_call.1} parent=11 // pred_region
          _
        $region40: #{tpu_custom_call.1} parent=11 // pred_fallthru
          _
      $region12: #{tpu_custom_call.1} parent=5 // pred_fallthru
        _
      %p279 = scmp.lt.s32.totalorder %s18, 2
      // Predicated region
      $region41: #{tpu_custom_call.1} parent=5 // pred_check
        %p280 = pneg %p279
      $region42: #{tpu_custom_call.1} parent=5 // pred_check_branch
        %282 = sbr.rel (%p280) target = $region44
      $region43: #{tpu_custom_call.1} parent=5 // pred_region
        // Predicated region
        $region45: #{tpu_custom_call.1} parent=43 // pred_check
          %p283 = pneg %p38
        $region46: #{tpu_custom_call.1} parent=43 // pred_check_branch
          %285 = sbr.rel (%p283) target = $region48
        $region47: #{tpu_custom_call.1} parent=43 // pred_region
          %p286 = scmp.lt.s32.totalorder %s18, 1
          %s287 = scalar_select %p286, %s18, 1
          %s288 = smul.addr %s287, 8
          %s289 = scalar_lea.vmem %s0, %s288
        $region48: #{tpu_custom_call.1} parent=43 // pred_fallthru
          _
        // Predicated region
        $region49: #{tpu_custom_call.1} parent=43 // pred_check
          %p290 = pneg %p64
        $region50: #{tpu_custom_call.1} parent=43 // pred_check_branch
          %292 = sbr.rel (%p290) target = $region52
        $region51: #{tpu_custom_call.1} parent=43 // pred_region
          %p293 = scmp.lt.s32.totalorder %s18, 1
          %s294 = scalar_select %p293, %s18, 1
          %s295 = smul.addr %s294, 16
          %s296 = smul.addr %s295, 8
          %s297 = scalar_lea.vmem %s1, %s296
        $region52: #{tpu_custom_call.1} parent=43 // pred_fallthru
          _
      $region44: #{tpu_custom_call.1} parent=5 // pred_fallthru
        _
      %p298 = scmp.le.s32.totalorder 1, %s18
      %p299 = scmp.lt.s32.totalorder %s18, 3
      %p300 = pnand %p298, %p299
      %p301 = pneg %p300
      // Predicated region
      $region53: #{tpu_custom_call.1} parent=5 // pred_check
        _
      $region54: #{tpu_custom_call.1} parent=5 // pred_check_branch
        %303 = sbr.rel (%p300) target = $region56
      $region55: #{tpu_custom_call.1} parent=5 // pred_region
        %s304 = ssub.s32 %s18, 1
        %p305 = scmp.lt.s32.totalorder %s23, 1
        %s306 = scalar_select %p305, %s23, 1
        %s307 = smul.addr %s306, 8
        %s308 = scalar_lea.vmem %s0, %s307
        %p309 = pneg %p44
        %p310 = pneg %p41
        %p311 = scmp.lt.s32.totalorder %s23, 1
        %s312 = scalar_select %p311, %s23, 1
        %s313 = smul.addr %s312, 16
        %s314 = smul.addr %s313, 8
        %s315 = scalar_lea.vmem %s1, %s314
        %p316 = pneg %p70
        %p317 = pneg %p67
        %p318 = pneg %p91
        %p319 = pneg %p88
        %p320 = pneg %p112
        %p321 = pneg %p109
        %p322 = pneg %p133
        %p323 = pneg %p130
        %p324 = pneg %p154
        %p325 = pneg %p151
        %p326 = pneg %p175
        %p327 = pneg %p172
        %p328 = pneg %p196
        %p329 = pneg %p193
        %p330 = pneg %p217
        %p331 = pneg %p214
        %p332 = pneg %p243
        %p333 = pneg %p240
        %s334 = sand.u32 %s230, 1
        %s335 = scalar_lea.sflag [#allocation5], %s334
        %s336 = sand.u32 %s230, 1
        %s337 = smul.addr %s336, 128
        %s338 = scalar_lea.vmem [#allocation4], %s337
        %p339 = scmp.lt.s32.totalorder %s23, 1
        %s340 = scalar_select %p339, %s23, 1
        %s341 = smul.addr %s340, 8
        %s342 = scalar_lea.vmem %s0, %s341
        %p343 = scmp.lt.s32.totalorder %s23, 1
        %s344 = scalar_select %p343, %s23, 1
        %s345 = smul.addr %s344, 16
        %s346 = smul.addr %s345, 8
        %s347 = scalar_lea.vmem %s1, %s346
        %v348 = vld [vmem:[%s347] sm:$0xff]
        %v349 = vld [vmem:[%s347 + $0x8] sm:$0xff]
        %v350 = vld [vmem:[%s347 + $0x10] sm:$0xff]
        %v351 = vld [vmem:[%s347 + $0x18] sm:$0xff]
        %v352 = vld [vmem:[%s347 + $0x20] sm:$0xff]
        %v353 = vld [vmem:[%s347 + $0x28] sm:$0xff]
        %v354 = vld [vmem:[%s347 + $0x30] sm:$0xff]
        %v355 = vld [vmem:[%s347 + $0x38] sm:$0xff]
        %v356 = vld [vmem:[%s347 + $0x40] sm:$0xff]
        %v357 = vld [vmem:[%s347 + $0x48] sm:$0xff]
        %v358 = vld [vmem:[%s347 + $0x50] sm:$0xff]
        %v359 = vld [vmem:[%s347 + $0x58] sm:$0xff]
        %v360 = vld [vmem:[%s347 + $0x60] sm:$0xff]
        %v361 = vld [vmem:[%s347 + $0x68] sm:$0xff]
        %v362 = vld [vmem:[%s347 + $0x70] sm:$0xff]
        %v363 = vld [vmem:[%s347 + $0x78] sm:$0xff]
        %v364 = vld [vmem:[%s2] sm:$0xff]
        %v365 = vld [vmem:[%s2 + $0x8] sm:$0xff]
        %v366 = vld [vmem:[%s2 + $0x10] sm:$0xff]
        %v367 = vld [vmem:[%s2 + $0x18] sm:$0xff]
        %s368 = scalar_lea.vmem %s2, 32
        %v369 = vld [vmem:[%s368] sm:$0xff]
        %v370 = vld [vmem:[%s368 + $0x8] sm:$0xff]
        %v371 = vld [vmem:[%s368 + $0x10] sm:$0xff]
        %v372 = vld [vmem:[%s368 + $0x18] sm:$0xff]
        %vm373 = vcmask 261120
        %v375 = vsel %vm373, 0.0, 0
        %v378 = vsel %vm373, %v348, 0
        %v381 = vsel %vm373, %v349, 0
        %v384 = vsel %vm373, %v350, 0
        %v387 = vsel %vm373, %v351, 0
        %v390 = vsel %vm373, %v352, 0
        %v393 = vsel %vm373, %v353, 0
        %v396 = vsel %vm373, %v354, 0
        %v399 = vsel %vm373, %v355, 0
        %v402 = vsel %vm373, %v356, 0
        %v405 = vsel %vm373, %v357, 0
        %v408 = vsel %vm373, %v358, 0
        %v411 = vsel %vm373, %v359, 0
        %v414 = vsel %vm373, %v360, 0
        %v417 = vsel %vm373, %v361, 0
        %v420 = vsel %vm373, %v362, 0
        %422 = vmatprep.subr.mxu0 0.0
        %423 = vmatpush1.msra.mxu0 0.0
        %424 = vmatprep.subr.mxu0 0.0
        %425 = vmatpush1.msra.mxu0 0.0
        %426 = vmatprep.subr.mxu0 0.0
        %427 = vmatpush1.msra.mxu0 0.0
        %428 = vmatprep.subr.mxu0 0.0
        %429 = vmatpush1.msra.mxu0 0.0
        %430 = vmatprep.subr.mxu0 0.0
        %431 = vmatpush1.msra.mxu0 0.0
        %432 = vmatprep.subr.mxu0 0.0
        %433 = vmatpush1.msra.mxu0 0.0
        %434 = vmatprep.subr.mxu0 0.0
        %435 = vmatpush1.msra.mxu0 0.0
        %436 = vmatprep.subr.mxu0 0.0
        %437 = vmatpush1.msra.mxu0 0.0
        %438 = vmatprep.subr.mxu0 0.0
        %439 = vmatpush1.msra.mxu0 0.0
        %440 = vmatprep.subr.mxu0 0.0
        %441 = vmatpush1.msra.mxu0 0.0
        %442 = vmatprep.subr.mxu0 0.0
        %443 = vmatpush1.msra.mxu0 0.0
        %444 = vmatprep.subr.mxu0 0.0
        %445 = vmatpush1.msra.mxu0 0.0
        %446 = vmatprep.subr.mxu0 0.0
        %447 = vmatpush1.msra.mxu0 %v372
        %448 = vmatprep.subr.mxu0 0.0
        %449 = vmatpush1.msra.mxu0 %v371
        %450 = vmatprep.subr.mxu0 0.0
        %451 = vmatpush1.msra.mxu0 %v370
        %452 = vmatprep.subr.mxu0 0.0
        %453 = vmatpush1.msra.mxu0 %v369
        %454 = vmatprep.subr.mxu0 0.0
        %455 = vmatpush2.msra.mxu0 0.0
        %456 = vmatprep.subr.mxu0 0.0
        %457 = vmatpush2.msra.mxu0 0.0
        %458 = vmatprep.subr.mxu0 0.0
        %459 = vmatpush2.msra.mxu0 0.0
        %460 = vmatprep.subr.mxu0 0.0
        %461 = vmatpush2.msra.mxu0 0.0
        %462 = vmatprep.subr.mxu0 0.0
        %463 = vmatpush2.msra.mxu0 0.0
        %464 = vmatprep.subr.mxu0 0.0
        %465 = vmatpush2.msra.mxu0 0.0
        %466 = vmatprep.subr.mxu0 0.0
        %467 = vmatpush2.msra.mxu0 0.0
        %468 = vmatprep.subr.mxu0 0.0
        %469 = vmatpush2.msra.mxu0 0.0
        %470 = vmatprep.subr.mxu0 0.0
        %471 = vmatpush2.msra.mxu0 0.0
        %472 = vmatprep.subr.mxu0 0.0
        %473 = vmatpush2.msra.mxu0 0.0
        %474 = vmatprep.subr.mxu0 0.0
        %475 = vmatpush2.msra.mxu0 0.0
        %476 = vmatprep.subr.mxu0 0.0
        %477 = vmatpush2.msra.mxu0 0.0
        %478 = vmatprep.subr.mxu0 0.0
        %479 = vmatpush2.msra.mxu0 0.0
        %480 = vmatprep.subr.mxu0 0.0
        %481 = vmatpush2.msra.mxu0 0.0
        %482 = vmatprep.subr.mxu0 0.0
        %483 = vmatpush2.msra.mxu0 0.0
        %484 = vmatprep.subr.mxu0 0.0
        %485 = vmatpush2.msra.mxu0 0.0
        %486 = vmatprep.mubr.f32.mxu0 0.0
        %487 = vmatmul.mubr.f32.gmra.mxu0 %v375
        %v488 = vpop.f32.mrf.mxu0
        %v489 = vadd.f32 0.0, %v488
        %v490 = vpop.f32.mrf.mxu0
        %491 = vmatprep.mubr.f32.mxu0 0.0
        %492 = vmatmul.mubr.f32.gmra.mxu0 %v378
        %v493 = vpop.f32.mrf.mxu0
        %v494 = vadd.f32 0.0, %v493
        %v495 = vpop.f32.mrf.mxu0
        %496 = vmatprep.mubr.f32.mxu0 0.0
        %497 = vmatmul.mubr.f32.gmra.mxu0 %v381
        %v498 = vpop.f32.mrf.mxu0
        %v499 = vadd.f32 0.0, %v498
        %v500 = vpop.f32.mrf.mxu0
        %501 = vmatprep.mubr.f32.mxu0 0.0
        %502 = vmatmul.mubr.f32.gmra.mxu0 %v384
        %v503 = vpop.f32.mrf.mxu0
        %v504 = vadd.f32 0.0, %v503
        %v505 = vpop.f32.mrf.mxu0
        %506 = vmatprep.mubr.f32.mxu0 0.0
        %507 = vmatmul.mubr.f32.gmra.mxu0 %v387
        %v508 = vpop.f32.mrf.mxu0
        %v509 = vadd.f32 0.0, %v508
        %v510 = vpop.f32.mrf.mxu0
        %511 = vmatprep.mubr.f32.mxu0 0.0
        %512 = vmatmul.mubr.f32.gmra.mxu0 %v390
        %v513 = vpop.f32.mrf.mxu0
        %v514 = vadd.f32 0.0, %v513
        %v515 = vpop.f32.mrf.mxu0
        %516 = vmatprep.mubr.f32.mxu0 0.0
        %517 = vmatmul.mubr.f32.gmra.mxu0 %v393
        %v518 = vpop.f32.mrf.mxu0
        %v519 = vadd.f32 0.0, %v518
        %v520 = vpop.f32.mrf.mxu0
        %521 = vmatprep.mubr.f32.mxu0 0.0
        %522 = vmatmul.mubr.f32.gmra.mxu0 %v396
        %v523 = vpop.f32.mrf.mxu0
        %v524 = vadd.f32 0.0, %v523
        %v525 = vpop.f32.mrf.mxu0
        %526 = vmatprep.mubr.f32.mxu0 0.0
        %527 = vmatmul.mubr.f32.gmra.mxu0 %v399
        %v528 = vpop.f32.mrf.mxu0
        %v529 = vadd.f32 0.0, %v528
        %v530 = vpop.f32.mrf.mxu0
        %531 = vmatprep.mubr.f32.mxu0 0.0
        %532 = vmatmul.mubr.f32.gmra.mxu0 %v402
        %v533 = vpop.f32.mrf.mxu0
        %v534 = vadd.f32 0.0, %v533
        %v535 = vpop.f32.mrf.mxu0
        %536 = vmatprep.mubr.f32.mxu0 0.0
        %537 = vmatmul.mubr.f32.gmra.mxu0 %v405
        %v538 = vpop.f32.mrf.mxu0
        %v539 = vadd.f32 0.0, %v538
        %v540 = vpop.f32.mrf.mxu0
        %541 = vmatprep.mubr.f32.mxu0 0.0
        %542 = vmatmul.mubr.f32.gmra.mxu0 %v408
        %v543 = vpop.f32.mrf.mxu0
        %v544 = vadd.f32 0.0, %v543
        %v545 = vpop.f32.mrf.mxu0
        %546 = vmatprep.mubr.f32.mxu0 0.0
        %547 = vmatmul.mubr.f32.gmra.mxu0 %v411
        %v548 = vpop.f32.mrf.mxu0
        %v549 = vadd.f32 0.0, %v548
        %v550 = vpop.f32.mrf.mxu0
        %551 = vmatprep.mubr.f32.mxu0 0.0
        %552 = vmatmul.mubr.f32.gmra.mxu0 %v414
        %v553 = vpop.f32.mrf.mxu0
        %v554 = vadd.f32 0.0, %v553
        %v555 = vpop.f32.mrf.mxu0
        %556 = vmatprep.mubr.f32.mxu0 0.0
        %557 = vmatmul.mubr.f32.gmra.mxu0 %v417
        %v558 = vpop.f32.mrf.mxu0
        %v559 = vadd.f32 0.0, %v558
        %v560 = vpop.f32.mrf.mxu0
        %561 = vmatprep.mubr.f32.mxu0 0.0
        %562 = vmatmul.mubr.f32.gmra.mxu0 %v420
        %v563 = vpop.f32.mrf.mxu0
        %v564 = vadd.f32 0.0, %v563
        %v565 = vpop.f32.mrf.mxu0
        %566 = vdwg.mxu0
        %567 = vmatprep.subr.mxu0 0.0
        %568 = vmatpush1.msra.mxu0 0.0
        %569 = vmatprep.subr.mxu0 0.0
        %570 = vmatpush1.msra.mxu0 0.0
        %571 = vmatprep.subr.mxu0 0.0
        %572 = vmatpush1.msra.mxu0 0.0
        %573 = vmatprep.subr.mxu0 0.0
        %574 = vmatpush1.msra.mxu0 0.0
        %575 = vmatprep.subr.mxu0 0.0
        %576 = vmatpush1.msra.mxu0 0.0
        %577 = vmatprep.subr.mxu0 0.0
        %578 = vmatpush1.msra.mxu0 0.0
        %579 = vmatprep.subr.mxu0 0.0
        %580 = vmatpush1.msra.mxu0 0.0
        %581 = vmatprep.subr.mxu0 0.0
        %582 = vmatpush1.msra.mxu0 0.0
        %583 = vmatprep.subr.mxu0 0.0
        %584 = vmatpush1.msra.mxu0 0.0
        %585 = vmatprep.subr.mxu0 0.0
        %586 = vmatpush1.msra.mxu0 0.0
        %587 = vmatprep.subr.mxu0 0.0
        %588 = vmatpush1.msra.mxu0 0.0
        %589 = vmatprep.subr.mxu0 0.0
        %590 = vmatpush1.msra.mxu0 0.0
        %591 = vmatprep.subr.mxu0 0.0
        %592 = vmatpush1.msra.mxu0 %v367
        %593 = vmatprep.subr.mxu0 0.0
        %594 = vmatpush1.msra.mxu0 %v366
        %595 = vmatprep.subr.mxu0 0.0
        %596 = vmatpush1.msra.mxu0 %v365
        %597 = vmatprep.subr.mxu0 0.0
        %598 = vmatpush1.msra.mxu0 %v364
        %599 = vmatprep.subr.mxu0 0.0
        %600 = vmatpush2.msra.mxu0 0.0
        %601 = vmatprep.subr.mxu0 0.0
        %602 = vmatpush2.msra.mxu0 0.0
        %603 = vmatprep.subr.mxu0 0.0
        %604 = vmatpush2.msra.mxu0 0.0
        %605 = vmatprep.subr.mxu0 0.0
        %606 = vmatpush2.msra.mxu0 0.0
        %607 = vmatprep.subr.mxu0 0.0
        %608 = vmatpush2.msra.mxu0 0.0
        %609 = vmatprep.subr.mxu0 0.0
        %610 = vmatpush2.msra.mxu0 0.0
        %611 = vmatprep.subr.mxu0 0.0
        %612 = vmatpush2.msra.mxu0 0.0
        %613 = vmatprep.subr.mxu0 0.0
        %614 = vmatpush2.msra.mxu0 0.0
        %615 = vmatprep.subr.mxu0 0.0
        %616 = vmatpush2.msra.mxu0 0.0
        %617 = vmatprep.subr.mxu0 0.0
        %618 = vmatpush2.msra.mxu0 0.0
        %619 = vmatprep.subr.mxu0 0.0
        %620 = vmatpush2.msra.mxu0 0.0
        %621 = vmatprep.subr.mxu0 0.0
        %622 = vmatpush2.msra.mxu0 0.0
        %623 = vmatprep.subr.mxu0 0.0
        %624 = vmatpush2.msra.mxu0 0.0
        %625 = vmatprep.subr.mxu0 0.0
        %626 = vmatpush2.msra.mxu0 0.0
        %627 = vmatprep.subr.mxu0 0.0
        %628 = vmatpush2.msra.mxu0 0.0
        %629 = vmatprep.subr.mxu0 0.0
        %630 = vmatpush2.msra.mxu0 0.0
        %631 = vmatprep.mubr.f32.mxu0 0.0
        %632 = vmatmul.mubr.f32.gmra.mxu0 %v375
        %v633 = vpop.f32.mrf.mxu0
        %v634 = vadd.f32 %v489, %v633
        %v635 = vpop.f32.mrf.mxu0
        %636 = vmatprep.mubr.f32.mxu0 0.0
        %637 = vmatmul.mubr.f32.gmra.mxu0 %v375
        %v638 = vpop.f32.mrf.mxu0
        %v639 = vadd.f32 %v494, %v638
        %v640 = vpop.f32.mrf.mxu0
        %641 = vmatprep.mubr.f32.mxu0 0.0
        %642 = vmatmul.mubr.f32.gmra.mxu0 %v378
        %v643 = vpop.f32.mrf.mxu0
        %v644 = vadd.f32 %v499, %v643
        %v645 = vpop.f32.mrf.mxu0
        %646 = vmatprep.mubr.f32.mxu0 0.0
        %647 = vmatmul.mubr.f32.gmra.mxu0 %v381
        %v648 = vpop.f32.mrf.mxu0
        %v649 = vadd.f32 %v504, %v648
        %v650 = vpop.f32.mrf.mxu0
        %651 = vmatprep.mubr.f32.mxu0 0.0
        %652 = vmatmul.mubr.f32.gmra.mxu0 %v384
        %v653 = vpop.f32.mrf.mxu0
        %v654 = vadd.f32 %v509, %v653
        %v655 = vpop.f32.mrf.mxu0
        %656 = vmatprep.mubr.f32.mxu0 0.0
        %657 = vmatmul.mubr.f32.gmra.mxu0 %v387
        %v658 = vpop.f32.mrf.mxu0
        %v659 = vadd.f32 %v514, %v658
        %v660 = vpop.f32.mrf.mxu0
        %661 = vmatprep.mubr.f32.mxu0 0.0
        %662 = vmatmul.mubr.f32.gmra.mxu0 %v390
        %v663 = vpop.f32.mrf.mxu0
        %v664 = vadd.f32 %v519, %v663
        %v665 = vpop.f32.mrf.mxu0
        %666 = vmatprep.mubr.f32.mxu0 0.0
        %667 = vmatmul.mubr.f32.gmra.mxu0 %v393
        %v668 = vpop.f32.mrf.mxu0
        %v669 = vadd.f32 %v524, %v668
        %v670 = vpop.f32.mrf.mxu0
        %671 = vmatprep.mubr.f32.mxu0 0.0
        %672 = vmatmul.mubr.f32.gmra.mxu0 %v396
        %v673 = vpop.f32.mrf.mxu0
        %v674 = vadd.f32 %v529, %v673
        %v675 = vpop.f32.mrf.mxu0
        %676 = vmatprep.mubr.f32.mxu0 0.0
        %677 = vmatmul.mubr.f32.gmra.mxu0 %v399
        %v678 = vpop.f32.mrf.mxu0
        %v679 = vadd.f32 %v534, %v678
        %v680 = vpop.f32.mrf.mxu0
        %681 = vmatprep.mubr.f32.mxu0 0.0
        %682 = vmatmul.mubr.f32.gmra.mxu0 %v402
        %v683 = vpop.f32.mrf.mxu0
        %v684 = vadd.f32 %v539, %v683
        %v685 = vpop.f32.mrf.mxu0
        %686 = vmatprep.mubr.f32.mxu0 0.0
        %687 = vmatmul.mubr.f32.gmra.mxu0 %v405
        %v688 = vpop.f32.mrf.mxu0
        %v689 = vadd.f32 %v544, %v688
        %v690 = vpop.f32.mrf.mxu0
        %691 = vmatprep.mubr.f32.mxu0 0.0
        %692 = vmatmul.mubr.f32.gmra.mxu0 %v408
        %v693 = vpop.f32.mrf.mxu0
        %v694 = vadd.f32 %v549, %v693
        %v695 = vpop.f32.mrf.mxu0
        %696 = vmatprep.mubr.f32.mxu0 0.0
        %697 = vmatmul.mubr.f32.gmra.mxu0 %v411
        %v698 = vpop.f32.mrf.mxu0
        %v699 = vadd.f32 %v554, %v698
        %v700 = vpop.f32.mrf.mxu0
        %701 = vmatprep.mubr.f32.mxu0 0.0
        %702 = vmatmul.mubr.f32.gmra.mxu0 %v414
        %v703 = vpop.f32.mrf.mxu0
        %v704 = vadd.f32 %v559, %v703
        %v705 = vpop.f32.mrf.mxu0
        %706 = vmatprep.mubr.f32.mxu0 0.0
        %707 = vmatmul.mubr.f32.gmra.mxu0 %v417
        %v708 = vpop.f32.mrf.mxu0
        %v709 = vadd.f32 %v564, %v708
        %v710 = vpop.f32.mrf.mxu0
        %711 = vdwg.mxu0
        %s712 = scalar_lea.vmem %s2, 64
        %v713 = vld [vmem:[%s712] sm:$0xff]
        %v714 = vld [vmem:[%s712 + $0x8] sm:$0xff]
        %v715 = vld [vmem:[%s712 + $0x10] sm:$0xff]
        %v716 = vld [vmem:[%s712 + $0x18] sm:$0xff]
        %v718 = vsel %vm373, %v363, 0
        %720 = vmatprep.subr.mxu0 0.0
        %721 = vmatpush1.msra.mxu0 0.0
        %722 = vmatprep.subr.mxu0 0.0
        %723 = vmatpush1.msra.mxu0 0.0
        %724 = vmatprep.subr.mxu0 0.0
        %725 = vmatpush1.msra.mxu0 0.0
        %726 = vmatprep.subr.mxu0 0.0
        %727 = vmatpush1.msra.mxu0 0.0
        %728 = vmatprep.subr.mxu0 0.0
        %729 = vmatpush1.msra.mxu0 0.0
        %730 = vmatprep.subr.mxu0 0.0
        %731 = vmatpush1.msra.mxu0 0.0
        %732 = vmatprep.subr.mxu0 0.0
        %733 = vmatpush1.msra.mxu0 0.0
        %734 = vmatprep.subr.mxu0 0.0
        %735 = vmatpush1.msra.mxu0 0.0
        %736 = vmatprep.subr.mxu0 0.0
        %737 = vmatpush1.msra.mxu0 0.0
        %738 = vmatprep.subr.mxu0 0.0
        %739 = vmatpush1.msra.mxu0 0.0
        %740 = vmatprep.subr.mxu0 0.0
        %741 = vmatpush1.msra.mxu0 0.0
        %742 = vmatprep.subr.mxu0 0.0
        %743 = vmatpush1.msra.mxu0 0.0
        %744 = vmatprep.subr.mxu0 0.0
        %745 = vmatpush1.msra.mxu0 %v716
        %746 = vmatprep.subr.mxu0 0.0
        %747 = vmatpush1.msra.mxu0 %v715
        %748 = vmatprep.subr.mxu0 0.0
        %749 = vmatpush1.msra.mxu0 %v714
        %750 = vmatprep.subr.mxu0 0.0
        %751 = vmatpush1.msra.mxu0 %v713
        %752 = vmatprep.subr.mxu0 0.0
        %753 = vmatpush2.msra.mxu0 0.0
        %754 = vmatprep.subr.mxu0 0.0
        %755 = vmatpush2.msra.mxu0 0.0
        %756 = vmatprep.subr.mxu0 0.0
        %757 = vmatpush2.msra.mxu0 0.0
        %758 = vmatprep.subr.mxu0 0.0
        %759 = vmatpush2.msra.mxu0 0.0
        %760 = vmatprep.subr.mxu0 0.0
        %761 = vmatpush2.msra.mxu0 0.0
        %762 = vmatprep.subr.mxu0 0.0
        %763 = vmatpush2.msra.mxu0 0.0
        %764 = vmatprep.subr.mxu0 0.0
        %765 = vmatpush2.msra.mxu0 0.0
        %766 = vmatprep.subr.mxu0 0.0
        %767 = vmatpush2.msra.mxu0 0.0
        %768 = vmatprep.subr.mxu0 0.0
        %769 = vmatpush2.msra.mxu0 0.0
        %770 = vmatprep.subr.mxu0 0.0
        %771 = vmatpush2.msra.mxu0 0.0
        %772 = vmatprep.subr.mxu0 0.0
        %773 = vmatpush2.msra.mxu0 0.0
        %774 = vmatprep.subr.mxu0 0.0
        %775 = vmatpush2.msra.mxu0 0.0
        %776 = vmatprep.subr.mxu0 0.0
        %777 = vmatpush2.msra.mxu0 0.0
        %778 = vmatprep.subr.mxu0 0.0
        %779 = vmatpush2.msra.mxu0 0.0
        %780 = vmatprep.subr.mxu0 0.0
        %781 = vmatpush2.msra.mxu0 0.0
        %782 = vmatprep.subr.mxu0 0.0
        %783 = vmatpush2.msra.mxu0 0.0
        %784 = vmatprep.mubr.f32.mxu0 0.0
        %785 = vmatmul.mubr.f32.gmra.mxu0 %v378
        %v786 = vpop.f32.mrf.mxu0
        %v787 = vadd.f32 0.0, %v786
        %v788 = vpop.f32.mrf.mxu0
        %789 = vmatprep.mubr.f32.mxu0 0.0
        %790 = vmatmul.mubr.f32.gmra.mxu0 %v381
        %v791 = vpop.f32.mrf.mxu0
        %v792 = vadd.f32 0.0, %v791
        %v793 = vpop.f32.mrf.mxu0
        %794 = vmatprep.mubr.f32.mxu0 0.0
        %795 = vmatmul.mubr.f32.gmra.mxu0 %v384
        %v796 = vpop.f32.mrf.mxu0
        %v797 = vadd.f32 0.0, %v796
        %v798 = vpop.f32.mrf.mxu0
        %799 = vmatprep.mubr.f32.mxu0 0.0
        %800 = vmatmul.mubr.f32.gmra.mxu0 %v387
        %v801 = vpop.f32.mrf.mxu0
        %v802 = vadd.f32 0.0, %v801
        %v803 = vpop.f32.mrf.mxu0
        %804 = vmatprep.mubr.f32.mxu0 0.0
        %805 = vmatmul.mubr.f32.gmra.mxu0 %v390
        %v806 = vpop.f32.mrf.mxu0
        %v807 = vadd.f32 0.0, %v806
        %v808 = vpop.f32.mrf.mxu0
        %809 = vmatprep.mubr.f32.mxu0 0.0
        %810 = vmatmul.mubr.f32.gmra.mxu0 %v393
        %v811 = vpop.f32.mrf.mxu0
        %v812 = vadd.f32 0.0, %v811
        %v813 = vpop.f32.mrf.mxu0
        %814 = vmatprep.mubr.f32.mxu0 0.0
        %815 = vmatmul.mubr.f32.gmra.mxu0 %v396
        %v816 = vpop.f32.mrf.mxu0
        %v817 = vadd.f32 0.0, %v816
        %v818 = vpop.f32.mrf.mxu0
        %819 = vmatprep.mubr.f32.mxu0 0.0
        %820 = vmatmul.mubr.f32.gmra.mxu0 %v399
        %v821 = vpop.f32.mrf.mxu0
        %v822 = vadd.f32 0.0, %v821
        %v823 = vpop.f32.mrf.mxu0
        %824 = vmatprep.mubr.f32.mxu0 0.0
        %825 = vmatmul.mubr.f32.gmra.mxu0 %v402
        %v826 = vpop.f32.mrf.mxu0
        %v827 = vadd.f32 0.0, %v826
        %v828 = vpop.f32.mrf.mxu0
        %829 = vmatprep.mubr.f32.mxu0 0.0
        %830 = vmatmul.mubr.f32.gmra.mxu0 %v405
        %v831 = vpop.f32.mrf.mxu0
        %v832 = vadd.f32 0.0, %v831
        %v833 = vpop.f32.mrf.mxu0
        %834 = vmatprep.mubr.f32.mxu0 0.0
        %835 = vmatmul.mubr.f32.gmra.mxu0 %v408
        %v836 = vpop.f32.mrf.mxu0
        %v837 = vadd.f32 0.0, %v836
        %v838 = vpop.f32.mrf.mxu0
        %839 = vmatprep.mubr.f32.mxu0 0.0
        %840 = vmatmul.mubr.f32.gmra.mxu0 %v411
        %v841 = vpop.f32.mrf.mxu0
        %v842 = vadd.f32 0.0, %v841
        %v843 = vpop.f32.mrf.mxu0
        %844 = vmatprep.mubr.f32.mxu0 0.0
        %845 = vmatmul.mubr.f32.gmra.mxu0 %v414
        %v846 = vpop.f32.mrf.mxu0
        %v847 = vadd.f32 0.0, %v846
        %v848 = vpop.f32.mrf.mxu0
        %849 = vmatprep.mubr.f32.mxu0 0.0
        %850 = vmatmul.mubr.f32.gmra.mxu0 %v417
        %v851 = vpop.f32.mrf.mxu0
        %v852 = vadd.f32 0.0, %v851
        %v853 = vpop.f32.mrf.mxu0
        %854 = vmatprep.mubr.f32.mxu0 0.0
        %855 = vmatmul.mubr.f32.gmra.mxu0 %v420
        %v856 = vpop.f32.mrf.mxu0
        %v857 = vadd.f32 0.0, %v856
        %v858 = vpop.f32.mrf.mxu0
        %859 = vmatprep.mubr.f32.mxu0 0.0
        %860 = vmatmul.mubr.f32.gmra.mxu0 %v718
        %v861 = vpop.f32.mrf.mxu0
        %v862 = vadd.f32 0.0, %v861
        %v863 = vpop.f32.mrf.mxu0
        %864 = vdwg.mxu0
        %v865 = vadd.f32 %v634, %v787
        %v866 = vadd.f32 %v639, %v792
        %v867 = vadd.f32 %v644, %v797
        %v868 = vadd.f32 %v649, %v802
        %v869 = vadd.f32 %v654, %v807
        %v870 = vadd.f32 %v659, %v812
        %v871 = vadd.f32 %v664, %v817
        %v872 = vadd.f32 %v669, %v822
        %v873 = vadd.f32 %v674, %v827
        %v874 = vadd.f32 %v679, %v832
        %v875 = vadd.f32 %v684, %v837
        %v876 = vadd.f32 %v689, %v842
        %v877 = vadd.f32 %v694, %v847
        %v878 = vadd.f32 %v699, %v852
        %v879 = vadd.f32 %v704, %v857
        %v880 = vadd.f32 %v709, %v862
        %s881 = scalar_lea.vmem %s2, 96
        %v882 = vld [vmem:[%s881] sm:$0xff]
        %v883 = vld [vmem:[%s881 + $0x8] sm:$0xff]
        %v884 = vld [vmem:[%s881 + $0x10] sm:$0xff]
        %v885 = vld [vmem:[%s881 + $0x18] sm:$0xff]
        %886 = vmatprep.subr.mxu0 0.0
        %887 = vmatpush1.msra.mxu0 0.0
        %888 = vmatprep.subr.mxu0 0.0
        %889 = vmatpush1.msra.mxu0 0.0
        %890 = vmatprep.subr.mxu0 0.0
        %891 = vmatpush1.msra.mxu0 0.0
        %892 = vmatprep.subr.mxu0 0.0
        %893 = vmatpush1.msra.mxu0 0.0
        %894 = vmatprep.subr.mxu0 0.0
        %895 = vmatpush1.msra.mxu0 0.0
        %896 = vmatprep.subr.mxu0 0.0
        %897 = vmatpush1.msra.mxu0 0.0
        %898 = vmatprep.subr.mxu0 0.0
        %899 = vmatpush1.msra.mxu0 0.0
        %900 = vmatprep.subr.mxu0 0.0
        %901 = vmatpush1.msra.mxu0 0.0
        %902 = vmatprep.subr.mxu0 0.0
        %903 = vmatpush1.msra.mxu0 0.0
        %904 = vmatprep.subr.mxu0 0.0
        %905 = vmatpush1.msra.mxu0 0.0
        %906 = vmatprep.subr.mxu0 0.0
        %907 = vmatpush1.msra.mxu0 0.0
        %908 = vmatprep.subr.mxu0 0.0
        %909 = vmatpush1.msra.mxu0 0.0
        %910 = vmatprep.subr.mxu0 0.0
        %911 = vmatpush1.msra.mxu0 %v885
        %912 = vmatprep.subr.mxu0 0.0
        %913 = vmatpush1.msra.mxu0 %v884
        %914 = vmatprep.subr.mxu0 0.0
        %915 = vmatpush1.msra.mxu0 %v883
        %916 = vmatprep.subr.mxu0 0.0
        %917 = vmatpush1.msra.mxu0 %v882
        %918 = vmatprep.subr.mxu0 0.0
        %919 = vmatpush2.msra.mxu0 0.0
        %920 = vmatprep.subr.mxu0 0.0
        %921 = vmatpush2.msra.mxu0 0.0
        %922 = vmatprep.subr.mxu0 0.0
        %923 = vmatpush2.msra.mxu0 0.0
        %924 = vmatprep.subr.mxu0 0.0
        %925 = vmatpush2.msra.mxu0 0.0
        %926 = vmatprep.subr.mxu0 0.0
        %927 = vmatpush2.msra.mxu0 0.0
        %928 = vmatprep.subr.mxu0 0.0
        %929 = vmatpush2.msra.mxu0 0.0
        %930 = vmatprep.subr.mxu0 0.0
        %931 = vmatpush2.msra.mxu0 0.0
        %932 = vmatprep.subr.mxu0 0.0
        %933 = vmatpush2.msra.mxu0 0.0
        %934 = vmatprep.subr.mxu0 0.0
        %935 = vmatpush2.msra.mxu0 0.0
        %936 = vmatprep.subr.mxu0 0.0
        %937 = vmatpush2.msra.mxu0 0.0
        %938 = vmatprep.subr.mxu0 0.0
        %939 = vmatpush2.msra.mxu0 0.0
        %940 = vmatprep.subr.mxu0 0.0
        %941 = vmatpush2.msra.mxu0 0.0
        %942 = vmatprep.subr.mxu0 0.0
        %943 = vmatpush2.msra.mxu0 0.0
        %944 = vmatprep.subr.mxu0 0.0
        %945 = vmatpush2.msra.mxu0 0.0
        %946 = vmatprep.subr.mxu0 0.0
        %947 = vmatpush2.msra.mxu0 0.0
        %948 = vmatprep.subr.mxu0 0.0
        %949 = vmatpush2.msra.mxu0 0.0
        %950 = vmatprep.mubr.f32.mxu0 0.0
        %951 = vmatmul.mubr.f32.gmra.mxu0 %v381
        %v952 = vpop.f32.mrf.mxu0
        %v953 = vadd.f32 0.0, %v952
        %v954 = vpop.f32.mrf.mxu0
        %955 = vmatprep.mubr.f32.mxu0 0.0
        %956 = vmatmul.mubr.f32.gmra.mxu0 %v384
        %v957 = vpop.f32.mrf.mxu0
        %v958 = vadd.f32 0.0, %v957
        %v959 = vpop.f32.mrf.mxu0
        %960 = vmatprep.mubr.f32.mxu0 0.0
        %961 = vmatmul.mubr.f32.gmra.mxu0 %v387
        %v962 = vpop.f32.mrf.mxu0
        %v963 = vadd.f32 0.0, %v962
        %v964 = vpop.f32.mrf.mxu0
        %965 = vmatprep.mubr.f32.mxu0 0.0
        %966 = vmatmul.mubr.f32.gmra.mxu0 %v390
        %v967 = vpop.f32.mrf.mxu0
        %v968 = vadd.f32 0.0, %v967
        %v969 = vpop.f32.mrf.mxu0
        %970 = vmatprep.mubr.f32.mxu0 0.0
        %971 = vmatmul.mubr.f32.gmra.mxu0 %v393
        %v972 = vpop.f32.mrf.mxu0
        %v973 = vadd.f32 0.0, %v972
        %v974 = vpop.f32.mrf.mxu0
        %975 = vmatprep.mubr.f32.mxu0 0.0
        %976 = vmatmul.mubr.f32.gmra.mxu0 %v396
        %v977 = vpop.f32.mrf.mxu0
        %v978 = vadd.f32 0.0, %v977
        %v979 = vpop.f32.mrf.mxu0
        %980 = vmatprep.mubr.f32.mxu0 0.0
        %981 = vmatmul.mubr.f32.gmra.mxu0 %v399
        %v982 = vpop.f32.mrf.mxu0
        %v983 = vadd.f32 0.0, %v982
        %v984 = vpop.f32.mrf.mxu0
        %985 = vmatprep.mubr.f32.mxu0 0.0
        %986 = vmatmul.mubr.f32.gmra.mxu0 %v402
        %v987 = vpop.f32.mrf.mxu0
        %v988 = vadd.f32 0.0, %v987
        %v989 = vpop.f32.mrf.mxu0
        %990 = vmatprep.mubr.f32.mxu0 0.0
        %991 = vmatmul.mubr.f32.gmra.mxu0 %v405
        %v992 = vpop.f32.mrf.mxu0
        %v993 = vadd.f32 0.0, %v992
        %v994 = vpop.f32.mrf.mxu0
        %995 = vmatprep.mubr.f32.mxu0 0.0
        %996 = vmatmul.mubr.f32.gmra.mxu0 %v408
        %v997 = vpop.f32.mrf.mxu0
        %v998 = vadd.f32 0.0, %v997
        %v999 = vpop.f32.mrf.mxu0
        %1000 = vmatprep.mubr.f32.mxu0 0.0
        %1001 = vmatmul.mubr.f32.gmra.mxu0 %v411
        %v1002 = vpop.f32.mrf.mxu0
        %v1003 = vadd.f32 0.0, %v1002
        %v1004 = vpop.f32.mrf.mxu0
        %1005 = vmatprep.mubr.f32.mxu0 0.0
        %1006 = vmatmul.mubr.f32.gmra.mxu0 %v414
        %v1007 = vpop.f32.mrf.mxu0
        %v1008 = vadd.f32 0.0, %v1007
        %v1009 = vpop.f32.mrf.mxu0
        %1010 = vmatprep.mubr.f32.mxu0 0.0
        %1011 = vmatmul.mubr.f32.gmra.mxu0 %v417
        %v1012 = vpop.f32.mrf.mxu0
        %v1013 = vadd.f32 0.0, %v1012
        %v1014 = vpop.f32.mrf.mxu0
        %1015 = vmatprep.mubr.f32.mxu0 0.0
        %1016 = vmatmul.mubr.f32.gmra.mxu0 %v420
        %v1017 = vpop.f32.mrf.mxu0
        %v1018 = vadd.f32 0.0, %v1017
        %v1019 = vpop.f32.mrf.mxu0
        %1020 = vmatprep.mubr.f32.mxu0 0.0
        %1021 = vmatmul.mubr.f32.gmra.mxu0 %v718
        %v1022 = vpop.f32.mrf.mxu0
        %v1023 = vadd.f32 0.0, %v1022
        %v1024 = vpop.f32.mrf.mxu0
        %1025 = vmatprep.mubr.f32.mxu0 0.0
        %1026 = vmatmul.mubr.f32.gmra.mxu0 %v375
        %v1027 = vpop.f32.mrf.mxu0
        %v1028 = vadd.f32 0.0, %v1027
        %v1029 = vpop.f32.mrf.mxu0
        %1030 = vdwg.mxu0
        %v1031 = vadd.f32 %v865, %v953
        %v1032 = vadd.f32 %v866, %v958
        %v1033 = vadd.f32 %v867, %v963
        %v1034 = vadd.f32 %v868, %v968
        %v1035 = vadd.f32 %v869, %v973
        %v1036 = vadd.f32 %v870, %v978
        %v1037 = vadd.f32 %v871, %v983
        %v1038 = vadd.f32 %v872, %v988
        %v1039 = vadd.f32 %v873, %v993
        %v1040 = vadd.f32 %v874, %v998
        %v1041 = vadd.f32 %v875, %v1003
        %v1042 = vadd.f32 %v876, %v1008
        %v1043 = vadd.f32 %v877, %v1013
        %v1044 = vadd.f32 %v878, %v1018
        %v1045 = vadd.f32 %v879, %v1023
        %v1046 = vadd.f32 %v880, %v1028
        %s1047 = scalar_lea.vmem %s2, 128
        %v1048 = vld [vmem:[%s1047] sm:$0xff]
        %v1049 = vld [vmem:[%s1047 + $0x8] sm:$0xff]
        %v1050 = vld [vmem:[%s1047 + $0x10] sm:$0xff]
        %v1051 = vld [vmem:[%s1047 + $0x18] sm:$0xff]
        %1052 = vmatprep.subr.mxu0 0.0
        %1053 = vmatpush1.msra.mxu0 0.0
        %1054 = vmatprep.subr.mxu0 0.0
        %1055 = vmatpush1.msra.mxu0 0.0
        %1056 = vmatprep.subr.mxu0 0.0
        %1057 = vmatpush1.msra.mxu0 0.0
        %1058 = vmatprep.subr.mxu0 0.0
        %1059 = vmatpush1.msra.mxu0 0.0
        %1060 = vmatprep.subr.mxu0 0.0
        %1061 = vmatpush1.msra.mxu0 0.0
        %1062 = vmatprep.subr.mxu0 0.0
        %1063 = vmatpush1.msra.mxu0 0.0
        %1064 = vmatprep.subr.mxu0 0.0
        %1065 = vmatpush1.msra.mxu0 0.0
        %1066 = vmatprep.subr.mxu0 0.0
        %1067 = vmatpush1.msra.mxu0 0.0
        %1068 = vmatprep.subr.mxu0 0.0
        %1069 = vmatpush1.msra.mxu0 0.0
        %1070 = vmatprep.subr.mxu0 0.0
        %1071 = vmatpush1.msra.mxu0 0.0
        %1072 = vmatprep.subr.mxu0 0.0
        %1073 = vmatpush1.msra.mxu0 0.0
        %1074 = vmatprep.subr.mxu0 0.0
        %1075 = vmatpush1.msra.mxu0 0.0
        %1076 = vmatprep.subr.mxu0 0.0
        %1077 = vmatpush1.msra.mxu0 %v1051
        %1078 = vmatprep.subr.mxu0 0.0
        %1079 = vmatpush1.msra.mxu0 %v1050
        %1080 = vmatprep.subr.mxu0 0.0
        %1081 = vmatpush1.msra.mxu0 %v1049
        %1082 = vmatprep.subr.mxu0 0.0
        %1083 = vmatpush1.msra.mxu0 %v1048
        %1084 = vmatprep.subr.mxu0 0.0
        %1085 = vmatpush2.msra.mxu0 0.0
        %1086 = vmatprep.subr.mxu0 0.0
        %1087 = vmatpush2.msra.mxu0 0.0
        %1088 = vmatprep.subr.mxu0 0.0
        %1089 = vmatpush2.msra.mxu0 0.0
        %1090 = vmatprep.subr.mxu0 0.0
        %1091 = vmatpush2.msra.mxu0 0.0
        %1092 = vmatprep.subr.mxu0 0.0
        %1093 = vmatpush2.msra.mxu0 0.0
        %1094 = vmatprep.subr.mxu0 0.0
        %1095 = vmatpush2.msra.mxu0 0.0
        %1096 = vmatprep.subr.mxu0 0.0
        %1097 = vmatpush2.msra.mxu0 0.0
        %1098 = vmatprep.subr.mxu0 0.0
        %1099 = vmatpush2.msra.mxu0 0.0
        %1100 = vmatprep.subr.mxu0 0.0
        %1101 = vmatpush2.msra.mxu0 0.0
        %1102 = vmatprep.subr.mxu0 0.0
        %1103 = vmatpush2.msra.mxu0 0.0
        %1104 = vmatprep.subr.mxu0 0.0
        %1105 = vmatpush2.msra.mxu0 0.0
        %1106 = vmatprep.subr.mxu0 0.0
        %1107 = vmatpush2.msra.mxu0 0.0
        %1108 = vmatprep.subr.mxu0 0.0
        %1109 = vmatpush2.msra.mxu0 0.0
        %1110 = vmatprep.subr.mxu0 0.0
        %1111 = vmatpush2.msra.mxu0 0.0
        %1112 = vmatprep.subr.mxu0 0.0
        %1113 = vmatpush2.msra.mxu0 0.0
        %1114 = vmatprep.subr.mxu0 0.0
        %1115 = vmatpush2.msra.mxu0 0.0
        %1116 = vmatprep.mubr.f32.mxu0 0.0
        %1117 = vmatmul.mubr.f32.gmra.mxu0 %v384
        %v1118 = vpop.f32.mrf.mxu0
        %v1119 = vadd.f32 0.0, %v1118
        %v1120 = vpop.f32.mrf.mxu0
        %1121 = vmatprep.mubr.f32.mxu0 0.0
        %1122 = vmatmul.mubr.f32.gmra.mxu0 %v387
        %v1123 = vpop.f32.mrf.mxu0
        %v1124 = vadd.f32 0.0, %v1123
        %v1125 = vpop.f32.mrf.mxu0
        %1126 = vmatprep.mubr.f32.mxu0 0.0
        %1127 = vmatmul.mubr.f32.gmra.mxu0 %v390
        %v1128 = vpop.f32.mrf.mxu0
        %v1129 = vadd.f32 0.0, %v1128
        %v1130 = vpop.f32.mrf.mxu0
        %1131 = vmatprep.mubr.f32.mxu0 0.0
        %1132 = vmatmul.mubr.f32.gmra.mxu0 %v393
        %v1133 = vpop.f32.mrf.mxu0
        %v1134 = vadd.f32 0.0, %v1133
        %v1135 = vpop.f32.mrf.mxu0
        %1136 = vmatprep.mubr.f32.mxu0 0.0
        %1137 = vmatmul.mubr.f32.gmra.mxu0 %v396
        %v1138 = vpop.f32.mrf.mxu0
        %v1139 = vadd.f32 0.0, %v1138
        %v1140 = vpop.f32.mrf.mxu0
        %1141 = vmatprep.mubr.f32.mxu0 0.0
        %1142 = vmatmul.mubr.f32.gmra.mxu0 %v399
        %v1143 = vpop.f32.mrf.mxu0
        %v1144 = vadd.f32 0.0, %v1143
        %v1145 = vpop.f32.mrf.mxu0
        %1146 = vmatprep.mubr.f32.mxu0 0.0
        %1147 = vmatmul.mubr.f32.gmra.mxu0 %v402
        %v1148 = vpop.f32.mrf.mxu0
        %v1149 = vadd.f32 0.0, %v1148
        %v1150 = vpop.f32.mrf.mxu0
        %1151 = vmatprep.mubr.f32.mxu0 0.0
        %1152 = vmatmul.mubr.f32.gmra.mxu0 %v405
        %v1153 = vpop.f32.mrf.mxu0
        %v1154 = vadd.f32 0.0, %v1153
        %v1155 = vpop.f32.mrf.mxu0
        %1156 = vmatprep.mubr.f32.mxu0 0.0
        %1157 = vmatmul.mubr.f32.gmra.mxu0 %v408
        %v1158 = vpop.f32.mrf.mxu0
        %v1159 = vadd.f32 0.0, %v1158
        %v1160 = vpop.f32.mrf.mxu0
        %1161 = vmatprep.mubr.f32.mxu0 0.0
        %1162 = vmatmul.mubr.f32.gmra.mxu0 %v411
        %v1163 = vpop.f32.mrf.mxu0
        %v1164 = vadd.f32 0.0, %v1163
        %v1165 = vpop.f32.mrf.mxu0
        %1166 = vmatprep.mubr.f32.mxu0 0.0
        %1167 = vmatmul.mubr.f32.gmra.mxu0 %v414
        %v1168 = vpop.f32.mrf.mxu0
        %v1169 = vadd.f32 0.0, %v1168
        %v1170 = vpop.f32.mrf.mxu0
        %1171 = vmatprep.mubr.f32.mxu0 0.0
        %1172 = vmatmul.mubr.f32.gmra.mxu0 %v417
        %v1173 = vpop.f32.mrf.mxu0
        %v1174 = vadd.f32 0.0, %v1173
        %v1175 = vpop.f32.mrf.mxu0
        %1176 = vmatprep.mubr.f32.mxu0 0.0
        %1177 = vmatmul.mubr.f32.gmra.mxu0 %v420
        %v1178 = vpop.f32.mrf.mxu0
        %v1179 = vadd.f32 0.0, %v1178
        %v1180 = vpop.f32.mrf.mxu0
        %1181 = vmatprep.mubr.f32.mxu0 0.0
        %1182 = vmatmul.mubr.f32.gmra.mxu0 %v718
        %v1183 = vpop.f32.mrf.mxu0
        %v1184 = vadd.f32 0.0, %v1183
        %v1185 = vpop.f32.mrf.mxu0
        %1186 = vmatprep.mubr.f32.mxu0 0.0
        %1187 = vmatmul.mubr.f32.gmra.mxu0 %v375
        %v1188 = vpop.f32.mrf.mxu0
        %v1189 = vadd.f32 0.0, %v1188
        %v1190 = vpop.f32.mrf.mxu0
        %1191 = vmatprep.mubr.f32.mxu0 0.0
        %1192 = vmatmul.mubr.f32.gmra.mxu0 %v375
        %v1193 = vpop.f32.mrf.mxu0
        %v1194 = vadd.f32 0.0, %v1193
        %v1195 = vpop.f32.mrf.mxu0
        %1196 = vdwg.mxu0
        %v1197 = vadd.f32 %v1031, %v1119
        %v1198 = vadd.f32 %v1032, %v1124
        %v1199 = vadd.f32 %v1033, %v1129
        %v1200 = vadd.f32 %v1034, %v1134
        %v1201 = vadd.f32 %v1035, %v1139
        %v1202 = vadd.f32 %v1036, %v1144
        %v1203 = vadd.f32 %v1037, %v1149
        %v1204 = vadd.f32 %v1038, %v1154
        %v1205 = vadd.f32 %v1039, %v1159
        %v1206 = vadd.f32 %v1040, %v1164
        %v1207 = vadd.f32 %v1041, %v1169
        %v1208 = vadd.f32 %v1042, %v1174
        %v1209 = vadd.f32 %v1043, %v1179
        %v1210 = vadd.f32 %v1044, %v1184
        %v1211 = vadd.f32 %v1045, %v1189
        %v1212 = vadd.f32 %v1046, %v1194
        %v1213 = vld [vmem:[%s3] sm:$0x1]
        %v1215 = vlaneseq
        %v1216 = vshrl.u32 %v1215, 7
        %v1217 = vsub.s32 0, %v1216
        %v1218 = vrot.slane %v1213, %v1217
        %v1220 = vadd.f32 %v1197, %v1218
        %v1221 = vadd.f32 %v1198, %v1218
        %v1222 = vadd.f32 %v1199, %v1218
        %v1223 = vadd.f32 %v1200, %v1218
        %v1224 = vadd.f32 %v1201, %v1218
        %v1225 = vadd.f32 %v1202, %v1218
        %v1226 = vadd.f32 %v1203, %v1218
        %v1227 = vadd.f32 %v1204, %v1218
        %v1228 = vadd.f32 %v1205, %v1218
        %v1229 = vadd.f32 %v1206, %v1218
        %v1230 = vadd.f32 %v1207, %v1218
        %v1231 = vadd.f32 %v1208, %v1218
        %v1232 = vadd.f32 %v1209, %v1218
        %v1233 = vadd.f32 %v1210, %v1218
        %v1234 = vadd.f32 %v1211, %v1218
        %v1235 = vadd.f32 %v1212, %v1218
        %1236 = vst [vmem:[#allocation2] sm:$0xff] %v1220
        %1237 = vst [vmem:[#allocation2 + $0x8] sm:$0xff] %v1221
        %1238 = vst [vmem:[#allocation2 + $0x10] sm:$0xff] %v1222
        %1239 = vst [vmem:[#allocation2 + $0x18] sm:$0xff] %v1223
        %1240 = vst [vmem:[#allocation2 + $0x20] sm:$0xff] %v1224
        %1241 = vst [vmem:[#allocation2 + $0x28] sm:$0xff] %v1225
        %1242 = vst [vmem:[#allocation2 + $0x30] sm:$0xff] %v1226
        %1243 = vst [vmem:[#allocation2 + $0x38] sm:$0xff] %v1227
        %1244 = vst [vmem:[#allocation2 + $0x40] sm:$0xff] %v1228
        %1245 = vst [vmem:[#allocation2 + $0x48] sm:$0xff] %v1229
        %1246 = vst [vmem:[#allocation2 + $0x50] sm:$0xff] %v1230
        %1247 = vst [vmem:[#allocation2 + $0x58] sm:$0xff] %v1231
        %1248 = vst [vmem:[#allocation2 + $0x60] sm:$0xff] %v1232
        %1249 = vst [vmem:[#allocation2 + $0x68] sm:$0xff] %v1233
        %1250 = vst [vmem:[#allocation2 + $0x70] sm:$0xff] %v1234
        %1251 = vst [vmem:[#allocation2 + $0x78] sm:$0xff] %v1235
        %v1252 = vld [vmem:[%s342] sm:$0xff]
        %v1253 = vld [vmem:[%s4] sm:$0xff]
        %v1254 = vld [vmem:[%s4 + $0x8] sm:$0xff]
        %v1255 = vld [vmem:[%s4 + $0x10] sm:$0xff]
        %v1256 = vld [vmem:[%s4 + $0x18] sm:$0xff]
        %v1257 = vld [vmem:[#allocation2] sm:$0xff]
        %1258 = vmatprep.subr.mxu0 0.0
        %1259 = vmatpush1.msra.mxu0 0.0
        %1260 = vmatprep.subr.mxu0 0.0
        %1261 = vmatpush1.msra.mxu0 0.0
        %1262 = vmatprep.subr.mxu0 0.0
        %1263 = vmatpush1.msra.mxu0 0.0
        %1264 = vmatprep.subr.mxu0 0.0
        %1265 = vmatpush1.msra.mxu0 0.0
        %1266 = vmatprep.subr.mxu0 0.0
        %1267 = vmatpush1.msra.mxu0 0.0
        %1268 = vmatprep.subr.mxu0 0.0
        %1269 = vmatpush1.msra.mxu0 0.0
        %1270 = vmatprep.subr.mxu0 0.0
        %1271 = vmatpush1.msra.mxu0 0.0
        %1272 = vmatprep.subr.mxu0 0.0
        %1273 = vmatpush1.msra.mxu0 0.0
        %1274 = vmatprep.subr.mxu0 0.0
        %1275 = vmatpush1.msra.mxu0 0.0
        %1276 = vmatprep.subr.mxu0 0.0
        %1277 = vmatpush1.msra.mxu0 0.0
        %1278 = vmatprep.subr.mxu0 0.0
        %1279 = vmatpush1.msra.mxu0 0.0
        %1280 = vmatprep.subr.mxu0 0.0
        %1281 = vmatpush1.msra.mxu0 0.0
        %1282 = vmatprep.subr.mxu0 0.0
        %1283 = vmatpush1.msra.mxu0 %v1256
        %1284 = vmatprep.subr.mxu0 0.0
        %1285 = vmatpush1.msra.mxu0 %v1255
        %1286 = vmatprep.subr.mxu0 0.0
        %1287 = vmatpush1.msra.mxu0 %v1254
        %1288 = vmatprep.subr.mxu0 0.0
        %1289 = vmatpush1.msra.mxu0 %v1253
        %1290 = vmatprep.subr.mxu0 0.0
        %1291 = vmatpush2.msra.mxu0 0.0
        %1292 = vmatprep.subr.mxu0 0.0
        %1293 = vmatpush2.msra.mxu0 0.0
        %1294 = vmatprep.subr.mxu0 0.0
        %1295 = vmatpush2.msra.mxu0 0.0
        %1296 = vmatprep.subr.mxu0 0.0
        %1297 = vmatpush2.msra.mxu0 0.0
        %1298 = vmatprep.subr.mxu0 0.0
        %1299 = vmatpush2.msra.mxu0 0.0
        %1300 = vmatprep.subr.mxu0 0.0
        %1301 = vmatpush2.msra.mxu0 0.0
        %1302 = vmatprep.subr.mxu0 0.0
        %1303 = vmatpush2.msra.mxu0 0.0
        %1304 = vmatprep.subr.mxu0 0.0
        %1305 = vmatpush2.msra.mxu0 0.0
        %1306 = vmatprep.subr.mxu0 0.0
        %1307 = vmatpush2.msra.mxu0 0.0
        %1308 = vmatprep.subr.mxu0 0.0
        %1309 = vmatpush2.msra.mxu0 0.0
        %1310 = vmatprep.subr.mxu0 0.0
        %1311 = vmatpush2.msra.mxu0 0.0
        %1312 = vmatprep.subr.mxu0 0.0
        %1313 = vmatpush2.msra.mxu0 0.0
        %1314 = vmatprep.subr.mxu0 0.0
        %1315 = vmatpush2.msra.mxu0 0.0
        %1316 = vmatprep.subr.mxu0 0.0
        %1317 = vmatpush2.msra.mxu0 0.0
        %1318 = vmatprep.subr.mxu0 0.0
        %1319 = vmatpush2.msra.mxu0 0.0
        %1320 = vmatprep.subr.mxu0 0.0
        %1321 = vmatpush2.msra.mxu0 0.0
        %1322 = vmatprep.mubr.f32.mxu0 0.0
        %1323 = vmatmul.mubr.f32.gmra.mxu0 %v375
        %v1324 = vpop.f32.mrf.mxu0
        %v1325 = vadd.f32 0.0, %v1324
        %v1326 = vpop.f32.mrf.mxu0
        %1327 = vdwg.mxu0
        %v1328 = vadd.f32 %v1257, %v1325
        %v1329 = vxor.u32 %v1328, 2147483648
        %v1330 = vmul.f32 %v1329, 1.442695
        %v1331 = vpow.pop %v1330
        %v1332 = vadd.f32 %v1331, 1.0
        %v1333 = vrcp.pop %v1332
        %v1334 = vmul.f32 1.0, %v1333
        %v1335 = vtanh.pop %v1328
        %v1336 = vmul.f32 %v1334, 0.0
        %1338 = vrot.lane.b32.xlu0 %v1335, 64
        %v1339 = vpop.permute.xlu0 %1338
        %v1341 = vmul.f32 %v1334, %v1339
        %1343 = vrot.lane.b32.xlu0 %v1341, 32
        %v1344 = vpop.permute.xlu0 %1343
        %v1346 = vadd.f32 %v1336, %v1344
        %v1347 = vtanh.pop %v1346
        %1349 = vrot.lane.b32.xlu0 %v1347, 64
        %v1350 = vpop.permute.xlu0 %1349
        %v1352 = vmul.f32 %v1334, %v1350
        %vm1353 = vcmp.gt.s32.totalorder %v1252, 0
        %v1354 = vsel %vm1353, 1, 0
        %1355 = vset.pattern.permute.xlu0 0
        %1356 = vperm.xlu0 %1355, %v1354
        %v1357 = vpop.permute.xlu0 %1356
        %vm1358 = vcmp.eq.s32.totalorder %v1357, 1
        %v1359 = vsel %vm1358, %v1352, 0.0
        %v1360 = vsel %vm1358, %v1346, 0.0
        %1362 = vrot.lane.b32.xlu0 %v1359, 32
        %v1363 = vpop.permute.xlu0 %1362
        %1365 = vst.msk [vmem:[#allocation3] sm:$0xff] %vm373, %v1363
        %v1366 = vld [vmem:[#allocation2 + $0x8] sm:$0xff]
        %v1367 = vsel %vm373, %v1363, 0
        %1369 = vmatprep.subr.mxu0 0.0
        %1370 = vmatpush1.msra.mxu0 0.0
        %1371 = vmatprep.subr.mxu0 0.0
        %1372 = vmatpush1.msra.mxu0 0.0
        %1373 = vmatprep.subr.mxu0 0.0
        %1374 = vmatpush1.msra.mxu0 0.0
        %1375 = vmatprep.subr.mxu0 0.0
        %1376 = vmatpush1.msra.mxu0 0.0
        %1377 = vmatprep.subr.mxu0 0.0
        %1378 = vmatpush1.msra.mxu0 0.0
        %1379 = vmatprep.subr.mxu0 0.0
        %1380 = vmatpush1.msra.mxu0 0.0
        %1381 = vmatprep.subr.mxu0 0.0
        %1382 = vmatpush1.msra.mxu0 0.0
        %1383 = vmatprep.subr.mxu0 0.0
        %1384 = vmatpush1.msra.mxu0 0.0
        %1385 = vmatprep.subr.mxu0 0.0
        %1386 = vmatpush1.msra.mxu0 0.0
        %1387 = vmatprep.subr.mxu0 0.0
        %1388 = vmatpush1.msra.mxu0 0.0
        %1389 = vmatprep.subr.mxu0 0.0
        %1390 = vmatpush1.msra.mxu0 0.0
        %1391 = vmatprep.subr.mxu0 0.0
        %1392 = vmatpush1.msra.mxu0 0.0
        %1393 = vmatprep.subr.mxu0 0.0
        %1394 = vmatpush1.msra.mxu0 %v1256
        %1395 = vmatprep.subr.mxu0 0.0
        %1396 = vmatpush1.msra.mxu0 %v1255
        %1397 = vmatprep.subr.mxu0 0.0
        %1398 = vmatpush1.msra.mxu0 %v1254
        %1399 = vmatprep.subr.mxu0 0.0
        %1400 = vmatpush1.msra.mxu0 %v1253
        %1401 = vmatprep.subr.mxu0 0.0
        %1402 = vmatpush2.msra.mxu0 0.0
        %1403 = vmatprep.subr.mxu0 0.0
        %1404 = vmatpush2.msra.mxu0 0.0
        %1405 = vmatprep.subr.mxu0 0.0
        %1406 = vmatpush2.msra.mxu0 0.0
        %1407 = vmatprep.subr.mxu0 0.0
        %1408 = vmatpush2.msra.mxu0 0.0
        %1409 = vmatprep.subr.mxu0 0.0
        %1410 = vmatpush2.msra.mxu0 0.0
        %1411 = vmatprep.subr.mxu0 0.0
        %1412 = vmatpush2.msra.mxu0 0.0
        %1413 = vmatprep.subr.mxu0 0.0
        %1414 = vmatpush2.msra.mxu0 0.0
        %1415 = vmatprep.subr.mxu0 0.0
        %1416 = vmatpush2.msra.mxu0 0.0
        %1417 = vmatprep.subr.mxu0 0.0
        %1418 = vmatpush2.msra.mxu0 0.0
        %1419 = vmatprep.subr.mxu0 0.0
        %1420 = vmatpush2.msra.mxu0 0.0
        %1421 = vmatprep.subr.mxu0 0.0
        %1422 = vmatpush2.msra.mxu0 0.0
        %1423 = vmatprep.subr.mxu0 0.0
        %1424 = vmatpush2.msra.mxu0 0.0
        %1425 = vmatprep.subr.mxu0 0.0
        %1426 = vmatpush2.msra.mxu0 0.0
        %1427 = vmatprep.subr.mxu0 0.0
        %1428 = vmatpush2.msra.mxu0 0.0
        %1429 = vmatprep.subr.mxu0 0.0
        %1430 = vmatpush2.msra.mxu0 0.0
        %1431 = vmatprep.subr.mxu0 0.0
        %1432 = vmatpush2.msra.mxu0 0.0
        %1433 = vmatprep.mubr.f32.mxu0 0.0
        %1434 = vmatmul.mubr.f32.gmra.mxu0 %v1367
        %v1435 = vpop.f32.mrf.mxu0
        %v1436 = vadd.f32 0.0, %v1435
        %v1437 = vpop.f32.mrf.mxu0
        %1438 = vdwg.mxu0
        %v1439 = vadd.f32 %v1366, %v1436
        %v1440 = vxor.u32 %v1439, 2147483648
        %v1441 = vmul.f32 %v1440, 1.442695
        %v1442 = vpow.pop %v1441
        %v1443 = vadd.f32 %v1442, 1.0
        %v1444 = vrcp.pop %v1443
        %v1445 = vmul.f32 1.0, %v1444
        %v1446 = vtanh.pop %v1439
        %v1447 = vmul.f32 %v1445, %v1360
        %1449 = vrot.lane.b32.xlu0 %v1446, 64
        %v1450 = vpop.permute.xlu0 %1449
        %v1452 = vmul.f32 %v1445, %v1450
        %1454 = vrot.lane.b32.xlu0 %v1452, 32
        %v1455 = vpop.permute.xlu0 %1454
        %v1457 = vadd.f32 %v1447, %v1455
        %v1458 = vtanh.pop %v1457
        %1460 = vrot.lane.b32.xlu0 %v1458, 64
        %v1461 = vpop.permute.xlu0 %1460
        %v1463 = vmul.f32 %v1445, %v1461
        %vm1464 = vcmp.gt.s32.totalorder %v1252, 1
        %v1465 = vsel %vm1464, 1, 0
        %1466 = vset.pattern.permute.xlu0 0
        %1467 = vperm.xlu0 %1466, %v1465
        %v1468 = vpop.permute.xlu0 %1467
        %vm1469 = vcmp.eq.s32.totalorder %v1468, 1
        %v1470 = vsel %vm1469, %v1463, %v1359
        %v1471 = vsel %vm1469, %v1457, %v1360
        %v1472 = vsel %vm1469, %v1463, 0.0
        %1474 = vrot.lane.b32.xlu0 %v1472, 32
        %v1475 = vpop.permute.xlu0 %1474
        %1477 = vst.msk [vmem:[#allocation3 + $0x8] sm:$0xff] %vm373, %v1475
        %v1478 = vld [vmem:[#allocation2 + $0x10] sm:$0xff]
        %1480 = vrot.lane.b32.xlu0 %v1470, 32
        %v1481 = vpop.permute.xlu0 %1480
        %v1482 = vsel %vm373, %v1481, 0
        %1484 = vmatprep.subr.mxu0 0.0
        %1485 = vmatpush1.msra.mxu0 0.0
        %1486 = vmatprep.subr.mxu0 0.0
        %1487 = vmatpush1.msra.mxu0 0.0
        %1488 = vmatprep.subr.mxu0 0.0
        %1489 = vmatpush1.msra.mxu0 0.0
        %1490 = vmatprep.subr.mxu0 0.0
        %1491 = vmatpush1.msra.mxu0 0.0
        %1492 = vmatprep.subr.mxu0 0.0
        %1493 = vmatpush1.msra.mxu0 0.0
        %1494 = vmatprep.subr.mxu0 0.0
        %1495 = vmatpush1.msra.mxu0 0.0
        %1496 = vmatprep.subr.mxu0 0.0
        %1497 = vmatpush1.msra.mxu0 0.0
        %1498 = vmatprep.subr.mxu0 0.0
        %1499 = vmatpush1.msra.mxu0 0.0
        %1500 = vmatprep.subr.mxu0 0.0
        %1501 = vmatpush1.msra.mxu0 0.0
        %1502 = vmatprep.subr.mxu0 0.0
        %1503 = vmatpush1.msra.mxu0 0.0
        %1504 = vmatprep.subr.mxu0 0.0
        %1505 = vmatpush1.msra.mxu0 0.0
        %1506 = vmatprep.subr.mxu0 0.0
        %1507 = vmatpush1.msra.mxu0 0.0
        %1508 = vmatprep.subr.mxu0 0.0
        %1509 = vmatpush1.msra.mxu0 %v1256
        %1510 = vmatprep.subr.mxu0 0.0
        %1511 = vmatpush1.msra.mxu0 %v1255
        %1512 = vmatprep.subr.mxu0 0.0
        %1513 = vmatpush1.msra.mxu0 %v1254
        %1514 = vmatprep.subr.mxu0 0.0
        %1515 = vmatpush1.msra.mxu0 %v1253
        %1516 = vmatprep.subr.mxu0 0.0
        %1517 = vmatpush2.msra.mxu0 0.0
        %1518 = vmatprep.subr.mxu0 0.0
        %1519 = vmatpush2.msra.mxu0 0.0
        %1520 = vmatprep.subr.mxu0 0.0
        %1521 = vmatpush2.msra.mxu0 0.0
        %1522 = vmatprep.subr.mxu0 0.0
        %1523 = vmatpush2.msra.mxu0 0.0
        %1524 = vmatprep.subr.mxu0 0.0
        %1525 = vmatpush2.msra.mxu0 0.0
        %1526 = vmatprep.subr.mxu0 0.0
        %1527 = vmatpush2.msra.mxu0 0.0
        %1528 = vmatprep.subr.mxu0 0.0
        %1529 = vmatpush2.msra.mxu0 0.0
        %1530 = vmatprep.subr.mxu0 0.0
        %1531 = vmatpush2.msra.mxu0 0.0
        %1532 = vmatprep.subr.mxu0 0.0
        %1533 = vmatpush2.msra.mxu0 0.0
        %1534 = vmatprep.subr.mxu0 0.0
        %1535 = vmatpush2.msra.mxu0 0.0
        %1536 = vmatprep.subr.mxu0 0.0
        %1537 = vmatpush2.msra.mxu0 0.0
        %1538 = vmatprep.subr.mxu0 0.0
        %1539 = vmatpush2.msra.mxu0 0.0
        %1540 = vmatprep.subr.mxu0 0.0
        %1541 = vmatpush2.msra.mxu0 0.0
        %1542 = vmatprep.subr.mxu0 0.0
        %1543 = vmatpush2.msra.mxu0 0.0
        %1544 = vmatprep.subr.mxu0 0.0
        %1545 = vmatpush2.msra.mxu0 0.0
        %1546 = vmatprep.subr.mxu0 0.0
        %1547 = vmatpush2.msra.mxu0 0.0
        %1548 = vmatprep.mubr.f32.mxu0 0.0
        %1549 = vmatmul.mubr.f32.gmra.mxu0 %v1482
        %v1550 = vpop.f32.mrf.mxu0
        %v1551 = vadd.f32 0.0, %v1550
        %v1552 = vpop.f32.mrf.mxu0
        %1553 = vdwg.mxu0
        %v1554 = vadd.f32 %v1478, %v1551
        %v1555 = vxor.u32 %v1554, 2147483648
        %v1556 = vmul.f32 %v1555, 1.442695
        %v1557 = vpow.pop %v1556
        %v1558 = vadd.f32 %v1557, 1.0
        %v1559 = vrcp.pop %v1558
        %v1560 = vmul.f32 1.0, %v1559
        %v1561 = vtanh.pop %v1554
        %v1562 = vmul.f32 %v1560, %v1471
        %1564 = vrot.lane.b32.xlu0 %v1561, 64
        %v1565 = vpop.permute.xlu0 %1564
        %v1567 = vmul.f32 %v1560, %v1565
        %1569 = vrot.lane.b32.xlu0 %v1567, 32
        %v1570 = vpop.permute.xlu0 %1569
        %v1572 = vadd.f32 %v1562, %v1570
        %v1573 = vtanh.pop %v1572
        %1575 = vrot.lane.b32.xlu0 %v1573, 64
        %v1576 = vpop.permute.xlu0 %1575
        %v1578 = vmul.f32 %v1560, %v1576
        %vm1579 = vcmp.gt.s32.totalorder %v1252, 2
        %v1580 = vsel %vm1579, 1, 0
        %1581 = vset.pattern.permute.xlu0 0
        %1582 = vperm.xlu0 %1581, %v1580
        %v1583 = vpop.permute.xlu0 %1582
        %vm1584 = vcmp.eq.s32.totalorder %v1583, 1
        %v1585 = vsel %vm1584, %v1578, %v1470
        %v1586 = vsel %vm1584, %v1572, %v1471
        %v1587 = vsel %vm1584, %v1578, 0.0
        %1589 = vrot.lane.b32.xlu0 %v1587, 32
        %v1590 = vpop.permute.xlu0 %1589
        %1592 = vst.msk [vmem:[#allocation3 + $0x10] sm:$0xff] %vm373, %v1590
        %v1593 = vld [vmem:[#allocation2 + $0x18] sm:$0xff]
        %1595 = vrot.lane.b32.xlu0 %v1585, 32
        %v1596 = vpop.permute.xlu0 %1595
        %v1597 = vsel %vm373, %v1596, 0
        %1599 = vmatprep.subr.mxu0 0.0
        %1600 = vmatpush1.msra.mxu0 0.0
        %1601 = vmatprep.subr.mxu0 0.0
        %1602 = vmatpush1.msra.mxu0 0.0
        %1603 = vmatprep.subr.mxu0 0.0
        %1604 = vmatpush1.msra.mxu0 0.0
        %1605 = vmatprep.subr.mxu0 0.0
        %1606 = vmatpush1.msra.mxu0 0.0
        %1607 = vmatprep.subr.mxu0 0.0
        %1608 = vmatpush1.msra.mxu0 0.0
        %1609 = vmatprep.subr.mxu0 0.0
        %1610 = vmatpush1.msra.mxu0 0.0
        %1611 = vmatprep.subr.mxu0 0.0
        %1612 = vmatpush1.msra.mxu0 0.0
        %1613 = vmatprep.subr.mxu0 0.0
        %1614 = vmatpush1.msra.mxu0 0.0
        %1615 = vmatprep.subr.mxu0 0.0
        %1616 = vmatpush1.msra.mxu0 0.0
        %1617 = vmatprep.subr.mxu0 0.0
        %1618 = vmatpush1.msra.mxu0 0.0
        %1619 = vmatprep.subr.mxu0 0.0
        %1620 = vmatpush1.msra.mxu0 0.0
        %1621 = vmatprep.subr.mxu0 0.0
        %1622 = vmatpush1.msra.mxu0 0.0
        %1623 = vmatprep.subr.mxu0 0.0
        %1624 = vmatpush1.msra.mxu0 %v1256
        %1625 = vmatprep.subr.mxu0 0.0
        %1626 = vmatpush1.msra.mxu0 %v1255
        %1627 = vmatprep.subr.mxu0 0.0
        %1628 = vmatpush1.msra.mxu0 %v1254
        %1629 = vmatprep.subr.mxu0 0.0
        %1630 = vmatpush1.msra.mxu0 %v1253
        %1631 = vmatprep.subr.mxu0 0.0
        %1632 = vmatpush2.msra.mxu0 0.0
        %1633 = vmatprep.subr.mxu0 0.0
        %1634 = vmatpush2.msra.mxu0 0.0
        %1635 = vmatprep.subr.mxu0 0.0
        %1636 = vmatpush2.msra.mxu0 0.0
        %1637 = vmatprep.subr.mxu0 0.0
        %1638 = vmatpush2.msra.mxu0 0.0
        %1639 = vmatprep.subr.mxu0 0.0
        %1640 = vmatpush2.msra.mxu0 0.0
        %1641 = vmatprep.subr.mxu0 0.0
        %1642 = vmatpush2.msra.mxu0 0.0
        %1643 = vmatprep.subr.mxu0 0.0
        %1644 = vmatpush2.msra.mxu0 0.0
        %1645 = vmatprep.subr.mxu0 0.0
        %1646 = vmatpush2.msra.mxu0 0.0
        %1647 = vmatprep.subr.mxu0 0.0
        %1648 = vmatpush2.msra.mxu0 0.0
        %1649 = vmatprep.subr.mxu0 0.0
        %1650 = vmatpush2.msra.mxu0 0.0
        %1651 = vmatprep.subr.mxu0 0.0
        %1652 = vmatpush2.msra.mxu0 0.0
        %1653 = vmatprep.subr.mxu0 0.0
        %1654 = vmatpush2.msra.mxu0 0.0
        %1655 = vmatprep.subr.mxu0 0.0
        %1656 = vmatpush2.msra.mxu0 0.0
        %1657 = vmatprep.subr.mxu0 0.0
        %1658 = vmatpush2.msra.mxu0 0.0
        %1659 = vmatprep.subr.mxu0 0.0
        %1660 = vmatpush2.msra.mxu0 0.0
        %1661 = vmatprep.subr.mxu0 0.0
        %1662 = vmatpush2.msra.mxu0 0.0
        %1663 = vmatprep.mubr.f32.mxu0 0.0
        %1664 = vmatmul.mubr.f32.gmra.mxu0 %v1597
        %v1665 = vpop.f32.mrf.mxu0
        %v1666 = vadd.f32 0.0, %v1665
        %v1667 = vpop.f32.mrf.mxu0
        %1668 = vdwg.mxu0
        %v1669 = vadd.f32 %v1593, %v1666
        %v1670 = vxor.u32 %v1669, 2147483648
        %v1671 = vmul.f32 %v1670, 1.442695
        %v1672 = vpow.pop %v1671
        %v1673 = vadd.f32 %v1672, 1.0
        %v1674 = vrcp.pop %v1673
        %v1675 = vmul.f32 1.0, %v1674
        %v1676 = vtanh.pop %v1669
        %v1677 = vmul.f32 %v1675, %v1586
        %1679 = vrot.lane.b32.xlu0 %v1676, 64
        %v1680 = vpop.permute.xlu0 %1679
        %v1682 = vmul.f32 %v1675, %v1680
        %1684 = vrot.lane.b32.xlu0 %v1682, 32
        %v1685 = vpop.permute.xlu0 %1684
        %v1687 = vadd.f32 %v1677, %v1685
        %v1688 = vtanh.pop %v1687
        %1690 = vrot.lane.b32.xlu0 %v1688, 64
        %v1691 = vpop.permute.xlu0 %1690
        %v1693 = vmul.f32 %v1675, %v1691
        %vm1694 = vcmp.gt.s32.totalorder %v1252, 3
        %v1695 = vsel %vm1694, 1, 0
        %1696 = vset.pattern.permute.xlu0 0
        %1697 = vperm.xlu0 %1696, %v1695
        %v1698 = vpop.permute.xlu0 %1697
        %vm1699 = vcmp.eq.s32.totalorder %v1698, 1
        %v1700 = vsel %vm1699, %v1693, %v1585
        %v1701 = vsel %vm1699, %v1687, %v1586
        %v1702 = vsel %vm1699, %v1693, 0.0
        %1704 = vrot.lane.b32.xlu0 %v1702, 32
        %v1705 = vpop.permute.xlu0 %1704
        %1707 = vst.msk [vmem:[#allocation3 + $0x18] sm:$0xff] %vm373, %v1705
        %v1708 = vld [vmem:[#allocation2 + $0x20] sm:$0xff]
        %1710 = vrot.lane.b32.xlu0 %v1700, 32
        %v1711 = vpop.permute.xlu0 %1710
        %v1712 = vsel %vm373, %v1711, 0
        %1714 = vmatprep.subr.mxu0 0.0
        %1715 = vmatpush1.msra.mxu0 0.0
        %1716 = vmatprep.subr.mxu0 0.0
        %1717 = vmatpush1.msra.mxu0 0.0
        %1718 = vmatprep.subr.mxu0 0.0
        %1719 = vmatpush1.msra.mxu0 0.0
        %1720 = vmatprep.subr.mxu0 0.0
        %1721 = vmatpush1.msra.mxu0 0.0
        %1722 = vmatprep.subr.mxu0 0.0
        %1723 = vmatpush1.msra.mxu0 0.0
        %1724 = vmatprep.subr.mxu0 0.0
        %1725 = vmatpush1.msra.mxu0 0.0
        %1726 = vmatprep.subr.mxu0 0.0
        %1727 = vmatpush1.msra.mxu0 0.0
        %1728 = vmatprep.subr.mxu0 0.0
        %1729 = vmatpush1.msra.mxu0 0.0
        %1730 = vmatprep.subr.mxu0 0.0
        %1731 = vmatpush1.msra.mxu0 0.0
        %1732 = vmatprep.subr.mxu0 0.0
        %1733 = vmatpush1.msra.mxu0 0.0
        %1734 = vmatprep.subr.mxu0 0.0
        %1735 = vmatpush1.msra.mxu0 0.0
        %1736 = vmatprep.subr.mxu0 0.0
        %1737 = vmatpush1.msra.mxu0 0.0
        %1738 = vmatprep.subr.mxu0 0.0
        %1739 = vmatpush1.msra.mxu0 %v1256
        %1740 = vmatprep.subr.mxu0 0.0
        %1741 = vmatpush1.msra.mxu0 %v1255
        %1742 = vmatprep.subr.mxu0 0.0
        %1743 = vmatpush1.msra.mxu0 %v1254
        %1744 = vmatprep.subr.mxu0 0.0
        %1745 = vmatpush1.msra.mxu0 %v1253
        %1746 = vmatprep.subr.mxu0 0.0
        %1747 = vmatpush2.msra.mxu0 0.0
        %1748 = vmatprep.subr.mxu0 0.0
        %1749 = vmatpush2.msra.mxu0 0.0
        %1750 = vmatprep.subr.mxu0 0.0
        %1751 = vmatpush2.msra.mxu0 0.0
        %1752 = vmatprep.subr.mxu0 0.0
        %1753 = vmatpush2.msra.mxu0 0.0
        %1754 = vmatprep.subr.mxu0 0.0
        %1755 = vmatpush2.msra.mxu0 0.0
        %1756 = vmatprep.subr.mxu0 0.0
        %1757 = vmatpush2.msra.mxu0 0.0
        %1758 = vmatprep.subr.mxu0 0.0
        %1759 = vmatpush2.msra.mxu0 0.0
        %1760 = vmatprep.subr.mxu0 0.0
        %1761 = vmatpush2.msra.mxu0 0.0
        %1762 = vmatprep.subr.mxu0 0.0
        %1763 = vmatpush2.msra.mxu0 0.0
        %1764 = vmatprep.subr.mxu0 0.0
        %1765 = vmatpush2.msra.mxu0 0.0
        %1766 = vmatprep.subr.mxu0 0.0
        %1767 = vmatpush2.msra.mxu0 0.0
        %1768 = vmatprep.subr.mxu0 0.0
        %1769 = vmatpush2.msra.mxu0 0.0
        %1770 = vmatprep.subr.mxu0 0.0
        %1771 = vmatpush2.msra.mxu0 0.0
        %1772 = vmatprep.subr.mxu0 0.0
        %1773 = vmatpush2.msra.mxu0 0.0
        %1774 = vmatprep.subr.mxu0 0.0
        %1775 = vmatpush2.msra.mxu0 0.0
        %1776 = vmatprep.subr.mxu0 0.0
        %1777 = vmatpush2.msra.mxu0 0.0
        %1778 = vmatprep.mubr.f32.mxu0 0.0
        %1779 = vmatmul.mubr.f32.gmra.mxu0 %v1712
        %v1780 = vpop.f32.mrf.mxu0
        %v1781 = vadd.f32 0.0, %v1780
        %v1782 = vpop.f32.mrf.mxu0
        %1783 = vdwg.mxu0
        %v1784 = vadd.f32 %v1708, %v1781
        %v1785 = vxor.u32 %v1784, 2147483648
        %v1786 = vmul.f32 %v1785, 1.442695
        %v1787 = vpow.pop %v1786
        %v1788 = vadd.f32 %v1787, 1.0
        %v1789 = vrcp.pop %v1788
        %v1790 = vmul.f32 1.0, %v1789
        %v1791 = vtanh.pop %v1784
        %v1792 = vmul.f32 %v1790, %v1701
        %1794 = vrot.lane.b32.xlu0 %v1791, 64
        %v1795 = vpop.permute.xlu0 %1794
        %v1797 = vmul.f32 %v1790, %v1795
        %1799 = vrot.lane.b32.xlu0 %v1797, 32
        %v1800 = vpop.permute.xlu0 %1799
        %v1802 = vadd.f32 %v1792, %v1800
        %v1803 = vtanh.pop %v1802
        %1805 = vrot.lane.b32.xlu0 %v1803, 64
        %v1806 = vpop.permute.xlu0 %1805
        %v1808 = vmul.f32 %v1790, %v1806
        %vm1809 = vcmp.gt.s32.totalorder %v1252, 4
        %v1810 = vsel %vm1809, 1, 0
        %1811 = vset.pattern.permute.xlu0 0
        %1812 = vperm.xlu0 %1811, %v1810
        %v1813 = vpop.permute.xlu0 %1812
        %vm1814 = vcmp.eq.s32.totalorder %v1813, 1
        %v1815 = vsel %vm1814, %v1808, %v1700
        %v1816 = vsel %vm1814, %v1802, %v1701
        %v1817 = vsel %vm1814, %v1808, 0.0
        %1819 = vrot.lane.b32.xlu0 %v1817, 32
        %v1820 = vpop.permute.xlu0 %1819
        %1822 = vst.msk [vmem:[#allocation3 + $0x20] sm:$0xff] %vm373, %v1820
        %v1823 = vld [vmem:[#allocation2 + $0x28] sm:$0xff]
        %1825 = vrot.lane.b32.xlu0 %v1815, 32
        %v1826 = vpop.permute.xlu0 %1825
        %v1827 = vsel %vm373, %v1826, 0
        %1829 = vmatprep.subr.mxu0 0.0
        %1830 = vmatpush1.msra.mxu0 0.0
        %1831 = vmatprep.subr.mxu0 0.0
        %1832 = vmatpush1.msra.mxu0 0.0
        %1833 = vmatprep.subr.mxu0 0.0
        %1834 = vmatpush1.msra.mxu0 0.0
        %1835 = vmatprep.subr.mxu0 0.0
        %1836 = vmatpush1.msra.mxu0 0.0
        %1837 = vmatprep.subr.mxu0 0.0
        %1838 = vmatpush1.msra.mxu0 0.0
        %1839 = vmatprep.subr.mxu0 0.0
        %1840 = vmatpush1.msra.mxu0 0.0
        %1841 = vmatprep.subr.mxu0 0.0
        %1842 = vmatpush1.msra.mxu0 0.0
        %1843 = vmatprep.subr.mxu0 0.0
        %1844 = vmatpush1.msra.mxu0 0.0
        %1845 = vmatprep.subr.mxu0 0.0
        %1846 = vmatpush1.msra.mxu0 0.0
        %1847 = vmatprep.subr.mxu0 0.0
        %1848 = vmatpush1.msra.mxu0 0.0
        %1849 = vmatprep.subr.mxu0 0.0
        %1850 = vmatpush1.msra.mxu0 0.0
        %1851 = vmatprep.subr.mxu0 0.0
        %1852 = vmatpush1.msra.mxu0 0.0
        %1853 = vmatprep.subr.mxu0 0.0
        %1854 = vmatpush1.msra.mxu0 %v1256
        %1855 = vmatprep.subr.mxu0 0.0
        %1856 = vmatpush1.msra.mxu0 %v1255
        %1857 = vmatprep.subr.mxu0 0.0
        %1858 = vmatpush1.msra.mxu0 %v1254
        %1859 = vmatprep.subr.mxu0 0.0
        %1860 = vmatpush1.msra.mxu0 %v1253
        %1861 = vmatprep.subr.mxu0 0.0
        %1862 = vmatpush2.msra.mxu0 0.0
        %1863 = vmatprep.subr.mxu0 0.0
        %1864 = vmatpush2.msra.mxu0 0.0
        %1865 = vmatprep.subr.mxu0 0.0
        %1866 = vmatpush2.msra.mxu0 0.0
        %1867 = vmatprep.subr.mxu0 0.0
        %1868 = vmatpush2.msra.mxu0 0.0
        %1869 = vmatprep.subr.mxu0 0.0
        %1870 = vmatpush2.msra.mxu0 0.0
        %1871 = vmatprep.subr.mxu0 0.0
        %1872 = vmatpush2.msra.mxu0 0.0
        %1873 = vmatprep.subr.mxu0 0.0
        %1874 = vmatpush2.msra.mxu0 0.0
        %1875 = vmatprep.subr.mxu0 0.0
        %1876 = vmatpush2.msra.mxu0 0.0
        %1877 = vmatprep.subr.mxu0 0.0
        %1878 = vmatpush2.msra.mxu0 0.0
        %1879 = vmatprep.subr.mxu0 0.0
        %1880 = vmatpush2.msra.mxu0 0.0
        %1881 = vmatprep.subr.mxu0 0.0
        %1882 = vmatpush2.msra.mxu0 0.0
        %1883 = vmatprep.subr.mxu0 0.0
        %1884 = vmatpush2.msra.mxu0 0.0
        %1885 = vmatprep.subr.mxu0 0.0
        %1886 = vmatpush2.msra.mxu0 0.0
        %1887 = vmatprep.subr.mxu0 0.0
        %1888 = vmatpush2.msra.mxu0 0.0
        %1889 = vmatprep.subr.mxu0 0.0
        %1890 = vmatpush2.msra.mxu0 0.0
        %1891 = vmatprep.subr.mxu0 0.0
        %1892 = vmatpush2.msra.mxu0 0.0
        %1893 = vmatprep.mubr.f32.mxu0 0.0
        %1894 = vmatmul.mubr.f32.gmra.mxu0 %v1827
        %v1895 = vpop.f32.mrf.mxu0
        %v1896 = vadd.f32 0.0, %v1895
        %v1897 = vpop.f32.mrf.mxu0
        %1898 = vdwg.mxu0
        %v1899 = vadd.f32 %v1823, %v1896
        %v1900 = vxor.u32 %v1899, 2147483648
        %v1901 = vmul.f32 %v1900, 1.442695
        %v1902 = vpow.pop %v1901
        %v1903 = vadd.f32 %v1902, 1.0
        %v1904 = vrcp.pop %v1903
        %v1905 = vmul.f32 1.0, %v1904
        %v1906 = vtanh.pop %v1899
        %v1907 = vmul.f32 %v1905, %v1816
        %1909 = vrot.lane.b32.xlu0 %v1906, 64
        %v1910 = vpop.permute.xlu0 %1909
        %v1912 = vmul.f32 %v1905, %v1910
        %1914 = vrot.lane.b32.xlu0 %v1912, 32
        %v1915 = vpop.permute.xlu0 %1914
        %v1917 = vadd.f32 %v1907, %v1915
        %v1918 = vtanh.pop %v1917
        %1920 = vrot.lane.b32.xlu0 %v1918, 64
        %v1921 = vpop.permute.xlu0 %1920
        %v1923 = vmul.f32 %v1905, %v1921
        %vm1924 = vcmp.gt.s32.totalorder %v1252, 5
        %v1925 = vsel %vm1924, 1, 0
        %1926 = vset.pattern.permute.xlu0 0
        %1927 = vperm.xlu0 %1926, %v1925
        %v1928 = vpop.permute.xlu0 %1927
        %vm1929 = vcmp.eq.s32.totalorder %v1928, 1
        %v1930 = vsel %vm1929, %v1923, %v1815
        %v1931 = vsel %vm1929, %v1917, %v1816
        %v1932 = vsel %vm1929, %v1923, 0.0
        %1934 = vrot.lane.b32.xlu0 %v1932, 32
        %v1935 = vpop.permute.xlu0 %1934
        %1937 = vst.msk [vmem:[#allocation3 + $0x28] sm:$0xff] %vm373, %v1935
        %v1938 = vld [vmem:[#allocation2 + $0x30] sm:$0xff]
        %1940 = vrot.lane.b32.xlu0 %v1930, 32
        %v1941 = vpop.permute.xlu0 %1940
        %v1942 = vsel %vm373, %v1941, 0
        %1944 = vmatprep.subr.mxu0 0.0
        %1945 = vmatpush1.msra.mxu0 0.0
        %1946 = vmatprep.subr.mxu0 0.0
        %1947 = vmatpush1.msra.mxu0 0.0
        %1948 = vmatprep.subr.mxu0 0.0
        %1949 = vmatpush1.msra.mxu0 0.0
        %1950 = vmatprep.subr.mxu0 0.0
        %1951 = vmatpush1.msra.mxu0 0.0
        %1952 = vmatprep.subr.mxu0 0.0
        %1953 = vmatpush1.msra.mxu0 0.0
        %1954 = vmatprep.subr.mxu0 0.0
        %1955 = vmatpush1.msra.mxu0 0.0
        %1956 = vmatprep.subr.mxu0 0.0
        %1957 = vmatpush1.msra.mxu0 0.0
        %1958 = vmatprep.subr.mxu0 0.0
        %1959 = vmatpush1.msra.mxu0 0.0
        %1960 = vmatprep.subr.mxu0 0.0
        %1961 = vmatpush1.msra.mxu0 0.0
        %1962 = vmatprep.subr.mxu0 0.0
        %1963 = vmatpush1.msra.mxu0 0.0
        %1964 = vmatprep.subr.mxu0 0.0
        %1965 = vmatpush1.msra.mxu0 0.0
        %1966 = vmatprep.subr.mxu0 0.0
        %1967 = vmatpush1.msra.mxu0 0.0
        %1968 = vmatprep.subr.mxu0 0.0
        %1969 = vmatpush1.msra.mxu0 %v1256
        %1970 = vmatprep.subr.mxu0 0.0
        %1971 = vmatpush1.msra.mxu0 %v1255
        %1972 = vmatprep.subr.mxu0 0.0
        %1973 = vmatpush1.msra.mxu0 %v1254
        %1974 = vmatprep.subr.mxu0 0.0
        %1975 = vmatpush1.msra.mxu0 %v1253
        %1976 = vmatprep.subr.mxu0 0.0
        %1977 = vmatpush2.msra.mxu0 0.0
        %1978 = vmatprep.subr.mxu0 0.0
        %1979 = vmatpush2.msra.mxu0 0.0
        %1980 = vmatprep.subr.mxu0 0.0
        %1981 = vmatpush2.msra.mxu0 0.0
        %1982 = vmatprep.subr.mxu0 0.0
        %1983 = vmatpush2.msra.mxu0 0.0
        %1984 = vmatprep.subr.mxu0 0.0
        %1985 = vmatpush2.msra.mxu0 0.0
        %1986 = vmatprep.subr.mxu0 0.0
        %1987 = vmatpush2.msra.mxu0 0.0
        %1988 = vmatprep.subr.mxu0 0.0
        %1989 = vmatpush2.msra.mxu0 0.0
        %1990 = vmatprep.subr.mxu0 0.0
        %1991 = vmatpush2.msra.mxu0 0.0
        %1992 = vmatprep.subr.mxu0 0.0
        %1993 = vmatpush2.msra.mxu0 0.0
        %1994 = vmatprep.subr.mxu0 0.0
        %1995 = vmatpush2.msra.mxu0 0.0
        %1996 = vmatprep.subr.mxu0 0.0
        %1997 = vmatpush2.msra.mxu0 0.0
        %1998 = vmatprep.subr.mxu0 0.0
        %1999 = vmatpush2.msra.mxu0 0.0
        %2000 = vmatprep.subr.mxu0 0.0
        %2001 = vmatpush2.msra.mxu0 0.0
        %2002 = vmatprep.subr.mxu0 0.0
        %2003 = vmatpush2.msra.mxu0 0.0
        %2004 = vmatprep.subr.mxu0 0.0
        %2005 = vmatpush2.msra.mxu0 0.0
        %2006 = vmatprep.subr.mxu0 0.0
        %2007 = vmatpush2.msra.mxu0 0.0
        %2008 = vmatprep.mubr.f32.mxu0 0.0
        %2009 = vmatmul.mubr.f32.gmra.mxu0 %v1942
        %v2010 = vpop.f32.mrf.mxu0
        %v2011 = vadd.f32 0.0, %v2010
        %v2012 = vpop.f32.mrf.mxu0
        %2013 = vdwg.mxu0
        %v2014 = vadd.f32 %v1938, %v2011
        %v2015 = vxor.u32 %v2014, 2147483648
        %v2016 = vmul.f32 %v2015, 1.442695
        %v2017 = vpow.pop %v2016
        %v2018 = vadd.f32 %v2017, 1.0
        %v2019 = vrcp.pop %v2018
        %v2020 = vmul.f32 1.0, %v2019
        %v2021 = vtanh.pop %v2014
        %v2022 = vmul.f32 %v2020, %v1931
        %2024 = vrot.lane.b32.xlu0 %v2021, 64
        %v2025 = vpop.permute.xlu0 %2024
        %v2027 = vmul.f32 %v2020, %v2025
        %2029 = vrot.lane.b32.xlu0 %v2027, 32
        %v2030 = vpop.permute.xlu0 %2029
        %v2032 = vadd.f32 %v2022, %v2030
        %v2033 = vtanh.pop %v2032
        %2035 = vrot.lane.b32.xlu0 %v2033, 64
        %v2036 = vpop.permute.xlu0 %2035
        %v2038 = vmul.f32 %v2020, %v2036
        %vm2039 = vcmp.gt.s32.totalorder %v1252, 6
        %v2040 = vsel %vm2039, 1, 0
        %2041 = vset.pattern.permute.xlu0 0
        %2042 = vperm.xlu0 %2041, %v2040
        %v2043 = vpop.permute.xlu0 %2042
        %vm2044 = vcmp.eq.s32.totalorder %v2043, 1
        %v2045 = vsel %vm2044, %v2038, %v1930
        %v2046 = vsel %vm2044, %v2032, %v1931
        %v2047 = vsel %vm2044, %v2038, 0.0
        %2049 = vrot.lane.b32.xlu0 %v2047, 32
        %v2050 = vpop.permute.xlu0 %2049
        %2052 = vst.msk [vmem:[#allocation3 + $0x30] sm:$0xff] %vm373, %v2050
        %v2053 = vld [vmem:[#allocation2 + $0x38] sm:$0xff]
        %2055 = vrot.lane.b32.xlu0 %v2045, 32
        %v2056 = vpop.permute.xlu0 %2055
        %v2057 = vsel %vm373, %v2056, 0
        %2059 = vmatprep.subr.mxu0 0.0
        %2060 = vmatpush1.msra.mxu0 0.0
        %2061 = vmatprep.subr.mxu0 0.0
        %2062 = vmatpush1.msra.mxu0 0.0
        %2063 = vmatprep.subr.mxu0 0.0
        %2064 = vmatpush1.msra.mxu0 0.0
        %2065 = vmatprep.subr.mxu0 0.0
        %2066 = vmatpush1.msra.mxu0 0.0
        %2067 = vmatprep.subr.mxu0 0.0
        %2068 = vmatpush1.msra.mxu0 0.0
        %2069 = vmatprep.subr.mxu0 0.0
        %2070 = vmatpush1.msra.mxu0 0.0
        %2071 = vmatprep.subr.mxu0 0.0
        %2072 = vmatpush1.msra.mxu0 0.0
        %2073 = vmatprep.subr.mxu0 0.0
        %2074 = vmatpush1.msra.mxu0 0.0
        %2075 = vmatprep.subr.mxu0 0.0
        %2076 = vmatpush1.msra.mxu0 0.0
        %2077 = vmatprep.subr.mxu0 0.0
        %2078 = vmatpush1.msra.mxu0 0.0
        %2079 = vmatprep.subr.mxu0 0.0
        %2080 = vmatpush1.msra.mxu0 0.0
        %2081 = vmatprep.subr.mxu0 0.0
        %2082 = vmatpush1.msra.mxu0 0.0
        %2083 = vmatprep.subr.mxu0 0.0
        %2084 = vmatpush1.msra.mxu0 %v1256
        %2085 = vmatprep.subr.mxu0 0.0
        %2086 = vmatpush1.msra.mxu0 %v1255
        %2087 = vmatprep.subr.mxu0 0.0
        %2088 = vmatpush1.msra.mxu0 %v1254
        %2089 = vmatprep.subr.mxu0 0.0
        %2090 = vmatpush1.msra.mxu0 %v1253
        %2091 = vmatprep.subr.mxu0 0.0
        %2092 = vmatpush2.msra.mxu0 0.0
        %2093 = vmatprep.subr.mxu0 0.0
        %2094 = vmatpush2.msra.mxu0 0.0
        %2095 = vmatprep.subr.mxu0 0.0
        %2096 = vmatpush2.msra.mxu0 0.0
        %2097 = vmatprep.subr.mxu0 0.0
        %2098 = vmatpush2.msra.mxu0 0.0
        %2099 = vmatprep.subr.mxu0 0.0
        %2100 = vmatpush2.msra.mxu0 0.0
        %2101 = vmatprep.subr.mxu0 0.0
        %2102 = vmatpush2.msra.mxu0 0.0
        %2103 = vmatprep.subr.mxu0 0.0
        %2104 = vmatpush2.msra.mxu0 0.0
        %2105 = vmatprep.subr.mxu0 0.0
        %2106 = vmatpush2.msra.mxu0 0.0
        %2107 = vmatprep.subr.mxu0 0.0
        %2108 = vmatpush2.msra.mxu0 0.0
        %2109 = vmatprep.subr.mxu0 0.0
        %2110 = vmatpush2.msra.mxu0 0.0
        %2111 = vmatprep.subr.mxu0 0.0
        %2112 = vmatpush2.msra.mxu0 0.0
        %2113 = vmatprep.subr.mxu0 0.0
        %2114 = vmatpush2.msra.mxu0 0.0
        %2115 = vmatprep.subr.mxu0 0.0
        %2116 = vmatpush2.msra.mxu0 0.0
        %2117 = vmatprep.subr.mxu0 0.0
        %2118 = vmatpush2.msra.mxu0 0.0
        %2119 = vmatprep.subr.mxu0 0.0
        %2120 = vmatpush2.msra.mxu0 0.0
        %2121 = vmatprep.subr.mxu0 0.0
        %2122 = vmatpush2.msra.mxu0 0.0
        %2123 = vmatprep.mubr.f32.mxu0 0.0
        %2124 = vmatmul.mubr.f32.gmra.mxu0 %v2057
        %v2125 = vpop.f32.mrf.mxu0
        %v2126 = vadd.f32 0.0, %v2125
        %v2127 = vpop.f32.mrf.mxu0
        %2128 = vdwg.mxu0
        %v2129 = vadd.f32 %v2053, %v2126
        %v2130 = vxor.u32 %v2129, 2147483648
        %v2131 = vmul.f32 %v2130, 1.442695
        %v2132 = vpow.pop %v2131
        %v2133 = vadd.f32 %v2132, 1.0
        %v2134 = vrcp.pop %v2133
        %v2135 = vmul.f32 1.0, %v2134
        %v2136 = vtanh.pop %v2129
        %v2137 = vmul.f32 %v2135, %v2046
        %2139 = vrot.lane.b32.xlu0 %v2136, 64
        %v2140 = vpop.permute.xlu0 %2139
        %v2142 = vmul.f32 %v2135, %v2140
        %2144 = vrot.lane.b32.xlu0 %v2142, 32
        %v2145 = vpop.permute.xlu0 %2144
        %v2147 = vadd.f32 %v2137, %v2145
        %v2148 = vtanh.pop %v2147
        %2150 = vrot.lane.b32.xlu0 %v2148, 64
        %v2151 = vpop.permute.xlu0 %2150
        %v2153 = vmul.f32 %v2135, %v2151
        %vm2154 = vcmp.gt.s32.totalorder %v1252, 7
        %v2155 = vsel %vm2154, 1, 0
        %2156 = vset.pattern.permute.xlu0 0
        %2157 = vperm.xlu0 %2156, %v2155
        %v2158 = vpop.permute.xlu0 %2157
        %vm2159 = vcmp.eq.s32.totalorder %v2158, 1
        %v2160 = vsel %vm2159, %v2153, %v2045
        %v2161 = vsel %vm2159, %v2147, %v2046
        %v2162 = vsel %vm2159, %v2153, 0.0
        %2164 = vrot.lane.b32.xlu0 %v2162, 32
        %v2165 = vpop.permute.xlu0 %2164
        %2167 = vst.msk [vmem:[#allocation3 + $0x38] sm:$0xff] %vm373, %v2165
        %v2168 = vld [vmem:[#allocation2 + $0x40] sm:$0xff]
        %2170 = vrot.lane.b32.xlu0 %v2160, 32
        %v2171 = vpop.permute.xlu0 %2170
        %v2172 = vsel %vm373, %v2171, 0
        %2174 = vmatprep.subr.mxu0 0.0
        %2175 = vmatpush1.msra.mxu0 0.0
        %2176 = vmatprep.subr.mxu0 0.0
        %2177 = vmatpush1.msra.mxu0 0.0
        %2178 = vmatprep.subr.mxu0 0.0
        %2179 = vmatpush1.msra.mxu0 0.0
        %2180 = vmatprep.subr.mxu0 0.0
        %2181 = vmatpush1.msra.mxu0 0.0
        %2182 = vmatprep.subr.mxu0 0.0
        %2183 = vmatpush1.msra.mxu0 0.0
        %2184 = vmatprep.subr.mxu0 0.0
        %2185 = vmatpush1.msra.mxu0 0.0
        %2186 = vmatprep.subr.mxu0 0.0
        %2187 = vmatpush1.msra.mxu0 0.0
        %2188 = vmatprep.subr.mxu0 0.0
        %2189 = vmatpush1.msra.mxu0 0.0
        %2190 = vmatprep.subr.mxu0 0.0
        %2191 = vmatpush1.msra.mxu0 0.0
        %2192 = vmatprep.subr.mxu0 0.0
        %2193 = vmatpush1.msra.mxu0 0.0
        %2194 = vmatprep.subr.mxu0 0.0
        %2195 = vmatpush1.msra.mxu0 0.0
        %2196 = vmatprep.subr.mxu0 0.0
        %2197 = vmatpush1.msra.mxu0 0.0
        %2198 = vmatprep.subr.mxu0 0.0
        %2199 = vmatpush1.msra.mxu0 %v1256
        %2200 = vmatprep.subr.mxu0 0.0
        %2201 = vmatpush1.msra.mxu0 %v1255
        %2202 = vmatprep.subr.mxu0 0.0
        %2203 = vmatpush1.msra.mxu0 %v1254
        %2204 = vmatprep.subr.mxu0 0.0
        %2205 = vmatpush1.msra.mxu0 %v1253
        %2206 = vmatprep.subr.mxu0 0.0
        %2207 = vmatpush2.msra.mxu0 0.0
        %2208 = vmatprep.subr.mxu0 0.0
        %2209 = vmatpush2.msra.mxu0 0.0
        %2210 = vmatprep.subr.mxu0 0.0
        %2211 = vmatpush2.msra.mxu0 0.0
        %2212 = vmatprep.subr.mxu0 0.0
        %2213 = vmatpush2.msra.mxu0 0.0
        %2214 = vmatprep.subr.mxu0 0.0
        %2215 = vmatpush2.msra.mxu0 0.0
        %2216 = vmatprep.subr.mxu0 0.0
        %2217 = vmatpush2.msra.mxu0 0.0
        %2218 = vmatprep.subr.mxu0 0.0
        %2219 = vmatpush2.msra.mxu0 0.0
        %2220 = vmatprep.subr.mxu0 0.0
        %2221 = vmatpush2.msra.mxu0 0.0
        %2222 = vmatprep.subr.mxu0 0.0
        %2223 = vmatpush2.msra.mxu0 0.0
        %2224 = vmatprep.subr.mxu0 0.0
        %2225 = vmatpush2.msra.mxu0 0.0
        %2226 = vmatprep.subr.mxu0 0.0
        %2227 = vmatpush2.msra.mxu0 0.0
        %2228 = vmatprep.subr.mxu0 0.0
        %2229 = vmatpush2.msra.mxu0 0.0
        %2230 = vmatprep.subr.mxu0 0.0
        %2231 = vmatpush2.msra.mxu0 0.0
        %2232 = vmatprep.subr.mxu0 0.0
        %2233 = vmatpush2.msra.mxu0 0.0
        %2234 = vmatprep.subr.mxu0 0.0
        %2235 = vmatpush2.msra.mxu0 0.0
        %2236 = vmatprep.subr.mxu0 0.0
        %2237 = vmatpush2.msra.mxu0 0.0
        %2238 = vmatprep.mubr.f32.mxu0 0.0
        %2239 = vmatmul.mubr.f32.gmra.mxu0 %v2172
        %v2240 = vpop.f32.mrf.mxu0
        %v2241 = vadd.f32 0.0, %v2240
        %v2242 = vpop.f32.mrf.mxu0
        %2243 = vdwg.mxu0
        %v2244 = vadd.f32 %v2168, %v2241
        %v2245 = vxor.u32 %v2244, 2147483648
        %v2246 = vmul.f32 %v2245, 1.442695
        %v2247 = vpow.pop %v2246
        %v2248 = vadd.f32 %v2247, 1.0
        %v2249 = vrcp.pop %v2248
        %v2250 = vmul.f32 1.0, %v2249
        %v2251 = vtanh.pop %v2244
        %v2252 = vmul.f32 %v2250, %v2161
        %2254 = vrot.lane.b32.xlu0 %v2251, 64
        %v2255 = vpop.permute.xlu0 %2254
        %v2257 = vmul.f32 %v2250, %v2255
        %2259 = vrot.lane.b32.xlu0 %v2257, 32
        %v2260 = vpop.permute.xlu0 %2259
        %v2262 = vadd.f32 %v2252, %v2260
        %v2263 = vtanh.pop %v2262
        %2265 = vrot.lane.b32.xlu0 %v2263, 64
        %v2266 = vpop.permute.xlu0 %2265
        %v2268 = vmul.f32 %v2250, %v2266
        %vm2269 = vcmp.gt.s32.totalorder %v1252, 8
        %v2270 = vsel %vm2269, 1, 0
        %2271 = vset.pattern.permute.xlu0 0
        %2272 = vperm.xlu0 %2271, %v2270
        %v2273 = vpop.permute.xlu0 %2272
        %vm2274 = vcmp.eq.s32.totalorder %v2273, 1
        %v2275 = vsel %vm2274, %v2268, %v2160
        %v2276 = vsel %vm2274, %v2262, %v2161
        %v2277 = vsel %vm2274, %v2268, 0.0
        %2279 = vrot.lane.b32.xlu0 %v2277, 32
        %v2280 = vpop.permute.xlu0 %2279
        %2282 = vst.msk [vmem:[#allocation3 + $0x40] sm:$0xff] %vm373, %v2280
        %v2283 = vld [vmem:[#allocation2 + $0x48] sm:$0xff]
        %2285 = vrot.lane.b32.xlu0 %v2275, 32
        %v2286 = vpop.permute.xlu0 %2285
        %v2287 = vsel %vm373, %v2286, 0
        %2289 = vmatprep.subr.mxu0 0.0
        %2290 = vmatpush1.msra.mxu0 0.0
        %2291 = vmatprep.subr.mxu0 0.0
        %2292 = vmatpush1.msra.mxu0 0.0
        %2293 = vmatprep.subr.mxu0 0.0
        %2294 = vmatpush1.msra.mxu0 0.0
        %2295 = vmatprep.subr.mxu0 0.0
        %2296 = vmatpush1.msra.mxu0 0.0
        %2297 = vmatprep.subr.mxu0 0.0
        %2298 = vmatpush1.msra.mxu0 0.0
        %2299 = vmatprep.subr.mxu0 0.0
        %2300 = vmatpush1.msra.mxu0 0.0
        %2301 = vmatprep.subr.mxu0 0.0
        %2302 = vmatpush1.msra.mxu0 0.0
        %2303 = vmatprep.subr.mxu0 0.0
        %2304 = vmatpush1.msra.mxu0 0.0
        %2305 = vmatprep.subr.mxu0 0.0
        %2306 = vmatpush1.msra.mxu0 0.0
        %2307 = vmatprep.subr.mxu0 0.0
        %2308 = vmatpush1.msra.mxu0 0.0
        %2309 = vmatprep.subr.mxu0 0.0
        %2310 = vmatpush1.msra.mxu0 0.0
        %2311 = vmatprep.subr.mxu0 0.0
        %2312 = vmatpush1.msra.mxu0 0.0
        %2313 = vmatprep.subr.mxu0 0.0
        %2314 = vmatpush1.msra.mxu0 %v1256
        %2315 = vmatprep.subr.mxu0 0.0
        %2316 = vmatpush1.msra.mxu0 %v1255
        %2317 = vmatprep.subr.mxu0 0.0
        %2318 = vmatpush1.msra.mxu0 %v1254
        %2319 = vmatprep.subr.mxu0 0.0
        %2320 = vmatpush1.msra.mxu0 %v1253
        %2321 = vmatprep.subr.mxu0 0.0
        %2322 = vmatpush2.msra.mxu0 0.0
        %2323 = vmatprep.subr.mxu0 0.0
        %2324 = vmatpush2.msra.mxu0 0.0
        %2325 = vmatprep.subr.mxu0 0.0
        %2326 = vmatpush2.msra.mxu0 0.0
        %2327 = vmatprep.subr.mxu0 0.0
        %2328 = vmatpush2.msra.mxu0 0.0
        %2329 = vmatprep.subr.mxu0 0.0
        %2330 = vmatpush2.msra.mxu0 0.0
        %2331 = vmatprep.subr.mxu0 0.0
        %2332 = vmatpush2.msra.mxu0 0.0
        %2333 = vmatprep.subr.mxu0 0.0
        %2334 = vmatpush2.msra.mxu0 0.0
        %2335 = vmatprep.subr.mxu0 0.0
        %2336 = vmatpush2.msra.mxu0 0.0
        %2337 = vmatprep.subr.mxu0 0.0
        %2338 = vmatpush2.msra.mxu0 0.0
        %2339 = vmatprep.subr.mxu0 0.0
        %2340 = vmatpush2.msra.mxu0 0.0
        %2341 = vmatprep.subr.mxu0 0.0
        %2342 = vmatpush2.msra.mxu0 0.0
        %2343 = vmatprep.subr.mxu0 0.0
        %2344 = vmatpush2.msra.mxu0 0.0
        %2345 = vmatprep.subr.mxu0 0.0
        %2346 = vmatpush2.msra.mxu0 0.0
        %2347 = vmatprep.subr.mxu0 0.0
        %2348 = vmatpush2.msra.mxu0 0.0
        %2349 = vmatprep.subr.mxu0 0.0
        %2350 = vmatpush2.msra.mxu0 0.0
        %2351 = vmatprep.subr.mxu0 0.0
        %2352 = vmatpush2.msra.mxu0 0.0
        %2353 = vmatprep.mubr.f32.mxu0 0.0
        %2354 = vmatmul.mubr.f32.gmra.mxu0 %v2287
        %v2355 = vpop.f32.mrf.mxu0
        %v2356 = vadd.f32 0.0, %v2355
        %v2357 = vpop.f32.mrf.mxu0
        %2358 = vdwg.mxu0
        %v2359 = vadd.f32 %v2283, %v2356
        %v2360 = vxor.u32 %v2359, 2147483648
        %v2361 = vmul.f32 %v2360, 1.442695
        %v2362 = vpow.pop %v2361
        %v2363 = vadd.f32 %v2362, 1.0
        %v2364 = vrcp.pop %v2363
        %v2365 = vmul.f32 1.0, %v2364
        %v2366 = vtanh.pop %v2359
        %v2367 = vmul.f32 %v2365, %v2276
        %2369 = vrot.lane.b32.xlu0 %v2366, 64
        %v2370 = vpop.permute.xlu0 %2369
        %v2372 = vmul.f32 %v2365, %v2370
        %2374 = vrot.lane.b32.xlu0 %v2372, 32
        %v2375 = vpop.permute.xlu0 %2374
        %v2377 = vadd.f32 %v2367, %v2375
        %v2378 = vtanh.pop %v2377
        %2380 = vrot.lane.b32.xlu0 %v2378, 64
        %v2381 = vpop.permute.xlu0 %2380
        %v2383 = vmul.f32 %v2365, %v2381
        %vm2384 = vcmp.gt.s32.totalorder %v1252, 9
        %v2385 = vsel %vm2384, 1, 0
        %2386 = vset.pattern.permute.xlu0 0
        %2387 = vperm.xlu0 %2386, %v2385
        %v2388 = vpop.permute.xlu0 %2387
        %vm2389 = vcmp.eq.s32.totalorder %v2388, 1
        %v2390 = vsel %vm2389, %v2383, %v2275
        %v2391 = vsel %vm2389, %v2377, %v2276
        %v2392 = vsel %vm2389, %v2383, 0.0
        %2394 = vrot.lane.b32.xlu0 %v2392, 32
        %v2395 = vpop.permute.xlu0 %2394
        %2397 = vst.msk [vmem:[#allocation3 + $0x48] sm:$0xff] %vm373, %v2395
        %v2398 = vld [vmem:[#allocation2 + $0x50] sm:$0xff]
        %2400 = vrot.lane.b32.xlu0 %v2390, 32
        %v2401 = vpop.permute.xlu0 %2400
        %v2402 = vsel %vm373, %v2401, 0
        %2404 = vmatprep.subr.mxu0 0.0
        %2405 = vmatpush1.msra.mxu0 0.0
        %2406 = vmatprep.subr.mxu0 0.0
        %2407 = vmatpush1.msra.mxu0 0.0
        %2408 = vmatprep.subr.mxu0 0.0
        %2409 = vmatpush1.msra.mxu0 0.0
        %2410 = vmatprep.subr.mxu0 0.0
        %2411 = vmatpush1.msra.mxu0 0.0
        %2412 = vmatprep.subr.mxu0 0.0
        %2413 = vmatpush1.msra.mxu0 0.0
        %2414 = vmatprep.subr.mxu0 0.0
        %2415 = vmatpush1.msra.mxu0 0.0
        %2416 = vmatprep.subr.mxu0 0.0
        %2417 = vmatpush1.msra.mxu0 0.0
        %2418 = vmatprep.subr.mxu0 0.0
        %2419 = vmatpush1.msra.mxu0 0.0
        %2420 = vmatprep.subr.mxu0 0.0
        %2421 = vmatpush1.msra.mxu0 0.0
        %2422 = vmatprep.subr.mxu0 0.0
        %2423 = vmatpush1.msra.mxu0 0.0
        %2424 = vmatprep.subr.mxu0 0.0
        %2425 = vmatpush1.msra.mxu0 0.0
        %2426 = vmatprep.subr.mxu0 0.0
        %2427 = vmatpush1.msra.mxu0 0.0
        %2428 = vmatprep.subr.mxu0 0.0
        %2429 = vmatpush1.msra.mxu0 %v1256
        %2430 = vmatprep.subr.mxu0 0.0
        %2431 = vmatpush1.msra.mxu0 %v1255
        %2432 = vmatprep.subr.mxu0 0.0
        %2433 = vmatpush1.msra.mxu0 %v1254
        %2434 = vmatprep.subr.mxu0 0.0
        %2435 = vmatpush1.msra.mxu0 %v1253
        %2436 = vmatprep.subr.mxu0 0.0
        %2437 = vmatpush2.msra.mxu0 0.0
        %2438 = vmatprep.subr.mxu0 0.0
        %2439 = vmatpush2.msra.mxu0 0.0
        %2440 = vmatprep.subr.mxu0 0.0
        %2441 = vmatpush2.msra.mxu0 0.0
        %2442 = vmatprep.subr.mxu0 0.0
        %2443 = vmatpush2.msra.mxu0 0.0
        %2444 = vmatprep.subr.mxu0 0.0
        %2445 = vmatpush2.msra.mxu0 0.0
        %2446 = vmatprep.subr.mxu0 0.0
        %2447 = vmatpush2.msra.mxu0 0.0
        %2448 = vmatprep.subr.mxu0 0.0
        %2449 = vmatpush2.msra.mxu0 0.0
        %2450 = vmatprep.subr.mxu0 0.0
        %2451 = vmatpush2.msra.mxu0 0.0
        %2452 = vmatprep.subr.mxu0 0.0
        %2453 = vmatpush2.msra.mxu0 0.0
        %2454 = vmatprep.subr.mxu0 0.0
        %2455 = vmatpush2.msra.mxu0 0.0
        %2456 = vmatprep.subr.mxu0 0.0
        %2457 = vmatpush2.msra.mxu0 0.0
        %2458 = vmatprep.subr.mxu0 0.0
        %2459 = vmatpush2.msra.mxu0 0.0
        %2460 = vmatprep.subr.mxu0 0.0
        %2461 = vmatpush2.msra.mxu0 0.0
        %2462 = vmatprep.subr.mxu0 0.0
        %2463 = vmatpush2.msra.mxu0 0.0
        %2464 = vmatprep.subr.mxu0 0.0
        %2465 = vmatpush2.msra.mxu0 0.0
        %2466 = vmatprep.subr.mxu0 0.0
        %2467 = vmatpush2.msra.mxu0 0.0
        %2468 = vmatprep.mubr.f32.mxu0 0.0
        %2469 = vmatmul.mubr.f32.gmra.mxu0 %v2402
        %v2470 = vpop.f32.mrf.mxu0
        %v2471 = vadd.f32 0.0, %v2470
        %v2472 = vpop.f32.mrf.mxu0
        %2473 = vdwg.mxu0
        %v2474 = vadd.f32 %v2398, %v2471
        %v2475 = vxor.u32 %v2474, 2147483648
        %v2476 = vmul.f32 %v2475, 1.442695
        %v2477 = vpow.pop %v2476
        %v2478 = vadd.f32 %v2477, 1.0
        %v2479 = vrcp.pop %v2478
        %v2480 = vmul.f32 1.0, %v2479
        %v2481 = vtanh.pop %v2474
        %v2482 = vmul.f32 %v2480, %v2391
        %2484 = vrot.lane.b32.xlu0 %v2481, 64
        %v2485 = vpop.permute.xlu0 %2484
        %v2487 = vmul.f32 %v2480, %v2485
        %2489 = vrot.lane.b32.xlu0 %v2487, 32
        %v2490 = vpop.permute.xlu0 %2489
        %v2492 = vadd.f32 %v2482, %v2490
        %v2493 = vtanh.pop %v2492
        %2495 = vrot.lane.b32.xlu0 %v2493, 64
        %v2496 = vpop.permute.xlu0 %2495
        %v2498 = vmul.f32 %v2480, %v2496
        %vm2499 = vcmp.gt.s32.totalorder %v1252, 10
        %v2500 = vsel %vm2499, 1, 0
        %2501 = vset.pattern.permute.xlu0 0
        %2502 = vperm.xlu0 %2501, %v2500
        %v2503 = vpop.permute.xlu0 %2502
        %vm2504 = vcmp.eq.s32.totalorder %v2503, 1
        %v2505 = vsel %vm2504, %v2498, %v2390
        %v2506 = vsel %vm2504, %v2492, %v2391
        %v2507 = vsel %vm2504, %v2498, 0.0
        %2509 = vrot.lane.b32.xlu0 %v2507, 32
        %v2510 = vpop.permute.xlu0 %2509
        %2512 = vst.msk [vmem:[#allocation3 + $0x50] sm:$0xff] %vm373, %v2510
        %v2513 = vld [vmem:[#allocation2 + $0x58] sm:$0xff]
        %2515 = vrot.lane.b32.xlu0 %v2505, 32
        %v2516 = vpop.permute.xlu0 %2515
        %v2517 = vsel %vm373, %v2516, 0
        %2519 = vmatprep.subr.mxu0 0.0
        %2520 = vmatpush1.msra.mxu0 0.0
        %2521 = vmatprep.subr.mxu0 0.0
        %2522 = vmatpush1.msra.mxu0 0.0
        %2523 = vmatprep.subr.mxu0 0.0
        %2524 = vmatpush1.msra.mxu0 0.0
        %2525 = vmatprep.subr.mxu0 0.0
        %2526 = vmatpush1.msra.mxu0 0.0
        %2527 = vmatprep.subr.mxu0 0.0
        %2528 = vmatpush1.msra.mxu0 0.0
        %2529 = vmatprep.subr.mxu0 0.0
        %2530 = vmatpush1.msra.mxu0 0.0
        %2531 = vmatprep.subr.mxu0 0.0
        %2532 = vmatpush1.msra.mxu0 0.0
        %2533 = vmatprep.subr.mxu0 0.0
        %2534 = vmatpush1.msra.mxu0 0.0
        %2535 = vmatprep.subr.mxu0 0.0
        %2536 = vmatpush1.msra.mxu0 0.0
        %2537 = vmatprep.subr.mxu0 0.0
        %2538 = vmatpush1.msra.mxu0 0.0
        %2539 = vmatprep.subr.mxu0 0.0
        %2540 = vmatpush1.msra.mxu0 0.0
        %2541 = vmatprep.subr.mxu0 0.0
        %2542 = vmatpush1.msra.mxu0 0.0
        %2543 = vmatprep.subr.mxu0 0.0
        %2544 = vmatpush1.msra.mxu0 %v1256
        %2545 = vmatprep.subr.mxu0 0.0
        %2546 = vmatpush1.msra.mxu0 %v1255
        %2547 = vmatprep.subr.mxu0 0.0
        %2548 = vmatpush1.msra.mxu0 %v1254
        %2549 = vmatprep.subr.mxu0 0.0
        %2550 = vmatpush1.msra.mxu0 %v1253
        %2551 = vmatprep.subr.mxu0 0.0
        %2552 = vmatpush2.msra.mxu0 0.0
        %2553 = vmatprep.subr.mxu0 0.0
        %2554 = vmatpush2.msra.mxu0 0.0
        %2555 = vmatprep.subr.mxu0 0.0
        %2556 = vmatpush2.msra.mxu0 0.0
        %2557 = vmatprep.subr.mxu0 0.0
        %2558 = vmatpush2.msra.mxu0 0.0
        %2559 = vmatprep.subr.mxu0 0.0
        %2560 = vmatpush2.msra.mxu0 0.0
        %2561 = vmatprep.subr.mxu0 0.0
        %2562 = vmatpush2.msra.mxu0 0.0
        %2563 = vmatprep.subr.mxu0 0.0
        %2564 = vmatpush2.msra.mxu0 0.0
        %2565 = vmatprep.subr.mxu0 0.0
        %2566 = vmatpush2.msra.mxu0 0.0
        %2567 = vmatprep.subr.mxu0 0.0
        %2568 = vmatpush2.msra.mxu0 0.0
        %2569 = vmatprep.subr.mxu0 0.0
        %2570 = vmatpush2.msra.mxu0 0.0
        %2571 = vmatprep.subr.mxu0 0.0
        %2572 = vmatpush2.msra.mxu0 0.0
        %2573 = vmatprep.subr.mxu0 0.0
        %2574 = vmatpush2.msra.mxu0 0.0
        %2575 = vmatprep.subr.mxu0 0.0
        %2576 = vmatpush2.msra.mxu0 0.0
        %2577 = vmatprep.subr.mxu0 0.0
        %2578 = vmatpush2.msra.mxu0 0.0
        %2579 = vmatprep.subr.mxu0 0.0
        %2580 = vmatpush2.msra.mxu0 0.0
        %2581 = vmatprep.subr.mxu0 0.0
        %2582 = vmatpush2.msra.mxu0 0.0
        %2583 = vmatprep.mubr.f32.mxu0 0.0
        %2584 = vmatmul.mubr.f32.gmra.mxu0 %v2517
        %v2585 = vpop.f32.mrf.mxu0
        %v2586 = vadd.f32 0.0, %v2585
        %v2587 = vpop.f32.mrf.mxu0
        %2588 = vdwg.mxu0
        %v2589 = vadd.f32 %v2513, %v2586
        %v2590 = vxor.u32 %v2589, 2147483648
        %v2591 = vmul.f32 %v2590, 1.442695
        %v2592 = vpow.pop %v2591
        %v2593 = vadd.f32 %v2592, 1.0
        %v2594 = vrcp.pop %v2593
        %v2595 = vmul.f32 1.0, %v2594
        %v2596 = vtanh.pop %v2589
        %v2597 = vmul.f32 %v2595, %v2506
        %2599 = vrot.lane.b32.xlu0 %v2596, 64
        %v2600 = vpop.permute.xlu0 %2599
        %v2602 = vmul.f32 %v2595, %v2600
        %2604 = vrot.lane.b32.xlu0 %v2602, 32
        %v2605 = vpop.permute.xlu0 %2604
        %v2607 = vadd.f32 %v2597, %v2605
        %v2608 = vtanh.pop %v2607
        %2610 = vrot.lane.b32.xlu0 %v2608, 64
        %v2611 = vpop.permute.xlu0 %2610
        %v2613 = vmul.f32 %v2595, %v2611
        %vm2614 = vcmp.gt.s32.totalorder %v1252, 11
        %v2615 = vsel %vm2614, 1, 0
        %2616 = vset.pattern.permute.xlu0 0
        %2617 = vperm.xlu0 %2616, %v2615
        %v2618 = vpop.permute.xlu0 %2617
        %vm2619 = vcmp.eq.s32.totalorder %v2618, 1
        %v2620 = vsel %vm2619, %v2613, %v2505
        %v2621 = vsel %vm2619, %v2607, %v2506
        %v2622 = vsel %vm2619, %v2613, 0.0
        %2624 = vrot.lane.b32.xlu0 %v2622, 32
        %v2625 = vpop.permute.xlu0 %2624
        %2627 = vst.msk [vmem:[#allocation3 + $0x58] sm:$0xff] %vm373, %v2625
        %v2628 = vld [vmem:[#allocation2 + $0x60] sm:$0xff]
        %2630 = vrot.lane.b32.xlu0 %v2620, 32
        %v2631 = vpop.permute.xlu0 %2630
        %v2632 = vsel %vm373, %v2631, 0
        %2634 = vmatprep.subr.mxu0 0.0
        %2635 = vmatpush1.msra.mxu0 0.0
        %2636 = vmatprep.subr.mxu0 0.0
        %2637 = vmatpush1.msra.mxu0 0.0
        %2638 = vmatprep.subr.mxu0 0.0
        %2639 = vmatpush1.msra.mxu0 0.0
        %2640 = vmatprep.subr.mxu0 0.0
        %2641 = vmatpush1.msra.mxu0 0.0
        %2642 = vmatprep.subr.mxu0 0.0
        %2643 = vmatpush1.msra.mxu0 0.0
        %2644 = vmatprep.subr.mxu0 0.0
        %2645 = vmatpush1.msra.mxu0 0.0
        %2646 = vmatprep.subr.mxu0 0.0
        %2647 = vmatpush1.msra.mxu0 0.0
        %2648 = vmatprep.subr.mxu0 0.0
        %2649 = vmatpush1.msra.mxu0 0.0
        %2650 = vmatprep.subr.mxu0 0.0
        %2651 = vmatpush1.msra.mxu0 0.0
        %2652 = vmatprep.subr.mxu0 0.0
        %2653 = vmatpush1.msra.mxu0 0.0
        %2654 = vmatprep.subr.mxu0 0.0
        %2655 = vmatpush1.msra.mxu0 0.0
        %2656 = vmatprep.subr.mxu0 0.0
        %2657 = vmatpush1.msra.mxu0 0.0
        %2658 = vmatprep.subr.mxu0 0.0
        %2659 = vmatpush1.msra.mxu0 %v1256
        %2660 = vmatprep.subr.mxu0 0.0
        %2661 = vmatpush1.msra.mxu0 %v1255
        %2662 = vmatprep.subr.mxu0 0.0
        %2663 = vmatpush1.msra.mxu0 %v1254
        %2664 = vmatprep.subr.mxu0 0.0
        %2665 = vmatpush1.msra.mxu0 %v1253
        %2666 = vmatprep.subr.mxu0 0.0
        %2667 = vmatpush2.msra.mxu0 0.0
        %2668 = vmatprep.subr.mxu0 0.0
        %2669 = vmatpush2.msra.mxu0 0.0
        %2670 = vmatprep.subr.mxu0 0.0
        %2671 = vmatpush2.msra.mxu0 0.0
        %2672 = vmatprep.subr.mxu0 0.0
        %2673 = vmatpush2.msra.mxu0 0.0
        %2674 = vmatprep.subr.mxu0 0.0
        %2675 = vmatpush2.msra.mxu0 0.0
        %2676 = vmatprep.subr.mxu0 0.0
        %2677 = vmatpush2.msra.mxu0 0.0
        %2678 = vmatprep.subr.mxu0 0.0
        %2679 = vmatpush2.msra.mxu0 0.0
        %2680 = vmatprep.subr.mxu0 0.0
        %2681 = vmatpush2.msra.mxu0 0.0
        %2682 = vmatprep.subr.mxu0 0.0
        %2683 = vmatpush2.msra.mxu0 0.0
        %2684 = vmatprep.subr.mxu0 0.0
        %2685 = vmatpush2.msra.mxu0 0.0
        %2686 = vmatprep.subr.mxu0 0.0
        %2687 = vmatpush2.msra.mxu0 0.0
        %2688 = vmatprep.subr.mxu0 0.0
        %2689 = vmatpush2.msra.mxu0 0.0
        %2690 = vmatprep.subr.mxu0 0.0
        %2691 = vmatpush2.msra.mxu0 0.0
        %2692 = vmatprep.subr.mxu0 0.0
        %2693 = vmatpush2.msra.mxu0 0.0
        %2694 = vmatprep.subr.mxu0 0.0
        %2695 = vmatpush2.msra.mxu0 0.0
        %2696 = vmatprep.subr.mxu0 0.0
        %2697 = vmatpush2.msra.mxu0 0.0
        %2698 = vmatprep.mubr.f32.mxu0 0.0
        %2699 = vmatmul.mubr.f32.gmra.mxu0 %v2632
        %v2700 = vpop.f32.mrf.mxu0
        %v2701 = vadd.f32 0.0, %v2700
        %v2702 = vpop.f32.mrf.mxu0
        %2703 = vdwg.mxu0
        %v2704 = vadd.f32 %v2628, %v2701
        %v2705 = vxor.u32 %v2704, 2147483648
        %v2706 = vmul.f32 %v2705, 1.442695
        %v2707 = vpow.pop %v2706
        %v2708 = vadd.f32 %v2707, 1.0
        %v2709 = vrcp.pop %v2708
        %v2710 = vmul.f32 1.0, %v2709
        %v2711 = vtanh.pop %v2704
        %v2712 = vmul.f32 %v2710, %v2621
        %2714 = vrot.lane.b32.xlu0 %v2711, 64
        %v2715 = vpop.permute.xlu0 %2714
        %v2717 = vmul.f32 %v2710, %v2715
        %2719 = vrot.lane.b32.xlu0 %v2717, 32
        %v2720 = vpop.permute.xlu0 %2719
        %v2722 = vadd.f32 %v2712, %v2720
        %v2723 = vtanh.pop %v2722
        %2725 = vrot.lane.b32.xlu0 %v2723, 64
        %v2726 = vpop.permute.xlu0 %2725
        %v2728 = vmul.f32 %v2710, %v2726
        %vm2729 = vcmp.gt.s32.totalorder %v1252, 12
        %v2730 = vsel %vm2729, 1, 0
        %2731 = vset.pattern.permute.xlu0 0
        %2732 = vperm.xlu0 %2731, %v2730
        %v2733 = vpop.permute.xlu0 %2732
        %vm2734 = vcmp.eq.s32.totalorder %v2733, 1
        %v2735 = vsel %vm2734, %v2728, %v2620
        %v2736 = vsel %vm2734, %v2722, %v2621
        %v2737 = vsel %vm2734, %v2728, 0.0
        %2739 = vrot.lane.b32.xlu0 %v2737, 32
        %v2740 = vpop.permute.xlu0 %2739
        %2742 = vst.msk [vmem:[#allocation3 + $0x60] sm:$0xff] %vm373, %v2740
        %v2743 = vld [vmem:[#allocation2 + $0x68] sm:$0xff]
        %2745 = vrot.lane.b32.xlu0 %v2735, 32
        %v2746 = vpop.permute.xlu0 %2745
        %v2747 = vsel %vm373, %v2746, 0
        %2749 = vmatprep.subr.mxu0 0.0
        %2750 = vmatpush1.msra.mxu0 0.0
        %2751 = vmatprep.subr.mxu0 0.0
        %2752 = vmatpush1.msra.mxu0 0.0
        %2753 = vmatprep.subr.mxu0 0.0
        %2754 = vmatpush1.msra.mxu0 0.0
        %2755 = vmatprep.subr.mxu0 0.0
        %2756 = vmatpush1.msra.mxu0 0.0
        %2757 = vmatprep.subr.mxu0 0.0
        %2758 = vmatpush1.msra.mxu0 0.0
        %2759 = vmatprep.subr.mxu0 0.0
        %2760 = vmatpush1.msra.mxu0 0.0
        %2761 = vmatprep.subr.mxu0 0.0
        %2762 = vmatpush1.msra.mxu0 0.0
        %2763 = vmatprep.subr.mxu0 0.0
        %2764 = vmatpush1.msra.mxu0 0.0
        %2765 = vmatprep.subr.mxu0 0.0
        %2766 = vmatpush1.msra.mxu0 0.0
        %2767 = vmatprep.subr.mxu0 0.0
        %2768 = vmatpush1.msra.mxu0 0.0
        %2769 = vmatprep.subr.mxu0 0.0
        %2770 = vmatpush1.msra.mxu0 0.0
        %2771 = vmatprep.subr.mxu0 0.0
        %2772 = vmatpush1.msra.mxu0 0.0
        %2773 = vmatprep.subr.mxu0 0.0
        %2774 = vmatpush1.msra.mxu0 %v1256
        %2775 = vmatprep.subr.mxu0 0.0
        %2776 = vmatpush1.msra.mxu0 %v1255
        %2777 = vmatprep.subr.mxu0 0.0
        %2778 = vmatpush1.msra.mxu0 %v1254
        %2779 = vmatprep.subr.mxu0 0.0
        %2780 = vmatpush1.msra.mxu0 %v1253
        %2781 = vmatprep.subr.mxu0 0.0
        %2782 = vmatpush2.msra.mxu0 0.0
        %2783 = vmatprep.subr.mxu0 0.0
        %2784 = vmatpush2.msra.mxu0 0.0
        %2785 = vmatprep.subr.mxu0 0.0
        %2786 = vmatpush2.msra.mxu0 0.0
        %2787 = vmatprep.subr.mxu0 0.0
        %2788 = vmatpush2.msra.mxu0 0.0
        %2789 = vmatprep.subr.mxu0 0.0
        %2790 = vmatpush2.msra.mxu0 0.0
        %2791 = vmatprep.subr.mxu0 0.0
        %2792 = vmatpush2.msra.mxu0 0.0
        %2793 = vmatprep.subr.mxu0 0.0
        %2794 = vmatpush2.msra.mxu0 0.0
        %2795 = vmatprep.subr.mxu0 0.0
        %2796 = vmatpush2.msra.mxu0 0.0
        %2797 = vmatprep.subr.mxu0 0.0
        %2798 = vmatpush2.msra.mxu0 0.0
        %2799 = vmatprep.subr.mxu0 0.0
        %2800 = vmatpush2.msra.mxu0 0.0
        %2801 = vmatprep.subr.mxu0 0.0
        %2802 = vmatpush2.msra.mxu0 0.0
        %2803 = vmatprep.subr.mxu0 0.0
        %2804 = vmatpush2.msra.mxu0 0.0
        %2805 = vmatprep.subr.mxu0 0.0
        %2806 = vmatpush2.msra.mxu0 0.0
        %2807 = vmatprep.subr.mxu0 0.0
        %2808 = vmatpush2.msra.mxu0 0.0
        %2809 = vmatprep.subr.mxu0 0.0
        %2810 = vmatpush2.msra.mxu0 0.0
        %2811 = vmatprep.subr.mxu0 0.0
        %2812 = vmatpush2.msra.mxu0 0.0
        %2813 = vmatprep.mubr.f32.mxu0 0.0
        %2814 = vmatmul.mubr.f32.gmra.mxu0 %v2747
        %v2815 = vpop.f32.mrf.mxu0
        %v2816 = vadd.f32 0.0, %v2815
        %v2817 = vpop.f32.mrf.mxu0
        %2818 = vdwg.mxu0
        %v2819 = vadd.f32 %v2743, %v2816
        %v2820 = vxor.u32 %v2819, 2147483648
        %v2821 = vmul.f32 %v2820, 1.442695
        %v2822 = vpow.pop %v2821
        %v2823 = vadd.f32 %v2822, 1.0
        %v2824 = vrcp.pop %v2823
        %v2825 = vmul.f32 1.0, %v2824
        %v2826 = vtanh.pop %v2819
        %v2827 = vmul.f32 %v2825, %v2736
        %2829 = vrot.lane.b32.xlu0 %v2826, 64
        %v2830 = vpop.permute.xlu0 %2829
        %v2832 = vmul.f32 %v2825, %v2830
        %2834 = vrot.lane.b32.xlu0 %v2832, 32
        %v2835 = vpop.permute.xlu0 %2834
        %v2837 = vadd.f32 %v2827, %v2835
        %v2838 = vtanh.pop %v2837
        %2840 = vrot.lane.b32.xlu0 %v2838, 64
        %v2841 = vpop.permute.xlu0 %2840
        %v2843 = vmul.f32 %v2825, %v2841
        %vm2844 = vcmp.gt.s32.totalorder %v1252, 13
        %v2845 = vsel %vm2844, 1, 0
        %2846 = vset.pattern.permute.xlu0 0
        %2847 = vperm.xlu0 %2846, %v2845
        %v2848 = vpop.permute.xlu0 %2847
        %vm2849 = vcmp.eq.s32.totalorder %v2848, 1
        %v2850 = vsel %vm2849, %v2843, %v2735
        %v2851 = vsel %vm2849, %v2837, %v2736
        %v2852 = vsel %vm2849, %v2843, 0.0
        %2854 = vrot.lane.b32.xlu0 %v2852, 32
        %v2855 = vpop.permute.xlu0 %2854
        %2857 = vst.msk [vmem:[#allocation3 + $0x68] sm:$0xff] %vm373, %v2855
        %v2858 = vld [vmem:[#allocation2 + $0x70] sm:$0xff]
        %2860 = vrot.lane.b32.xlu0 %v2850, 32
        %v2861 = vpop.permute.xlu0 %2860
        %v2862 = vsel %vm373, %v2861, 0
        %2864 = vmatprep.subr.mxu0 0.0
        %2865 = vmatpush1.msra.mxu0 0.0
        %2866 = vmatprep.subr.mxu0 0.0
        %2867 = vmatpush1.msra.mxu0 0.0
        %2868 = vmatprep.subr.mxu0 0.0
        %2869 = vmatpush1.msra.mxu0 0.0
        %2870 = vmatprep.subr.mxu0 0.0
        %2871 = vmatpush1.msra.mxu0 0.0
        %2872 = vmatprep.subr.mxu0 0.0
        %2873 = vmatpush1.msra.mxu0 0.0
        %2874 = vmatprep.subr.mxu0 0.0
        %2875 = vmatpush1.msra.mxu0 0.0
        %2876 = vmatprep.subr.mxu0 0.0
        %2877 = vmatpush1.msra.mxu0 0.0
        %2878 = vmatprep.subr.mxu0 0.0
        %2879 = vmatpush1.msra.mxu0 0.0
        %2880 = vmatprep.subr.mxu0 0.0
        %2881 = vmatpush1.msra.mxu0 0.0
        %2882 = vmatprep.subr.mxu0 0.0
        %2883 = vmatpush1.msra.mxu0 0.0
        %2884 = vmatprep.subr.mxu0 0.0
        %2885 = vmatpush1.msra.mxu0 0.0
        %2886 = vmatprep.subr.mxu0 0.0
        %2887 = vmatpush1.msra.mxu0 0.0
        %2888 = vmatprep.subr.mxu0 0.0
        %2889 = vmatpush1.msra.mxu0 %v1256
        %2890 = vmatprep.subr.mxu0 0.0
        %2891 = vmatpush1.msra.mxu0 %v1255
        %2892 = vmatprep.subr.mxu0 0.0
        %2893 = vmatpush1.msra.mxu0 %v1254
        %2894 = vmatprep.subr.mxu0 0.0
        %2895 = vmatpush1.msra.mxu0 %v1253
        %2896 = vmatprep.subr.mxu0 0.0
        %2897 = vmatpush2.msra.mxu0 0.0
        %2898 = vmatprep.subr.mxu0 0.0
        %2899 = vmatpush2.msra.mxu0 0.0
        %2900 = vmatprep.subr.mxu0 0.0
        %2901 = vmatpush2.msra.mxu0 0.0
        %2902 = vmatprep.subr.mxu0 0.0
        %2903 = vmatpush2.msra.mxu0 0.0
        %2904 = vmatprep.subr.mxu0 0.0
        %2905 = vmatpush2.msra.mxu0 0.0
        %2906 = vmatprep.subr.mxu0 0.0
        %2907 = vmatpush2.msra.mxu0 0.0
        %2908 = vmatprep.subr.mxu0 0.0
        %2909 = vmatpush2.msra.mxu0 0.0
        %2910 = vmatprep.subr.mxu0 0.0
        %2911 = vmatpush2.msra.mxu0 0.0
        %2912 = vmatprep.subr.mxu0 0.0
        %2913 = vmatpush2.msra.mxu0 0.0
        %2914 = vmatprep.subr.mxu0 0.0
        %2915 = vmatpush2.msra.mxu0 0.0
        %2916 = vmatprep.subr.mxu0 0.0
        %2917 = vmatpush2.msra.mxu0 0.0
        %2918 = vmatprep.subr.mxu0 0.0
        %2919 = vmatpush2.msra.mxu0 0.0
        %2920 = vmatprep.subr.mxu0 0.0
        %2921 = vmatpush2.msra.mxu0 0.0
        %2922 = vmatprep.subr.mxu0 0.0
        %2923 = vmatpush2.msra.mxu0 0.0
        %2924 = vmatprep.subr.mxu0 0.0
        %2925 = vmatpush2.msra.mxu0 0.0
        %2926 = vmatprep.subr.mxu0 0.0
        %2927 = vmatpush2.msra.mxu0 0.0
        %2928 = vmatprep.mubr.f32.mxu0 0.0
        %2929 = vmatmul.mubr.f32.gmra.mxu0 %v2862
        %v2930 = vpop.f32.mrf.mxu0
        %v2931 = vadd.f32 0.0, %v2930
        %v2932 = vpop.f32.mrf.mxu0
        %2933 = vdwg.mxu0
        %v2934 = vadd.f32 %v2858, %v2931
        %v2935 = vxor.u32 %v2934, 2147483648
        %v2936 = vmul.f32 %v2935, 1.442695
        %v2937 = vpow.pop %v2936
        %v2938 = vadd.f32 %v2937, 1.0
        %v2939 = vrcp.pop %v2938
        %v2940 = vmul.f32 1.0, %v2939
        %v2941 = vtanh.pop %v2934
        %v2942 = vmul.f32 %v2940, %v2851
        %2944 = vrot.lane.b32.xlu0 %v2941, 64
        %v2945 = vpop.permute.xlu0 %2944
        %v2947 = vmul.f32 %v2940, %v2945
        %2949 = vrot.lane.b32.xlu0 %v2947, 32
        %v2950 = vpop.permute.xlu0 %2949
        %v2952 = vadd.f32 %v2942, %v2950
        %v2953 = vtanh.pop %v2952
        %2955 = vrot.lane.b32.xlu0 %v2953, 64
        %v2956 = vpop.permute.xlu0 %2955
        %v2958 = vmul.f32 %v2940, %v2956
        %vm2959 = vcmp.gt.s32.totalorder %v1252, 14
        %v2960 = vsel %vm2959, 1, 0
        %2961 = vset.pattern.permute.xlu0 0
        %2962 = vperm.xlu0 %2961, %v2960
        %v2963 = vpop.permute.xlu0 %2962
        %vm2964 = vcmp.eq.s32.totalorder %v2963, 1
        %v2965 = vsel %vm2964, %v2958, %v2850
        %v2966 = vsel %vm2964, %v2952, %v2851
        %v2967 = vsel %vm2964, %v2958, 0.0
        %2969 = vrot.lane.b32.xlu0 %v2967, 32
        %v2970 = vpop.permute.xlu0 %2969
        %2972 = vst.msk [vmem:[#allocation3 + $0x70] sm:$0xff] %vm373, %v2970
        %v2973 = vld [vmem:[#allocation2 + $0x78] sm:$0xff]
        %2975 = vrot.lane.b32.xlu0 %v2965, 32
        %v2976 = vpop.permute.xlu0 %2975
        %v2977 = vsel %vm373, %v2976, 0
        %2979 = vmatprep.subr.mxu0 0.0
        %2980 = vmatpush1.msra.mxu0 0.0
        %2981 = vmatprep.subr.mxu0 0.0
        %2982 = vmatpush1.msra.mxu0 0.0
        %2983 = vmatprep.subr.mxu0 0.0
        %2984 = vmatpush1.msra.mxu0 0.0
        %2985 = vmatprep.subr.mxu0 0.0
        %2986 = vmatpush1.msra.mxu0 0.0
        %2987 = vmatprep.subr.mxu0 0.0
        %2988 = vmatpush1.msra.mxu0 0.0
        %2989 = vmatprep.subr.mxu0 0.0
        %2990 = vmatpush1.msra.mxu0 0.0
        %2991 = vmatprep.subr.mxu0 0.0
        %2992 = vmatpush1.msra.mxu0 0.0
        %2993 = vmatprep.subr.mxu0 0.0
        %2994 = vmatpush1.msra.mxu0 0.0
        %2995 = vmatprep.subr.mxu0 0.0
        %2996 = vmatpush1.msra.mxu0 0.0
        %2997 = vmatprep.subr.mxu0 0.0
        %2998 = vmatpush1.msra.mxu0 0.0
        %2999 = vmatprep.subr.mxu0 0.0
        %3000 = vmatpush1.msra.mxu0 0.0
        %3001 = vmatprep.subr.mxu0 0.0
        %3002 = vmatpush1.msra.mxu0 0.0
        %3003 = vmatprep.subr.mxu0 0.0
        %3004 = vmatpush1.msra.mxu0 %v1256
        %3005 = vmatprep.subr.mxu0 0.0
        %3006 = vmatpush1.msra.mxu0 %v1255
        %3007 = vmatprep.subr.mxu0 0.0
        %3008 = vmatpush1.msra.mxu0 %v1254
        %3009 = vmatprep.subr.mxu0 0.0
        %3010 = vmatpush1.msra.mxu0 %v1253
        %3011 = vmatprep.subr.mxu0 0.0
        %3012 = vmatpush2.msra.mxu0 0.0
        %3013 = vmatprep.subr.mxu0 0.0
        %3014 = vmatpush2.msra.mxu0 0.0
        %3015 = vmatprep.subr.mxu0 0.0
        %3016 = vmatpush2.msra.mxu0 0.0
        %3017 = vmatprep.subr.mxu0 0.0
        %3018 = vmatpush2.msra.mxu0 0.0
        %3019 = vmatprep.subr.mxu0 0.0
        %3020 = vmatpush2.msra.mxu0 0.0
        %3021 = vmatprep.subr.mxu0 0.0
        %3022 = vmatpush2.msra.mxu0 0.0
        %3023 = vmatprep.subr.mxu0 0.0
        %3024 = vmatpush2.msra.mxu0 0.0
        %3025 = vmatprep.subr.mxu0 0.0
        %3026 = vmatpush2.msra.mxu0 0.0
        %3027 = vmatprep.subr.mxu0 0.0
        %3028 = vmatpush2.msra.mxu0 0.0
        %3029 = vmatprep.subr.mxu0 0.0
        %3030 = vmatpush2.msra.mxu0 0.0
        %3031 = vmatprep.subr.mxu0 0.0
        %3032 = vmatpush2.msra.mxu0 0.0
        %3033 = vmatprep.subr.mxu0 0.0
        %3034 = vmatpush2.msra.mxu0 0.0
        %3035 = vmatprep.subr.mxu0 0.0
        %3036 = vmatpush2.msra.mxu0 0.0
        %3037 = vmatprep.subr.mxu0 0.0
        %3038 = vmatpush2.msra.mxu0 0.0
        %3039 = vmatprep.subr.mxu0 0.0
        %3040 = vmatpush2.msra.mxu0 0.0
        %3041 = vmatprep.subr.mxu0 0.0
        %3042 = vmatpush2.msra.mxu0 0.0
        %3043 = vmatprep.mubr.f32.mxu0 0.0
        %3044 = vmatmul.mubr.f32.gmra.mxu0 %v2977
        %v3045 = vpop.f32.mrf.mxu0
        %v3046 = vadd.f32 0.0, %v3045
        %v3047 = vpop.f32.mrf.mxu0
        %3048 = vdwg.mxu0
        %v3049 = vadd.f32 %v2973, %v3046
        %v3050 = vxor.u32 %v3049, 2147483648
        %v3051 = vmul.f32 %v3050, 1.442695
        %v3052 = vpow.pop %v3051
        %v3053 = vadd.f32 %v3052, 1.0
        %v3054 = vrcp.pop %v3053
        %v3055 = vmul.f32 1.0, %v3054
        %v3056 = vtanh.pop %v3049
        %v3057 = vmul.f32 %v3055, %v2966
        %3059 = vrot.lane.b32.xlu0 %v3056, 64
        %v3060 = vpop.permute.xlu0 %3059
        %v3062 = vmul.f32 %v3055, %v3060
        %3064 = vrot.lane.b32.xlu0 %v3062, 32
        %v3065 = vpop.permute.xlu0 %3064
        %v3067 = vadd.f32 %v3057, %v3065
        %v3068 = vtanh.pop %v3067
        %3070 = vrot.lane.b32.xlu0 %v3068, 64
        %v3071 = vpop.permute.xlu0 %3070
        %v3073 = vmul.f32 %v3055, %v3071
        %vm3074 = vcmp.gt.s32.totalorder %v1252, 15
        %v3075 = vsel %vm3074, 1, 0
        %3076 = vset.pattern.permute.xlu0 0
        %3077 = vperm.xlu0 %3076, %v3075
        %v3078 = vpop.permute.xlu0 %3077
        %vm3079 = vcmp.eq.s32.totalorder %v3078, 1
        %v3080 = vsel %vm3079, %v3073, 0.0
        %3082 = vrot.lane.b32.xlu0 %v3080, 32
        %v3083 = vpop.permute.xlu0 %3082
        %3085 = vst.msk [vmem:[#allocation3 + $0x78] sm:$0xff] %vm373, %v3083
        %v3086 = vld [vmem:[#allocation3] sm:$0xff]
        %v3087 = vld [vmem:[#allocation3 + $0x8] sm:$0xff]
        %v3088 = vld [vmem:[#allocation3 + $0x10] sm:$0xff]
        %v3089 = vld [vmem:[#allocation3 + $0x18] sm:$0xff]
        %v3090 = vld [vmem:[#allocation3 + $0x20] sm:$0xff]
        %v3091 = vld [vmem:[#allocation3 + $0x28] sm:$0xff]
        %v3092 = vld [vmem:[#allocation3 + $0x30] sm:$0xff]
        %v3093 = vld [vmem:[#allocation3 + $0x38] sm:$0xff]
        %v3094 = vld [vmem:[#allocation3 + $0x40] sm:$0xff]
        %v3095 = vld [vmem:[#allocation3 + $0x48] sm:$0xff]
        %v3096 = vld [vmem:[#allocation3 + $0x50] sm:$0xff]
        %v3097 = vld [vmem:[#allocation3 + $0x58] sm:$0xff]
        %v3098 = vld [vmem:[#allocation3 + $0x60] sm:$0xff]
        %v3099 = vld [vmem:[#allocation3 + $0x68] sm:$0xff]
        %v3100 = vld [vmem:[#allocation3 + $0x70] sm:$0xff]
        %v3101 = vld [vmem:[#allocation3 + $0x78] sm:$0xff]
        %v3102 = vld [vmem:[%s5] sm:$0xff]
        %v3103 = vld [vmem:[%s5 + $0x8] sm:$0xff]
        %v3104 = vld [vmem:[%s5 + $0x10] sm:$0xff]
        %v3105 = vld [vmem:[%s5 + $0x18] sm:$0xff]
        %v3106 = vld [vmem:[%s6] sm:$0x1]
        %v3108 = vlaneseq
        %v3109 = vshrl.u32 %v3108, 7
        %v3110 = vsub.s32 0, %v3109
        %v3111 = vrot.slane %v3106, %v3110
        %v3114 = vsel %vm373, %v3086, 0
        %v3117 = vsel %vm373, %v3087, 0
        %v3120 = vsel %vm373, %v3088, 0
        %v3123 = vsel %vm373, %v3089, 0
        %v3126 = vsel %vm373, %v3090, 0
        %v3129 = vsel %vm373, %v3091, 0
        %v3132 = vsel %vm373, %v3092, 0
        %v3135 = vsel %vm373, %v3093, 0
        %v3138 = vsel %vm373, %v3094, 0
        %v3141 = vsel %vm373, %v3095, 0
        %v3144 = vsel %vm373, %v3096, 0
        %v3147 = vsel %vm373, %v3097, 0
        %v3150 = vsel %vm373, %v3098, 0
        %v3153 = vsel %vm373, %v3099, 0
        %v3156 = vsel %vm373, %v3100, 0
        %v3159 = vsel %vm373, %v3101, 0
        %3161 = vmatprep.subr.mxu0 0.0
        %3162 = vmatpush1.msra.mxu0 0.0
        %3163 = vmatprep.subr.mxu0 0.0
        %3164 = vmatpush1.msra.mxu0 0.0
        %3165 = vmatprep.subr.mxu0 0.0
        %3166 = vmatpush1.msra.mxu0 0.0
        %3167 = vmatprep.subr.mxu0 0.0
        %3168 = vmatpush1.msra.mxu0 0.0
        %3169 = vmatprep.subr.mxu0 0.0
        %3170 = vmatpush1.msra.mxu0 0.0
        %3171 = vmatprep.subr.mxu0 0.0
        %3172 = vmatpush1.msra.mxu0 0.0
        %3173 = vmatprep.subr.mxu0 0.0
        %3174 = vmatpush1.msra.mxu0 0.0
        %3175 = vmatprep.subr.mxu0 0.0
        %3176 = vmatpush1.msra.mxu0 0.0
        %3177 = vmatprep.subr.mxu0 0.0
        %3178 = vmatpush1.msra.mxu0 0.0
        %3179 = vmatprep.subr.mxu0 0.0
        %3180 = vmatpush1.msra.mxu0 0.0
        %3181 = vmatprep.subr.mxu0 0.0
        %3182 = vmatpush1.msra.mxu0 0.0
        %3183 = vmatprep.subr.mxu0 0.0
        %3184 = vmatpush1.msra.mxu0 0.0
        %3185 = vmatprep.subr.mxu0 0.0
        %3186 = vmatpush1.msra.mxu0 %v3105
        %3187 = vmatprep.subr.mxu0 0.0
        %3188 = vmatpush1.msra.mxu0 %v3104
        %3189 = vmatprep.subr.mxu0 0.0
        %3190 = vmatpush1.msra.mxu0 %v3103
        %3191 = vmatprep.subr.mxu0 0.0
        %3192 = vmatpush1.msra.mxu0 %v3102
        %3193 = vmatprep.subr.mxu0 0.0
        %3194 = vmatpush2.msra.mxu0 0.0
        %3195 = vmatprep.subr.mxu0 0.0
        %3196 = vmatpush2.msra.mxu0 0.0
        %3197 = vmatprep.subr.mxu0 0.0
        %3198 = vmatpush2.msra.mxu0 0.0
        %3199 = vmatprep.subr.mxu0 0.0
        %3200 = vmatpush2.msra.mxu0 0.0
        %3201 = vmatprep.subr.mxu0 0.0
        %3202 = vmatpush2.msra.mxu0 0.0
        %3203 = vmatprep.subr.mxu0 0.0
        %3204 = vmatpush2.msra.mxu0 0.0
        %3205 = vmatprep.subr.mxu0 0.0
        %3206 = vmatpush2.msra.mxu0 0.0
        %3207 = vmatprep.subr.mxu0 0.0
        %3208 = vmatpush2.msra.mxu0 0.0
        %3209 = vmatprep.subr.mxu0 0.0
        %3210 = vmatpush2.msra.mxu0 0.0
        %3211 = vmatprep.subr.mxu0 0.0
        %3212 = vmatpush2.msra.mxu0 0.0
        %3213 = vmatprep.subr.mxu0 0.0
        %3214 = vmatpush2.msra.mxu0 0.0
        %3215 = vmatprep.subr.mxu0 0.0
        %3216 = vmatpush2.msra.mxu0 0.0
        %3217 = vmatprep.subr.mxu0 0.0
        %3218 = vmatpush2.msra.mxu0 0.0
        %3219 = vmatprep.subr.mxu0 0.0
        %3220 = vmatpush2.msra.mxu0 0.0
        %3221 = vmatprep.subr.mxu0 0.0
        %3222 = vmatpush2.msra.mxu0 0.0
        %3223 = vmatprep.subr.mxu0 0.0
        %3224 = vmatpush2.msra.mxu0 0.0
        %3225 = vmatprep.mubr.f32.mxu0 0.0
        %3226 = vmatmul.mubr.f32.gmra.mxu0 %v3114
        %v3227 = vpop.f32.mrf.mxu0
        %v3228 = vadd.f32 %v3111, %v3227
        %v3229 = vpop.f32.mrf.mxu0
        %3230 = vmatprep.mubr.f32.mxu0 0.0
        %3231 = vmatmul.mubr.f32.gmra.mxu0 %v3117
        %v3232 = vpop.f32.mrf.mxu0
        %v3233 = vadd.f32 %v3111, %v3232
        %v3234 = vpop.f32.mrf.mxu0
        %3235 = vmatprep.mubr.f32.mxu0 0.0
        %3236 = vmatmul.mubr.f32.gmra.mxu0 %v3120
        %v3237 = vpop.f32.mrf.mxu0
        %v3238 = vadd.f32 %v3111, %v3237
        %v3239 = vpop.f32.mrf.mxu0
        %3240 = vmatprep.mubr.f32.mxu0 0.0
        %3241 = vmatmul.mubr.f32.gmra.mxu0 %v3123
        %v3242 = vpop.f32.mrf.mxu0
        %v3243 = vadd.f32 %v3111, %v3242
        %v3244 = vpop.f32.mrf.mxu0
        %3245 = vmatprep.mubr.f32.mxu0 0.0
        %3246 = vmatmul.mubr.f32.gmra.mxu0 %v3126
        %v3247 = vpop.f32.mrf.mxu0
        %v3248 = vadd.f32 %v3111, %v3247
        %v3249 = vpop.f32.mrf.mxu0
        %3250 = vmatprep.mubr.f32.mxu0 0.0
        %3251 = vmatmul.mubr.f32.gmra.mxu0 %v3129
        %v3252 = vpop.f32.mrf.mxu0
        %v3253 = vadd.f32 %v3111, %v3252
        %v3254 = vpop.f32.mrf.mxu0
        %3255 = vmatprep.mubr.f32.mxu0 0.0
        %3256 = vmatmul.mubr.f32.gmra.mxu0 %v3132
        %v3257 = vpop.f32.mrf.mxu0
        %v3258 = vadd.f32 %v3111, %v3257
        %v3259 = vpop.f32.mrf.mxu0
        %3260 = vmatprep.mubr.f32.mxu0 0.0
        %3261 = vmatmul.mubr.f32.gmra.mxu0 %v3135
        %v3262 = vpop.f32.mrf.mxu0
        %v3263 = vadd.f32 %v3111, %v3262
        %v3264 = vpop.f32.mrf.mxu0
        %3265 = vmatprep.mubr.f32.mxu0 0.0
        %3266 = vmatmul.mubr.f32.gmra.mxu0 %v3138
        %v3267 = vpop.f32.mrf.mxu0
        %v3268 = vadd.f32 %v3111, %v3267
        %v3269 = vpop.f32.mrf.mxu0
        %3270 = vmatprep.mubr.f32.mxu0 0.0
        %3271 = vmatmul.mubr.f32.gmra.mxu0 %v3141
        %v3272 = vpop.f32.mrf.mxu0
        %v3273 = vadd.f32 %v3111, %v3272
        %v3274 = vpop.f32.mrf.mxu0
        %3275 = vmatprep.mubr.f32.mxu0 0.0
        %3276 = vmatmul.mubr.f32.gmra.mxu0 %v3144
        %v3277 = vpop.f32.mrf.mxu0
        %v3278 = vadd.f32 %v3111, %v3277
        %v3279 = vpop.f32.mrf.mxu0
        %3280 = vmatprep.mubr.f32.mxu0 0.0
        %3281 = vmatmul.mubr.f32.gmra.mxu0 %v3147
        %v3282 = vpop.f32.mrf.mxu0
        %v3283 = vadd.f32 %v3111, %v3282
        %v3284 = vpop.f32.mrf.mxu0
        %3285 = vmatprep.mubr.f32.mxu0 0.0
        %3286 = vmatmul.mubr.f32.gmra.mxu0 %v3150
        %v3287 = vpop.f32.mrf.mxu0
        %v3288 = vadd.f32 %v3111, %v3287
        %v3289 = vpop.f32.mrf.mxu0
        %3290 = vmatprep.mubr.f32.mxu0 0.0
        %3291 = vmatmul.mubr.f32.gmra.mxu0 %v3153
        %v3292 = vpop.f32.mrf.mxu0
        %v3293 = vadd.f32 %v3111, %v3292
        %v3294 = vpop.f32.mrf.mxu0
        %3295 = vmatprep.mubr.f32.mxu0 0.0
        %3296 = vmatmul.mubr.f32.gmra.mxu0 %v3156
        %v3297 = vpop.f32.mrf.mxu0
        %v3298 = vadd.f32 %v3111, %v3297
        %v3299 = vpop.f32.mrf.mxu0
        %3300 = vmatprep.mubr.f32.mxu0 0.0
        %3301 = vmatmul.mubr.f32.gmra.mxu0 %v3159
        %v3302 = vpop.f32.mrf.mxu0
        %v3303 = vadd.f32 %v3111, %v3302
        %v3304 = vpop.f32.mrf.mxu0
        %3305 = vdwg.mxu0
        %v3306 = vmax.f32 %v3228, 0.0
        %v3307 = vmax.f32 %v3233, 0.0
        %v3308 = vmax.f32 %v3238, 0.0
        %v3309 = vmax.f32 %v3243, 0.0
        %v3310 = vmax.f32 %v3248, 0.0
        %v3311 = vmax.f32 %v3253, 0.0
        %v3312 = vmax.f32 %v3258, 0.0
        %v3313 = vmax.f32 %v3263, 0.0
        %v3314 = vmax.f32 %v3268, 0.0
        %v3315 = vmax.f32 %v3273, 0.0
        %v3316 = vmax.f32 %v3278, 0.0
        %v3317 = vmax.f32 %v3283, 0.0
        %v3318 = vmax.f32 %v3288, 0.0
        %v3319 = vmax.f32 %v3293, 0.0
        %v3320 = vmax.f32 %v3298, 0.0
        %v3321 = vmax.f32 %v3303, 0.0
        %v3322 = vld [vmem:[%s7] sm:$0xff]
        %v3323 = vld [vmem:[%s7 + $0x8] sm:$0xff]
        %v3324 = vld [vmem:[%s8] sm:$0x1]
        %v3326 = vlaneseq
        %v3327 = vshrl.u32 %v3326, 7
        %v3328 = vsub.s32 0, %v3327
        %v3329 = vrot.slane %v3324, %v3328
        %vm3331 = vcmask 130048
        %v3333 = vsel %vm3331, %v3306, 0
        %v3336 = vsel %vm3331, %v3307, 0
        %v3339 = vsel %vm3331, %v3308, 0
        %v3342 = vsel %vm3331, %v3309, 0
        %v3345 = vsel %vm3331, %v3310, 0
        %v3348 = vsel %vm3331, %v3311, 0
        %v3351 = vsel %vm3331, %v3312, 0
        %v3354 = vsel %vm3331, %v3313, 0
        %v3357 = vsel %vm3331, %v3314, 0
        %v3360 = vsel %vm3331, %v3315, 0
        %v3363 = vsel %vm3331, %v3316, 0
        %v3366 = vsel %vm3331, %v3317, 0
        %v3369 = vsel %vm3331, %v3318, 0
        %v3372 = vsel %vm3331, %v3319, 0
        %v3375 = vsel %vm3331, %v3320, 0
        %v3378 = vsel %vm3331, %v3321, 0
        %3380 = vmatprep.subr.mxu0 0.0
        %3381 = vmatpush1.msra.mxu0 0.0
        %3382 = vmatprep.subr.mxu0 0.0
        %3383 = vmatpush1.msra.mxu0 0.0
        %3384 = vmatprep.subr.mxu0 0.0
        %3385 = vmatpush1.msra.mxu0 0.0
        %3386 = vmatprep.subr.mxu0 0.0
        %3387 = vmatpush1.msra.mxu0 0.0
        %3388 = vmatprep.subr.mxu0 0.0
        %3389 = vmatpush1.msra.mxu0 0.0
        %3390 = vmatprep.subr.mxu0 0.0
        %3391 = vmatpush1.msra.mxu0 0.0
        %3392 = vmatprep.subr.mxu0 0.0
        %3393 = vmatpush1.msra.mxu0 0.0
        %3394 = vmatprep.subr.mxu0 0.0
        %3395 = vmatpush1.msra.mxu0 0.0
        %3396 = vmatprep.subr.mxu0 0.0
        %3397 = vmatpush1.msra.mxu0 0.0
        %3398 = vmatprep.subr.mxu0 0.0
        %3399 = vmatpush1.msra.mxu0 0.0
        %3400 = vmatprep.subr.mxu0 0.0
        %3401 = vmatpush1.msra.mxu0 0.0
        %3402 = vmatprep.subr.mxu0 0.0
        %3403 = vmatpush1.msra.mxu0 0.0
        %3404 = vmatprep.subr.mxu0 0.0
        %3405 = vmatpush1.msra.mxu0 0.0
        %3406 = vmatprep.subr.mxu0 0.0
        %3407 = vmatpush1.msra.mxu0 0.0
        %3408 = vmatprep.subr.mxu0 0.0
        %3409 = vmatpush1.msra.mxu0 %v3323
        %3410 = vmatprep.subr.mxu0 0.0
        %3411 = vmatpush1.msra.mxu0 %v3322
        %3412 = vmatprep.subr.mxu0 0.0
        %3413 = vmatpush2.msra.mxu0 0.0
        %3414 = vmatprep.subr.mxu0 0.0
        %3415 = vmatpush2.msra.mxu0 0.0
        %3416 = vmatprep.subr.mxu0 0.0
        %3417 = vmatpush2.msra.mxu0 0.0
        %3418 = vmatprep.subr.mxu0 0.0
        %3419 = vmatpush2.msra.mxu0 0.0
        %3420 = vmatprep.subr.mxu0 0.0
        %3421 = vmatpush2.msra.mxu0 0.0
        %3422 = vmatprep.subr.mxu0 0.0
        %3423 = vmatpush2.msra.mxu0 0.0
        %3424 = vmatprep.subr.mxu0 0.0
        %3425 = vmatpush2.msra.mxu0 0.0
        %3426 = vmatprep.subr.mxu0 0.0
        %3427 = vmatpush2.msra.mxu0 0.0
        %3428 = vmatprep.subr.mxu0 0.0
        %3429 = vmatpush2.msra.mxu0 0.0
        %3430 = vmatprep.subr.mxu0 0.0
        %3431 = vmatpush2.msra.mxu0 0.0
        %3432 = vmatprep.subr.mxu0 0.0
        %3433 = vmatpush2.msra.mxu0 0.0
        %3434 = vmatprep.subr.mxu0 0.0
        %3435 = vmatpush2.msra.mxu0 0.0
        %3436 = vmatprep.subr.mxu0 0.0
        %3437 = vmatpush2.msra.mxu0 0.0
        %3438 = vmatprep.subr.mxu0 0.0
        %3439 = vmatpush2.msra.mxu0 0.0
        %3440 = vmatprep.subr.mxu0 0.0
        %3441 = vmatpush2.msra.mxu0 0.0
        %3442 = vmatprep.subr.mxu0 0.0
        %3443 = vmatpush2.msra.mxu0 0.0
        %3444 = vmatprep.mubr.f32.mxu0 0.0
        %3445 = vmatmul.mubr.f32.gmra.mxu0 %v3333
        %v3446 = vpop.f32.mrf.mxu0
        %v3447 = vadd.f32 %v3329, %v3446
        %v3448 = vpop.f32.mrf.mxu0
        %3449 = vmatprep.mubr.f32.mxu0 0.0
        %3450 = vmatmul.mubr.f32.gmra.mxu0 %v3336
        %v3451 = vpop.f32.mrf.mxu0
        %v3452 = vadd.f32 %v3329, %v3451
        %v3453 = vpop.f32.mrf.mxu0
        %3454 = vmatprep.mubr.f32.mxu0 0.0
        %3455 = vmatmul.mubr.f32.gmra.mxu0 %v3339
        %v3456 = vpop.f32.mrf.mxu0
        %v3457 = vadd.f32 %v3329, %v3456
        %v3458 = vpop.f32.mrf.mxu0
        %3459 = vmatprep.mubr.f32.mxu0 0.0
        %3460 = vmatmul.mubr.f32.gmra.mxu0 %v3342
        %v3461 = vpop.f32.mrf.mxu0
        %v3462 = vadd.f32 %v3329, %v3461
        %v3463 = vpop.f32.mrf.mxu0
        %3464 = vmatprep.mubr.f32.mxu0 0.0
        %3465 = vmatmul.mubr.f32.gmra.mxu0 %v3345
        %v3466 = vpop.f32.mrf.mxu0
        %v3467 = vadd.f32 %v3329, %v3466
        %v3468 = vpop.f32.mrf.mxu0
        %3469 = vmatprep.mubr.f32.mxu0 0.0
        %3470 = vmatmul.mubr.f32.gmra.mxu0 %v3348
        %v3471 = vpop.f32.mrf.mxu0
        %v3472 = vadd.f32 %v3329, %v3471
        %v3473 = vpop.f32.mrf.mxu0
        %3474 = vmatprep.mubr.f32.mxu0 0.0
        %3475 = vmatmul.mubr.f32.gmra.mxu0 %v3351
        %v3476 = vpop.f32.mrf.mxu0
        %v3477 = vadd.f32 %v3329, %v3476
        %v3478 = vpop.f32.mrf.mxu0
        %3479 = vmatprep.mubr.f32.mxu0 0.0
        %3480 = vmatmul.mubr.f32.gmra.mxu0 %v3354
        %v3481 = vpop.f32.mrf.mxu0
        %v3482 = vadd.f32 %v3329, %v3481
        %v3483 = vpop.f32.mrf.mxu0
        %3484 = vmatprep.mubr.f32.mxu0 0.0
        %3485 = vmatmul.mubr.f32.gmra.mxu0 %v3357
        %v3486 = vpop.f32.mrf.mxu0
        %v3487 = vadd.f32 %v3329, %v3486
        %v3488 = vpop.f32.mrf.mxu0
        %3489 = vmatprep.mubr.f32.mxu0 0.0
        %3490 = vmatmul.mubr.f32.gmra.mxu0 %v3360
        %v3491 = vpop.f32.mrf.mxu0
        %v3492 = vadd.f32 %v3329, %v3491
        %v3493 = vpop.f32.mrf.mxu0
        %3494 = vmatprep.mubr.f32.mxu0 0.0
        %3495 = vmatmul.mubr.f32.gmra.mxu0 %v3363
        %v3496 = vpop.f32.mrf.mxu0
        %v3497 = vadd.f32 %v3329, %v3496
        %v3498 = vpop.f32.mrf.mxu0
        %3499 = vmatprep.mubr.f32.mxu0 0.0
        %3500 = vmatmul.mubr.f32.gmra.mxu0 %v3366
        %v3501 = vpop.f32.mrf.mxu0
        %v3502 = vadd.f32 %v3329, %v3501
        %v3503 = vpop.f32.mrf.mxu0
        %3504 = vmatprep.mubr.f32.mxu0 0.0
        %3505 = vmatmul.mubr.f32.gmra.mxu0 %v3369
        %v3506 = vpop.f32.mrf.mxu0
        %v3507 = vadd.f32 %v3329, %v3506
        %v3508 = vpop.f32.mrf.mxu0
        %3509 = vmatprep.mubr.f32.mxu0 0.0
        %3510 = vmatmul.mubr.f32.gmra.mxu0 %v3372
        %v3511 = vpop.f32.mrf.mxu0
        %v3512 = vadd.f32 %v3329, %v3511
        %v3513 = vpop.f32.mrf.mxu0
        %3514 = vmatprep.mubr.f32.mxu0 0.0
        %3515 = vmatmul.mubr.f32.gmra.mxu0 %v3375
        %v3516 = vpop.f32.mrf.mxu0
        %v3517 = vadd.f32 %v3329, %v3516
        %v3518 = vpop.f32.mrf.mxu0
        %3519 = vmatprep.mubr.f32.mxu0 0.0
        %3520 = vmatmul.mubr.f32.gmra.mxu0 %v3378
        %v3521 = vpop.f32.mrf.mxu0
        %v3522 = vadd.f32 %v3329, %v3521
        %v3523 = vpop.f32.mrf.mxu0
        %3524 = vdwg.mxu0
        %3525 = vmax.xlane.f32.xlu0 %v3447
        %v3526 = vpop.xlane.xlu0 %3525
        %3527 = vmax.xlane.f32.xlu0 %v3452
        %v3528 = vpop.xlane.xlu0 %3527
        %3529 = vmax.xlane.f32.xlu0 %v3457
        %v3530 = vpop.xlane.xlu0 %3529
        %3531 = vmax.xlane.f32.xlu0 %v3462
        %v3532 = vpop.xlane.xlu0 %3531
        %3533 = vmax.xlane.f32.xlu0 %v3467
        %v3534 = vpop.xlane.xlu0 %3533
        %3535 = vmax.xlane.f32.xlu0 %v3472
        %v3536 = vpop.xlane.xlu0 %3535
        %3537 = vmax.xlane.f32.xlu0 %v3477
        %v3538 = vpop.xlane.xlu0 %3537
        %3539 = vmax.xlane.f32.xlu0 %v3482
        %v3540 = vpop.xlane.xlu0 %3539
        %3541 = vmax.xlane.f32.xlu0 %v3487
        %v3542 = vpop.xlane.xlu0 %3541
        %3543 = vmax.xlane.f32.xlu0 %v3492
        %v3544 = vpop.xlane.xlu0 %3543
        %3545 = vmax.xlane.f32.xlu0 %v3497
        %v3546 = vpop.xlane.xlu0 %3545
        %3547 = vmax.xlane.f32.xlu0 %v3502
        %v3548 = vpop.xlane.xlu0 %3547
        %3549 = vmax.xlane.f32.xlu0 %v3507
        %v3550 = vpop.xlane.xlu0 %3549
        %3551 = vmax.xlane.f32.xlu0 %v3512
        %v3552 = vpop.xlane.xlu0 %3551
        %3553 = vmax.xlane.f32.xlu0 %v3517
        %v3554 = vpop.xlane.xlu0 %3553
        %3555 = vmax.xlane.f32.xlu0 %v3522
        %v3556 = vpop.xlane.xlu0 %3555
        %v3557 = vsub.f32 %v3447, %v3526
        %v3558 = vsub.f32 %v3452, %v3528
        %v3559 = vsub.f32 %v3457, %v3530
        %v3560 = vsub.f32 %v3462, %v3532
        %v3561 = vsub.f32 %v3467, %v3534
        %v3562 = vsub.f32 %v3472, %v3536
        %v3563 = vsub.f32 %v3477, %v3538
        %v3564 = vsub.f32 %v3482, %v3540
        %v3565 = vsub.f32 %v3487, %v3542
        %v3566 = vsub.f32 %v3492, %v3544
        %v3567 = vsub.f32 %v3497, %v3546
        %v3568 = vsub.f32 %v3502, %v3548
        %v3569 = vsub.f32 %v3507, %v3550
        %v3570 = vsub.f32 %v3512, %v3552
        %v3571 = vsub.f32 %v3517, %v3554
        %v3572 = vsub.f32 %v3522, %v3556
        %v3573 = vmul.f32 %v3557, 1.442695
        %v3574 = vpow.pop %v3573
        %v3575 = vmul.f32 %v3558, 1.442695
        %v3576 = vpow.pop %v3575
        %v3577 = vmul.f32 %v3559, 1.442695
        %v3578 = vpow.pop %v3577
        %v3579 = vmul.f32 %v3560, 1.442695
        %v3580 = vpow.pop %v3579
        %v3581 = vmul.f32 %v3561, 1.442695
        %v3582 = vpow.pop %v3581
        %v3583 = vmul.f32 %v3562, 1.442695
        %v3584 = vpow.pop %v3583
        %v3585 = vmul.f32 %v3563, 1.442695
        %v3586 = vpow.pop %v3585
        %v3587 = vmul.f32 %v3564, 1.442695
        %v3588 = vpow.pop %v3587
        %v3589 = vmul.f32 %v3565, 1.442695
        %v3590 = vpow.pop %v3589
        %v3591 = vmul.f32 %v3566, 1.442695
        %v3592 = vpow.pop %v3591
        %v3593 = vmul.f32 %v3567, 1.442695
        %v3594 = vpow.pop %v3593
        %v3595 = vmul.f32 %v3568, 1.442695
        %v3596 = vpow.pop %v3595
        %v3597 = vmul.f32 %v3569, 1.442695
        %v3598 = vpow.pop %v3597
        %v3599 = vmul.f32 %v3570, 1.442695
        %v3600 = vpow.pop %v3599
        %v3601 = vmul.f32 %v3571, 1.442695
        %v3602 = vpow.pop %v3601
        %v3603 = vmul.f32 %v3572, 1.442695
        %v3604 = vpow.pop %v3603
        %3605 = vadd.xlane.f32.xlu0 %v3574
        %v3606 = vpop.xlane.xlu0 %3605
        %3607 = vadd.xlane.f32.xlu0 %v3576
        %v3608 = vpop.xlane.xlu0 %3607
        %3609 = vadd.xlane.f32.xlu0 %v3578
        %v3610 = vpop.xlane.xlu0 %3609
        %3611 = vadd.xlane.f32.xlu0 %v3580
        %v3612 = vpop.xlane.xlu0 %3611
        %3613 = vadd.xlane.f32.xlu0 %v3582
        %v3614 = vpop.xlane.xlu0 %3613
        %3615 = vadd.xlane.f32.xlu0 %v3584
        %v3616 = vpop.xlane.xlu0 %3615
        %3617 = vadd.xlane.f32.xlu0 %v3586
        %v3618 = vpop.xlane.xlu0 %3617
        %3619 = vadd.xlane.f32.xlu0 %v3588
        %v3620 = vpop.xlane.xlu0 %3619
        %3621 = vadd.xlane.f32.xlu0 %v3590
        %v3622 = vpop.xlane.xlu0 %3621
        %3623 = vadd.xlane.f32.xlu0 %v3592
        %v3624 = vpop.xlane.xlu0 %3623
        %3625 = vadd.xlane.f32.xlu0 %v3594
        %v3626 = vpop.xlane.xlu0 %3625
        %3627 = vadd.xlane.f32.xlu0 %v3596
        %v3628 = vpop.xlane.xlu0 %3627
        %3629 = vadd.xlane.f32.xlu0 %v3598
        %v3630 = vpop.xlane.xlu0 %3629
        %3631 = vadd.xlane.f32.xlu0 %v3600
        %v3632 = vpop.xlane.xlu0 %3631
        %3633 = vadd.xlane.f32.xlu0 %v3602
        %v3634 = vpop.xlane.xlu0 %3633
        %3635 = vadd.xlane.f32.xlu0 %v3604
        %v3636 = vpop.xlane.xlu0 %3635
        %v3637 = vrcp.pop %v3606
        %v3638 = vmul.f32 %v3574, %v3637
        %v3639 = vrcp.pop %v3608
        %v3640 = vmul.f32 %v3576, %v3639
        %v3641 = vrcp.pop %v3610
        %v3642 = vmul.f32 %v3578, %v3641
        %v3643 = vrcp.pop %v3612
        %v3644 = vmul.f32 %v3580, %v3643
        %v3645 = vrcp.pop %v3614
        %v3646 = vmul.f32 %v3582, %v3645
        %v3647 = vrcp.pop %v3616
        %v3648 = vmul.f32 %v3584, %v3647
        %v3649 = vrcp.pop %v3618
        %v3650 = vmul.f32 %v3586, %v3649
        %v3651 = vrcp.pop %v3620
        %v3652 = vmul.f32 %v3588, %v3651
        %v3653 = vrcp.pop %v3622
        %v3654 = vmul.f32 %v3590, %v3653
        %v3655 = vrcp.pop %v3624
        %v3656 = vmul.f32 %v3592, %v3655
        %v3657 = vrcp.pop %v3626
        %v3658 = vmul.f32 %v3594, %v3657
        %v3659 = vrcp.pop %v3628
        %v3660 = vmul.f32 %v3596, %v3659
        %v3661 = vrcp.pop %v3630
        %v3662 = vmul.f32 %v3598, %v3661
        %v3663 = vrcp.pop %v3632
        %v3664 = vmul.f32 %v3600, %v3663
        %v3665 = vrcp.pop %v3634
        %v3666 = vmul.f32 %v3602, %v3665
        %v3667 = vrcp.pop %v3636
        %v3668 = vmul.f32 %v3604, %v3667
        %3669 = vst [vmem:[%s338] sm:$0xff] %v3638
        %3670 = vst [vmem:[%s338 + $0x8] sm:$0xff] %v3640
        %3671 = vst [vmem:[%s338 + $0x10] sm:$0xff] %v3642
        %3672 = vst [vmem:[%s338 + $0x18] sm:$0xff] %v3644
        %3673 = vst [vmem:[%s338 + $0x20] sm:$0xff] %v3646
        %3674 = vst [vmem:[%s338 + $0x28] sm:$0xff] %v3648
        %3675 = vst [vmem:[%s338 + $0x30] sm:$0xff] %v3650
        %3676 = vst [vmem:[%s338 + $0x38] sm:$0xff] %v3652
        %3677 = vst [vmem:[%s338 + $0x40] sm:$0xff] %v3654
        %3678 = vst [vmem:[%s338 + $0x48] sm:$0xff] %v3656
        %3679 = vst [vmem:[%s338 + $0x50] sm:$0xff] %v3658
        %3680 = vst [vmem:[%s338 + $0x58] sm:$0xff] %v3660
        %3681 = vst [vmem:[%s338 + $0x60] sm:$0xff] %v3662
        %3682 = vst [vmem:[%s338 + $0x68] sm:$0xff] %v3664
        %3683 = vst [vmem:[%s338 + $0x70] sm:$0xff] %v3666
        %3684 = vst [vmem:[%s338 + $0x78] sm:$0xff] %v3668
        %s3685 = sand.u32 %s230, 1
        %s3686 = scalar_lea.sflag [#allocation5], %s3685
        %s3687 = sand.u32 %s230, 1
        %s3688 = smul.addr %s3687, 128
        %s3689 = scalar_lea.vmem [#allocation4], %s3688
        // Predicated region
        $region57: #{tpu_custom_call.1} parent=55 // pred_check
          %p3690 = pneg %p240
        $region58: #{tpu_custom_call.1} parent=55 // pred_check_branch
          %3692 = sbr.rel (%p3690) target = $region60
        $region59: #{tpu_custom_call.1} parent=55 // pred_region
          %s3694 = ssub.s32 2048, 2048
          %3695 = vsyncadd %s3686, %s3694
          %s3696 = smul.addr %s23, 16
          %s3697 = smul.addr %s3696, 128
          %s3698 = scalar_lea.hbm %s9, %s3697
          %s3699 = sshll.u32 %s3689, 4
          %s3700 = int_to_ptr.vmem [resolvable:$true] %s3699
          %3705 = dma.vmem_to_hbm [thread:$0]  %s3700, 2048, %s3698, %s3686, 128, 128, 8
        $region60: #{tpu_custom_call.1} parent=55 // pred_fallthru
          _
      $region56: #{tpu_custom_call.1} parent=5 // pred_fallthru
        _
      %p3706 = scmp.le.s32.totalorder 2, %s18
      // Predicated region
      $region61: #{tpu_custom_call.1} parent=5 // pred_check
        %p3707 = pneg %p3706
      $region62: #{tpu_custom_call.1} parent=5 // pred_check_branch
        %3709 = sbr.rel (%p3707) target = $region64
      $region63: #{tpu_custom_call.1} parent=5 // pred_region
        %s3710 = ssub.s32 %s18, 2
        // Predicated region
        $region65: #{tpu_custom_call.1} parent=63 // pred_check
          %p3711 = pneg %p246
        $region66: #{tpu_custom_call.1} parent=63 // pred_check_branch
          %3713 = sbr.rel (%p3711) target = $region68
        $region67: #{tpu_custom_call.1} parent=63 // pred_region
          %s3714 = sand.u32 %s231, 1
          %s3715 = scalar_lea.sflag [#allocation5], %s3714
          %s3716 = sand.u32 %s231, 1
          %s3717 = smul.addr %s3716, 128
          %s3718 = scalar_lea.vmem [#allocation4], %s3717
          %3719 = dma.done %s3715, 2048
        $region68: #{tpu_custom_call.1} parent=63 // pred_fallthru
          _
      $region64: #{tpu_custom_call.1} parent=5 // pred_fallthru
        _
    $region6: #{tpu_custom_call.1} parent=1 // loop_footer
      %s22 = sadd.s32 1, %s18
    $region7: #{tpu_custom_call.1} parent=1 // loop_footer_branch
      %17 = sbr.rel target = $region3
    $region8: #{tpu_custom_call.1} parent=1 // loop_exit
      _
    %3720 = vsyncpa [#allocation5], 1
    %s3721 = scalar_lea.sflag [#allocation5], 1
    %3722 = vsyncpa %s3721, 1

</llo_original>
